<compile_context>
chip_gen: v7x
topology: tpu7x:2x2x1
jax: 0.10.0
libtpu: 0.0.40
codegen_flags: <defaults>
</compile_context>

<pallas_src>
import functools

import jax
import jax.numpy as jnp
from jax.experimental import pallas as pl
from jax.experimental.pallas import tpu as pltpu

IN_F = 784        # 28 * 28
IN_PAD = 896      # 7 * 128  (lane-dense)
HID = 400
HID_PAD = 512     # 4 * 128  (lane-dense)


def _round_up(x, m):
    return (x + m - 1) // m * m


def vae_fwd_kernel(x_ref, eps_ref,
                   w1_ref, b1_ref,
                   wh_ref, bh_ref,
                   w3_ref, b3_ref,
                   w4_ref, b4_ref,
                   recon_ref, head_ref, *, latent):
    x = x_ref[...]                                               # (BT, 896) f32

    # encode: h1 = relu(fc1(x))   -- bf16 operands into MXU, f32 accumulation
    h1 = jnp.dot(x.astype(jnp.bfloat16), w1_ref[...],
                 preferred_element_type=jnp.float32) + b1_ref[...]
    h1 = jnp.maximum(h1, 0.0)

    # fused mu|logvar head: one MXU push, one lane-dense (BT, 128) store
    head = jnp.dot(h1.astype(jnp.bfloat16), wh_ref[...],
                   preferred_element_type=jnp.float32) + bh_ref[...]
    head_ref[...] = head

    mu = head[:, :latent]
    logvar = head[:, latent:2 * latent]

    # reparameterize: z = mu + eps * exp(0.5 * logvar)   (f32 elementwise)
    z = mu + eps_ref[...] * jnp.exp(0.5 * logvar)

    # decode: sigmoid(fc4(relu(fc3(z))))
    h3 = jnp.dot(z.astype(jnp.bfloat16), w3_ref[...],
                 preferred_element_type=jnp.float32) + b3_ref[...]
    h3 = jnp.maximum(h3, 0.0)
    logits = jnp.dot(h3.astype(jnp.bfloat16), w4_ref[...],
                     preferred_element_type=jnp.float32) + b4_ref[...]
    recon_ref[...] = jax.nn.sigmoid(logits)


def init_params(key, latent_variable_size):
    """Deterministic synthetic parameters, PyTorch nn.Linear shapes (out, in)."""
    dims = [("fc1", 784, 400),
            ("fc21", 400, latent_variable_size),
            ("fc22", 400, latent_variable_size),
            ("fc3", latent_variable_size, 400),
            ("fc4", 400, 784)]
    params = {}
    for name, fan_in, fan_out in dims:
        key, kw, kb = jax.random.split(key, 3)
        bound = 1.0 / jnp.sqrt(fan_in)
        # PyTorch stores weight as (out_features, in_features)
        w = jax.random.uniform(kw, (fan_out, fan_in), jnp.float32, -bound, bound)
        b = jax.random.uniform(kb, (fan_out,), jnp.float32, -bound, bound)
        params[name] = (w, b)
    return params


def prepare_params(params, latent):
    """One-time prep (NOT in the per-call hot path): transpose to (in, out),
    zero-pad to lane-dense shapes, fuse fc21|fc22, cast weights to bf16."""
    head_pad = max(128, _round_up(2 * latent, 128))

    w1, b1 = params["fc1"]
    w21, b21 = params["fc21"]
    w22, b22 = params["fc22"]
    w3, b3 = params["fc3"]
    w4, b4 = params["fc4"]

    w1p = jnp.zeros((IN_PAD, HID_PAD), jnp.float32).at[:IN_F, :HID].set(w1.T)
    b1p = jnp.zeros((1, HID_PAD), jnp.float32).at[0, :HID].set(b1)

    whp = (jnp.zeros((HID_PAD, head_pad), jnp.float32)
           .at[:HID, :latent].set(w21.T)
           .at[:HID, latent:2 * latent].set(w22.T))
    bhp = (jnp.zeros((1, head_pad), jnp.float32)
           .at[0, :latent].set(b21)
           .at[0, latent:2 * latent].set(b22))

    w3p = jnp.zeros((latent, HID_PAD), jnp.float32).at[:, :HID].set(w3.T)
    b3p = jnp.zeros((1, HID_PAD), jnp.float32).at[0, :HID].set(b3)

    w4p = jnp.zeros((HID_PAD, IN_PAD), jnp.float32).at[:HID, :IN_F].set(w4.T)
    b4p = jnp.zeros((1, IN_PAD), jnp.float32).at[0, :IN_F].set(b4)

    return {
        "w1": w1p.astype(jnp.bfloat16), "b1": b1p,
        "wh": whp.astype(jnp.bfloat16), "bh": bhp,
        "w3": w3p.astype(jnp.bfloat16), "b3": b3p,
        "w4": w4p.astype(jnp.bfloat16), "b4": b4p,
    }


def vanila_vae_forward(x, prep, eps, *, batch_tile=256):
    """x: (B, nc, 28, 28).  Returns (recon (B, 784), mu (B, L), logvar (B, L))."""
    B = x.shape[0]
    latent = eps.shape[1]
    head_pad = prep["bh"].shape[1]

    # Batch tile: 256 fills the v6e/v7x MXU; on v5e a 128-row tile already
    # saturates the 4x128^2 MXU (pass batch_tile=128 there).
    bt = min(batch_tile, _round_up(B, 8))
    Bp = _round_up(B, bt)

    x_flat = x.reshape(B, IN_F).astype(jnp.float32)              # x.view(-1, 784)
    xp = jnp.zeros((Bp, IN_PAD), jnp.float32).at[:B, :IN_F].set(x_flat)
    epsp = jnp.zeros((Bp, latent), jnp.float32).at[:B, :].set(eps)

    grid = (Bp // bt,)

    flops = 2 * Bp * (IN_PAD * HID_PAD + HID_PAD * head_pad
                      + latent * HID_PAD + HID_PAD * IN_PAD)
    transcendentals = Bp * (latent + IN_PAD)                      # exp + sigmoid
    bytes_w = 2 * (IN_PAD * HID_PAD + HID_PAD * head_pad
                   + latent * HID_PAD + HID_PAD * IN_PAD)         # bf16 weights
    bytes_b = 4 * (2 * HID_PAD + head_pad + IN_PAD)
    bytes_act = 4 * Bp * (2 * IN_PAD + latent + head_pad)

    recon_p, head = pl.pallas_call(
        functools.partial(vae_fwd_kernel, latent=latent),
        out_shape=(jax.ShapeDtypeStruct((Bp, IN_PAD), jnp.float32),
                   jax.ShapeDtypeStruct((Bp, head_pad), jnp.float32)),
        grid=grid,
        in_specs=[
            pl.BlockSpec((bt, IN_PAD), lambda i: (i, 0)),         # x (batch-tiled)
            pl.BlockSpec((bt, latent), lambda i: (i, 0)),         # eps
            pl.BlockSpec((IN_PAD, HID_PAD), lambda i: (0, 0)),    # w1 (stationary)
            pl.BlockSpec((1, HID_PAD), lambda i: (0, 0)),         # b1
            pl.BlockSpec((HID_PAD, head_pad), lambda i: (0, 0)),  # w21|w22 fused
            pl.BlockSpec((1, head_pad), lambda i: (0, 0)),        # b21|b22 fused
            pl.BlockSpec((latent, HID_PAD), lambda i: (0, 0)),    # w3
            pl.BlockSpec((1, HID_PAD), lambda i: (0, 0)),         # b3
            pl.BlockSpec((HID_PAD, IN_PAD), lambda i: (0, 0)),    # w4
            pl.BlockSpec((1, IN_PAD), lambda i: (0, 0)),          # b4
        ],
        out_specs=(
            pl.BlockSpec((bt, IN_PAD), lambda i: (i, 0)),         # recon (padded)
            pl.BlockSpec((bt, head_pad), lambda i: (i, 0)),       # mu|logvar head
        ),
        compiler_params=pltpu.CompilerParams(
            dimension_semantics=("parallel",)),
        cost_estimate=pl.CostEstimate(
            flops=flops, transcendentals=transcendentals,
            bytes_accessed=bytes_w + bytes_b + bytes_act),
    )(xp, epsp, prep["w1"], prep["b1"], prep["wh"], prep["bh"],
      prep["w3"], prep["b3"], prep["w4"], prep["b4"])

    # Slice padding off outside the kernel (kernel stores stay lane-dense).
    recon = recon_p[:B, :IN_F]
    mu = head[:B, :latent]
    logvar = head[:B, latent:2 * latent]
    return recon, mu, logvar


def vanila_vae_forward_ref(x, params, eps):
    """Pure-JAX f32 reference (matches the PyTorch module)."""
    B = x.shape[0]
    xf = x.reshape(B, IN_F).astype(jnp.float32)
    lin = lambda h, name: h @ params[name][0].T + params[name][1]
    h1 = jax.nn.relu(lin(xf, "fc1"))
    mu = lin(h1, "fc21")
    logvar = lin(h1, "fc22")
    z = mu + eps * jnp.exp(0.5 * logvar)
    h3 = jax.nn.relu(lin(z, "fc3"))
    return jax.nn.sigmoid(lin(h3, "fc4")), mu, logvar


if __name__ == "__main__":
    key = jax.random.PRNGKey(0)
    k_param, k_x, k_eps = jax.random.split(key, 3)

    nc = 1
    latent_variable_size = 32
    B = 8

    params = init_params(k_param, latent_variable_size)
    prep = prepare_params(params, latent_variable_size)   # one-time prep

    x = jax.random.normal(k_x, (B, nc, 28, 28), jnp.float32)
    # TODO(synk): torch.randn_like in reparameterize is stateful; eps is drawn
    # deterministically in JAX and fed to the kernel instead.
    eps = jax.random.normal(k_eps, (B, latent_variable_size), jnp.float32)

    fwd = jax.jit(vanila_vae_forward)
    recon, mu, logvar = fwd(x, prep, eps)
    jax.block_until_ready((recon, mu, logvar))

    r_ref, mu_ref, lv_ref = vanila_vae_forward_ref(x, params, eps)
    assert recon.shape == (B, IN_F)
    assert mu.shape == (B, latent_variable_size)
    assert logvar.shape == (B, latent_variable_size)
    # bf16 matmul operands -> compare with bf16-level tolerance
    assert jnp.allclose(recon, r_ref, atol=2e-2, rtol=2e-2)
    assert jnp.allclose(mu, mu_ref, atol=2e-2, rtol=2e-2)
    assert jnp.allclose(logvar, lv_ref, atol=2e-2, rtol=2e-2)

    print("KERNEL_OK")
</pallas_src>

<mosaic_0001>
module attributes {stable_mosaic.version = 11 : i64} {
  func.func @vae_fwd_kernel(%arg0: i32, %arg1: memref<8x896xf32, #tpu.memory_space<vmem>>, %arg2: memref<8x32xf32, #tpu.memory_space<vmem>>, %arg3: memref<896x512xbf16, #tpu.memory_space<vmem>>, %arg4: memref<1x512xf32, #tpu.memory_space<vmem>>, %arg5: memref<512x128xbf16, #tpu.memory_space<vmem>>, %arg6: memref<1x128xf32, #tpu.memory_space<vmem>>, %arg7: memref<32x512xbf16, #tpu.memory_space<vmem>>, %arg8: memref<1x512xf32, #tpu.memory_space<vmem>>, %arg9: memref<512x896xbf16, #tpu.memory_space<vmem>>, %arg10: memref<1x896xf32, #tpu.memory_space<vmem>>, %arg11: memref<8x896xf32, #tpu.memory_space<vmem>>, %arg12: memref<8x128xf32, #tpu.memory_space<vmem>>) attributes {dimension_semantics = [#tpu.dimension_semantics<parallel>], iteration_bounds = array<i64: 1>, scalar_prefetch = 0 : i64, scratch_operands = 0 : i64, tpu.core_type = #tpu.core_type<tc>, window_params = [{transform_indices = @transform_0, window_bounds = array<i64: 8, 896>}, {transform_indices = @transform_1, window_bounds = array<i64: 8, 32>}, {pipeline_mode = #tpu.pipeline_mode<synchronous>, transform_indices = @transform_2, window_bounds = array<i64: 896, 512>}, {pipeline_mode = #tpu.pipeline_mode<synchronous>, transform_indices = @transform_3, window_bounds = array<i64: 1, 512>}, {pipeline_mode = #tpu.pipeline_mode<synchronous>, transform_indices = @transform_4, window_bounds = array<i64: 512, 128>}, {pipeline_mode = #tpu.pipeline_mode<synchronous>, transform_indices = @transform_5, window_bounds = array<i64: 1, 128>}, {pipeline_mode = #tpu.pipeline_mode<synchronous>, transform_indices = @transform_6, window_bounds = array<i64: 32, 512>}, {pipeline_mode = #tpu.pipeline_mode<synchronous>, transform_indices = @transform_7, window_bounds = array<i64: 1, 512>}, {pipeline_mode = #tpu.pipeline_mode<synchronous>, transform_indices = @transform_8, window_bounds = array<i64: 512, 896>}, {pipeline_mode = #tpu.pipeline_mode<synchronous>, transform_indices = @transform_9, window_bounds = array<i64: 1, 896>}, {transform_indices = @transform_10, window_bounds = array<i64: 8, 896>}, {transform_indices = @transform_11, window_bounds = array<i64: 8, 128>}]} {
    %c0 = arith.constant 0 : index
    %c0_0 = arith.constant 0 : index
    %0 = vector.load %arg1[%c0, %c0_0] : memref<8x896xf32, #tpu.memory_space<vmem>>, vector<8x896xf32>
    %1 = arith.truncf %0 : vector<8x896xf32> to vector<8x896xbf16>
    %c0_1 = arith.constant 0 : index
    %c0_2 = arith.constant 0 : index
    %2 = vector.load %arg3[%c0_1, %c0_2] : memref<896x512xbf16, #tpu.memory_space<vmem>>, vector<896x512xbf16>
    %cst = arith.constant dense<0.000000e+00> : vector<8x512xf32>
    %3 = tpu.matmul %1, %2, %cst {dimension_numbers = #tpu.dot_dimension_numbers<[1], [0], [0], [1], [0, 0, 1, 1], [], []>} : vector<8x896xbf16>, vector<896x512xbf16>, vector<8x512xf32> -> vector<8x512xf32>
    %c0_3 = arith.constant 0 : index
    %c0_4 = arith.constant 0 : index
    %4 = vector.load %arg4[%c0_3, %c0_4] : memref<1x512xf32, #tpu.memory_space<vmem>>, vector<1x512xf32>
    %5 = vector.broadcast %4 : vector<1x512xf32> to vector<8x512xf32>
    %6 = arith.addf %3, %5 : vector<8x512xf32>
    %cst_5 = arith.constant 0.000000e+00 : f32
    %7 = vector.broadcast %cst_5 : f32 to vector<8x512xf32>
    %8 = arith.maximumf %6, %7 : vector<8x512xf32>
    %9 = arith.truncf %8 : vector<8x512xf32> to vector<8x512xbf16>
    %c0_6 = arith.constant 0 : index
    %c0_7 = arith.constant 0 : index
    %10 = vector.load %arg5[%c0_6, %c0_7] : memref<512x128xbf16, #tpu.memory_space<vmem>>, vector<512x128xbf16>
    %cst_8 = arith.constant dense<0.000000e+00> : vector<8x128xf32>
    %11 = tpu.matmul %9, %10, %cst_8 {dimension_numbers = #tpu.dot_dimension_numbers<[1], [0], [0], [1], [0, 0, 1, 1], [], []>} : vector<8x512xbf16>, vector<512x128xbf16>, vector<8x128xf32> -> vector<8x128xf32>
    %c0_9 = arith.constant 0 : index
    %c0_10 = arith.constant 0 : index
    %12 = vector.load %arg6[%c0_9, %c0_10] : memref<1x128xf32, #tpu.memory_space<vmem>>, vector<1x128xf32>
    %13 = vector.broadcast %12 : vector<1x128xf32> to vector<8x128xf32>
    %14 = arith.addf %11, %13 : vector<8x128xf32>
    %c0_11 = arith.constant 0 : index
    %c0_12 = arith.constant 0 : index
    %15 = vector.load %arg12[%c0_11, %c0_12] : memref<8x128xf32, #tpu.memory_space<vmem>>, vector<8x128xf32>
    tpu.vector_store %arg12[%c0_11, %c0_12], %14 {strides = array<i32>} : memref<8x128xf32, #tpu.memory_space<vmem>>, vector<8x128xf32>,
    %16 = vector.extract_strided_slice %14 {offsets = [0, 0], sizes = [8, 32], strides = [1, 1]} : vector<8x128xf32> to vector<8x32xf32>
    %17 = vector.extract_strided_slice %14 {offsets = [0, 32], sizes = [8, 32], strides = [1, 1]} : vector<8x128xf32> to vector<8x32xf32>
    %c0_13 = arith.constant 0 : index
    %c0_14 = arith.constant 0 : index
    %18 = vector.load %arg2[%c0_13, %c0_14] : memref<8x32xf32, #tpu.memory_space<vmem>>, vector<8x32xf32>
    %cst_15 = arith.constant 5.000000e-01 : f32
    %19 = vector.broadcast %cst_15 : f32 to vector<8x32xf32>
    %20 = arith.mulf %19, %17 : vector<8x32xf32>
    %21 = math.exp %20 : vector<8x32xf32>
    %22 = arith.mulf %18, %21 : vector<8x32xf32>
    %23 = arith.addf %16, %22 : vector<8x32xf32>
    %24 = arith.truncf %23 : vector<8x32xf32> to vector<8x32xbf16>
    %c0_16 = arith.constant 0 : index
    %c0_17 = arith.constant 0 : index
    %25 = vector.load %arg7[%c0_16, %c0_17] : memref<32x512xbf16, #tpu.memory_space<vmem>>, vector<32x512xbf16>
    %cst_18 = arith.constant dense<0.000000e+00> : vector<8x512xf32>
    %26 = tpu.matmul %24, %25, %cst_18 {dimension_numbers = #tpu.dot_dimension_numbers<[1], [0], [0], [1], [0, 0, 1, 1], [], []>} : vector<8x32xbf16>, vector<32x512xbf16>, vector<8x512xf32> -> vector<8x512xf32>
    %c0_19 = arith.constant 0 : index
    %c0_20 = arith.constant 0 : index
    %27 = vector.load %arg8[%c0_19, %c0_20] : memref<1x512xf32, #tpu.memory_space<vmem>>, vector<1x512xf32>
    %28 = vector.broadcast %27 : vector<1x512xf32> to vector<8x512xf32>
    %29 = arith.addf %26, %28 : vector<8x512xf32>
    %cst_21 = arith.constant 0.000000e+00 : f32
    %30 = vector.broadcast %cst_21 : f32 to vector<8x512xf32>
    %31 = arith.maximumf %29, %30 : vector<8x512xf32>
    %32 = arith.truncf %31 : vector<8x512xf32> to vector<8x512xbf16>
    %c0_22 = arith.constant 0 : index
    %c0_23 = arith.constant 0 : index
    %33 = vector.load %arg9[%c0_22, %c0_23] : memref<512x896xbf16, #tpu.memory_space<vmem>>, vector<512x896xbf16>
    %cst_24 = arith.constant dense<0.000000e+00> : vector<8x896xf32>
    %34 = tpu.matmul %32, %33, %cst_24 {dimension_numbers = #tpu.dot_dimension_numbers<[1], [0], [0], [1], [0, 0, 1, 1], [], []>} : vector<8x512xbf16>, vector<512x896xbf16>, vector<8x896xf32> -> vector<8x896xf32>
    %c0_25 = arith.constant 0 : index
    %c0_26 = arith.constant 0 : index
    %35 = vector.load %arg10[%c0_25, %c0_26] : memref<1x896xf32, #tpu.memory_space<vmem>>, vector<1x896xf32>
    %36 = vector.broadcast %35 : vector<1x896xf32> to vector<8x896xf32>
    %37 = arith.addf %34, %36 : vector<8x896xf32>
    %38 = arith.negf %37 : vector<8x896xf32>
    %39 = math.exp %38 : vector<8x896xf32>
    %cst_27 = arith.constant 1.000000e+00 : f32
    %40 = vector.broadcast %cst_27 : f32 to vector<8x896xf32>
    %41 = arith.addf %40, %39 : vector<8x896xf32>
    %42 = arith.divf %40, %41 : vector<8x896xf32>
    %c0_28 = arith.constant 0 : index
    %c0_29 = arith.constant 0 : index
    %43 = vector.load %arg11[%c0_28, %c0_29] : memref<8x896xf32, #tpu.memory_space<vmem>>, vector<8x896xf32>
    tpu.vector_store %arg11[%c0_28, %c0_29], %42 {strides = array<i32>} : memref<8x896xf32, #tpu.memory_space<vmem>>, vector<8x896xf32>,
    return
  }
  func.func @transform_0(%arg0: i32) -> (i32, i32) {
    %c0_i32 = arith.constant 0 : i32
    %c0_i32_0 = arith.constant 0 : i32
    return %arg0, %c0_i32 : i32, i32
  }
  func.func @transform_1(%arg0: i32) -> (i32, i32) {
    %c0_i32 = arith.constant 0 : i32
    %c0_i32_0 = arith.constant 0 : i32
    return %arg0, %c0_i32 : i32, i32
  }
  func.func @transform_2(%arg0: i32) -> (i32, i32) {
    %c0_i32 = arith.constant 0 : i32
    %c0_i32_0 = arith.constant 0 : i32
    %c0_i32_1 = arith.constant 0 : i32
    return %c0_i32, %c0_i32_0 : i32, i32
  }
  func.func @transform_3(%arg0: i32) -> (i32, i32) {
    %c0_i32 = arith.constant 0 : i32
    %c0_i32_0 = arith.constant 0 : i32
    %c0_i32_1 = arith.constant 0 : i32
    return %c0_i32, %c0_i32_0 : i32, i32
  }
  func.func @transform_4(%arg0: i32) -> (i32, i32) {
    %c0_i32 = arith.constant 0 : i32
    %c0_i32_0 = arith.constant 0 : i32
    %c0_i32_1 = arith.constant 0 : i32
    return %c0_i32, %c0_i32_0 : i32, i32
  }
  func.func @transform_5(%arg0: i32) -> (i32, i32) {
    %c0_i32 = arith.constant 0 : i32
    %c0_i32_0 = arith.constant 0 : i32
    %c0_i32_1 = arith.constant 0 : i32
    return %c0_i32, %c0_i32_0 : i32, i32
  }
  func.func @transform_6(%arg0: i32) -> (i32, i32) {
    %c0_i32 = arith.constant 0 : i32
    %c0_i32_0 = arith.constant 0 : i32
    %c0_i32_1 = arith.constant 0 : i32
    return %c0_i32, %c0_i32_0 : i32, i32
  }
  func.func @transform_7(%arg0: i32) -> (i32, i32) {
    %c0_i32 = arith.constant 0 : i32
    %c0_i32_0 = arith.constant 0 : i32
    %c0_i32_1 = arith.constant 0 : i32
    return %c0_i32, %c0_i32_0 : i32, i32
  }
  func.func @transform_8(%arg0: i32) -> (i32, i32) {
    %c0_i32 = arith.constant 0 : i32
    %c0_i32_0 = arith.constant 0 : i32
    %c0_i32_1 = arith.constant 0 : i32
    return %c0_i32, %c0_i32_0 : i32, i32
  }
  func.func @transform_9(%arg0: i32) -> (i32, i32) {
    %c0_i32 = arith.constant 0 : i32
    %c0_i32_0 = arith.constant 0 : i32
    %c0_i32_1 = arith.constant 0 : i32
    return %c0_i32, %c0_i32_0 : i32, i32
  }
  func.func @transform_10(%arg0: i32) -> (i32, i32) {
    %c0_i32 = arith.constant 0 : i32
    %c0_i32_0 = arith.constant 0 : i32
    return %arg0, %c0_i32 : i32, i32
  }
  func.func @transform_11(%arg0: i32) -> (i32, i32) {
    %c0_i32 = arith.constant 0 : i32
    %c0_i32_0 = arith.constant 0 : i32
    return %arg0, %c0_i32 : i32, i32
  }
}

</mosaic_0001>

<llo_original>
// kernel: vanila_vae_forward.1
$region0: #{vanila_vae_forward.1}
  #allocation0 [shape = 'u32[]', space=smem, size = 0x4, offset = 0x4, fixed_abs, tag = 'smem constant byte address 0x4 - core index']
  #allocation1 [shape = 'u32[144,128]{1,0:T(1,128)}', space=vmem, size = 0x12000, scoped, tag = 'internal scratch']
  %s0 = inlined_call_operand.vmem [shape: f32[8,896], index: 0, kind: input, shape index: {}]
  %s1 = inlined_call_operand.vmem [shape: f32[8,32], index: 1, kind: input, shape index: {}]
  %s2 = inlined_call_operand.hbm [shape: bf16[896,512], index: 2, kind: input, shape index: {}]
  %s3 = inlined_call_operand.vmem [shape: f32[1,512], index: 3, kind: input, shape index: {}]
  %s4 = inlined_call_operand.vmem [shape: bf16[512,128], index: 4, kind: input, shape index: {}]
  %s5 = inlined_call_operand.vmem [shape: f32[1,128], index: 5, kind: input, shape index: {}]
  %s6 = inlined_call_operand.vmem [shape: bf16[32,512], index: 6, kind: input, shape index: {}]
  %s7 = inlined_call_operand.vmem [shape: f32[1,512], index: 7, kind: input, shape index: {}]
  %s8 = inlined_call_operand.hbm [shape: bf16[512,896], index: 8, kind: input, shape index: {}]
  %s9 = inlined_call_operand.vmem [shape: f32[1,896], index: 9, kind: input, shape index: {}]
  %s10 = inlined_call_operand.hbm [shape: f32[8,896], index: 10, kind: output, shape index: {0}]
  %s11 = inlined_call_operand.vmem [shape: f32[8,128], index: 11, kind: output, shape index: {1}]
  %12 = xla_tuple %s10, %s11
  %s13 = sld [smem:[#allocation0]]
  $region66: #{vanila_vae_forward.1} parent=0
    _
  %s15 = ssub.s32 1, %s13
  %s16 = scalar_select 0, %s15, %s13
  $region1: #{vanila_vae_forward.1} parent=0
    #allocation2 [shape = 'u8[917504]{0}', space=vmem, size = 0xe0000, scoped, tag = 'input window, operand 2, single buffered']
    #allocation3 [shape = 's32[1]{0}', space=sflag, size = 0x4, scoped, tag = 'scoped memory for vanila_vae_forward.1']
    #allocation4 [shape = 's32[1]{0}', space=sflag, size = 0x4, scoped, tag = 'scoped memory for vanila_vae_forward.1']
    #allocation5 [shape = 'u8[917504]{0}', space=vmem, size = 0xe0000, scoped, tag = 'input window, operand 8, single buffered']
    #allocation6 [shape = 's32[1]{0}', space=sflag, size = 0x4, scoped, tag = 'scoped memory for vanila_vae_forward.1']
    #allocation7 [shape = 'u8[28672]{0}', space=vmem, size = 0x7000, scoped, tag = 'output window, operand 0, single buffered']
    %17 = vsyncpa [#allocation3], 0
    %18 = vsyncpa [#allocation6], 0
    %19 = vsyncpa [#allocation4], 0
    // Predicated region
    $region2: #{vanila_vae_forward.1} parent=1 // pred_check
      _
    $region3: #{vanila_vae_forward.1} parent=1 // pred_check_branch
      %21 = sbr.rel (0) target = $region5
    $region4: #{vanila_vae_forward.1} parent=1 // pred_region
      _
    $region5: #{vanila_vae_forward.1} parent=1 // pred_fallthru
      _
    // Predicated region
    $region6: #{vanila_vae_forward.1} parent=1 // pred_check
      _
    $region7: #{vanila_vae_forward.1} parent=1 // pred_check_branch
      %23 = sbr.rel (0) target = $region9
    $region8: #{vanila_vae_forward.1} parent=1 // pred_region
      _
    $region9: #{vanila_vae_forward.1} parent=1 // pred_fallthru
      _
    // Predicated region
    $region10: #{vanila_vae_forward.1} parent=1 // pred_check
      _
    $region11: #{vanila_vae_forward.1} parent=1 // pred_check_branch
      %25 = sbr.rel (0) target = $region13
    $region12: #{vanila_vae_forward.1} parent=1 // pred_region
      %s27 = ssub.s32 28672, 28672
      %28 = vsyncadd [#allocation3], %s27
      %s29 = sshll.u32 [#allocation2], 4
      %s30 = int_to_ptr.vmem [resolvable:$true] %s29
      %35 = dma.hbm_to_vmem [thread:$0]  %s2, 28672, %s30, [#allocation3], 256, 256, 16
    $region13: #{vanila_vae_forward.1} parent=1 // pred_fallthru
      _
    // Predicated region
    $region14: #{vanila_vae_forward.1} parent=1 // pred_check
      _
    $region15: #{vanila_vae_forward.1} parent=1 // pred_check_branch
      %37 = sbr.rel (0) target = $region17
    $region16: #{vanila_vae_forward.1} parent=1 // pred_region
      _
    $region17: #{vanila_vae_forward.1} parent=1 // pred_fallthru
      _
    // Predicated region
    $region18: #{vanila_vae_forward.1} parent=1 // pred_check
      _
    $region19: #{vanila_vae_forward.1} parent=1 // pred_check_branch
      %39 = sbr.rel (0) target = $region21
    $region20: #{vanila_vae_forward.1} parent=1 // pred_region
      _
    $region21: #{vanila_vae_forward.1} parent=1 // pred_fallthru
      _
    // Predicated region
    $region22: #{vanila_vae_forward.1} parent=1 // pred_check
      _
    $region23: #{vanila_vae_forward.1} parent=1 // pred_check_branch
      %41 = sbr.rel (0) target = $region25
    $region24: #{vanila_vae_forward.1} parent=1 // pred_region
      _
    $region25: #{vanila_vae_forward.1} parent=1 // pred_fallthru
      _
    // Predicated region
    $region26: #{vanila_vae_forward.1} parent=1 // pred_check
      _
    $region27: #{vanila_vae_forward.1} parent=1 // pred_check_branch
      %43 = sbr.rel (0) target = $region29
    $region28: #{vanila_vae_forward.1} parent=1 // pred_region
      _
    $region29: #{vanila_vae_forward.1} parent=1 // pred_fallthru
      _
    // Predicated region
    $region30: #{vanila_vae_forward.1} parent=1 // pred_check
      _
    $region31: #{vanila_vae_forward.1} parent=1 // pred_check_branch
      %45 = sbr.rel (0) target = $region33
    $region32: #{vanila_vae_forward.1} parent=1 // pred_region
      _
    $region33: #{vanila_vae_forward.1} parent=1 // pred_fallthru
      _
    // Predicated region
    $region34: #{vanila_vae_forward.1} parent=1 // pred_check
      _
    $region35: #{vanila_vae_forward.1} parent=1 // pred_check_branch
      %47 = sbr.rel (0) target = $region37
    $region36: #{vanila_vae_forward.1} parent=1 // pred_region
      %s49 = ssub.s32 28672, 28672
      %50 = vsyncadd [#allocation6], %s49
      %s51 = sshll.u32 [#allocation5], 4
      %s52 = int_to_ptr.vmem [resolvable:$true] %s51
      %57 = dma.hbm_to_vmem [thread:$0]  %s8, 28672, %s52, [#allocation6], 448, 448, 28
    $region37: #{vanila_vae_forward.1} parent=1 // pred_fallthru
      _
    // Predicated region
    $region38: #{vanila_vae_forward.1} parent=1 // pred_check
      _
    $region39: #{vanila_vae_forward.1} parent=1 // pred_check_branch
      %59 = sbr.rel (0) target = $region41
    $region40: #{vanila_vae_forward.1} parent=1 // pred_region
      _
    $region41: #{vanila_vae_forward.1} parent=1 // pred_fallthru
      _
    // Predicated region
    $region42: #{vanila_vae_forward.1} parent=1 // pred_check
      _
    $region43: #{vanila_vae_forward.1} parent=1 // pred_check_branch
      %61 = sbr.rel (0) target = $region45
    $region44: #{vanila_vae_forward.1} parent=1 // pred_region
      %62 = dma.done [#allocation3], 28672
    $region45: #{vanila_vae_forward.1} parent=1 // pred_fallthru
      _
    // Predicated region
    $region46: #{vanila_vae_forward.1} parent=1 // pred_check
      _
    $region47: #{vanila_vae_forward.1} parent=1 // pred_check_branch
      %64 = sbr.rel (0) target = $region49
    $region48: #{vanila_vae_forward.1} parent=1 // pred_region
      %65 = dma.done [#allocation6], 28672
    $region49: #{vanila_vae_forward.1} parent=1 // pred_fallthru
      _
    %v67 = vld [vmem:[%s0] sm:$0xff]
    %v68 = vld [vmem:[%s0 + $0x8] sm:$0xff]
    %v69 = vld [vmem:[%s0 + $0x10] sm:$0xff]
    %v70 = vld [vmem:[%s0 + $0x18] sm:$0xff]
    %v71 = vld [vmem:[%s0 + $0x20] sm:$0xff]
    %v72 = vld [vmem:[%s0 + $0x28] sm:$0xff]
    %v73 = vld [vmem:[%s0 + $0x30] sm:$0xff]
    %v74 = vpack.c.bf16 %v67, %v67
    %v75 = vpack.c.bf16 %v68, %v68
    %v76 = vpack.c.bf16 %v69, %v69
    %v77 = vpack.c.bf16 %v70, %v70
    %v78 = vpack.c.bf16 %v71, %v71
    %v79 = vpack.c.bf16 %v72, %v72
    %v80 = vpack.c.bf16 %v73, %v73
    %v81 = vld [vmem:[#allocation2] sm:$0xff]
    %v82 = vld [vmem:[#allocation2 + $0x8] sm:$0xff]
    %v83 = vld [vmem:[#allocation2 + $0x10] sm:$0xff]
    %v84 = vld [vmem:[#allocation2 + $0x18] sm:$0xff]
    %v85 = vld [vmem:[#allocation2 + $0x20] sm:$0xff]
    %v86 = vld [vmem:[#allocation2 + $0x28] sm:$0xff]
    %v87 = vld [vmem:[#allocation2 + $0x30] sm:$0xff]
    %v88 = vld [vmem:[#allocation2 + $0x38] sm:$0xff]
    %v89 = vld [vmem:[#allocation2 + $0x40] sm:$0xff]
    %v90 = vld [vmem:[#allocation2 + $0x48] sm:$0xff]
    %v91 = vld [vmem:[#allocation2 + $0x50] sm:$0xff]
    %v92 = vld [vmem:[#allocation2 + $0x58] sm:$0xff]
    %v93 = vld [vmem:[#allocation2 + $0x60] sm:$0xff]
    %v94 = vld [vmem:[#allocation2 + $0x68] sm:$0xff]
    %v95 = vld [vmem:[#allocation2 + $0x70] sm:$0xff]
    %v96 = vld [vmem:[#allocation2 + $0x78] sm:$0xff]
    %v97 = vld [vmem:[#allocation2 + $0x80] sm:$0xff]
    %v98 = vld [vmem:[#allocation2 + $0x88] sm:$0xff]
    %v99 = vld [vmem:[#allocation2 + $0x90] sm:$0xff]
    %v100 = vld [vmem:[#allocation2 + $0x98] sm:$0xff]
    %v101 = vld [vmem:[#allocation2 + $0xa0] sm:$0xff]
    %v102 = vld [vmem:[#allocation2 + $0xa8] sm:$0xff]
    %v103 = vld [vmem:[#allocation2 + $0xb0] sm:$0xff]
    %v104 = vld [vmem:[#allocation2 + $0xb8] sm:$0xff]
    %v105 = vld [vmem:[#allocation2 + $0xc0] sm:$0xff]
    %v106 = vld [vmem:[#allocation2 + $0xc8] sm:$0xff]
    %v107 = vld [vmem:[#allocation2 + $0xd0] sm:$0xff]
    %v108 = vld [vmem:[#allocation2 + $0xd8] sm:$0xff]
    %v109 = vld [vmem:[#allocation2 + $0xe0] sm:$0xff]
    %v110 = vld [vmem:[#allocation2 + $0xe8] sm:$0xff]
    %v111 = vld [vmem:[#allocation2 + $0xf0] sm:$0xff]
    %v112 = vld [vmem:[#allocation2 + $0xf8] sm:$0xff]
    %v113 = vld [vmem:[#allocation2 + $0x100] sm:$0xff]
    %v114 = vld [vmem:[#allocation2 + $0x108] sm:$0xff]
    %v115 = vld [vmem:[#allocation2 + $0x110] sm:$0xff]
    %v116 = vld [vmem:[#allocation2 + $0x118] sm:$0xff]
    %v117 = vld [vmem:[#allocation2 + $0x120] sm:$0xff]
    %v118 = vld [vmem:[#allocation2 + $0x128] sm:$0xff]
    %v119 = vld [vmem:[#allocation2 + $0x130] sm:$0xff]
    %v120 = vld [vmem:[#allocation2 + $0x138] sm:$0xff]
    %v121 = vld [vmem:[#allocation2 + $0x140] sm:$0xff]
    %v122 = vld [vmem:[#allocation2 + $0x148] sm:$0xff]
    %v123 = vld [vmem:[#allocation2 + $0x150] sm:$0xff]
    %v124 = vld [vmem:[#allocation2 + $0x158] sm:$0xff]
    %v125 = vld [vmem:[#allocation2 + $0x160] sm:$0xff]
    %v126 = vld [vmem:[#allocation2 + $0x168] sm:$0xff]
    %v127 = vld [vmem:[#allocation2 + $0x170] sm:$0xff]
    %v128 = vld [vmem:[#allocation2 + $0x178] sm:$0xff]
    %v129 = vld [vmem:[#allocation2 + $0x180] sm:$0xff]
    %v130 = vld [vmem:[#allocation2 + $0x188] sm:$0xff]
    %v131 = vld [vmem:[#allocation2 + $0x190] sm:$0xff]
    %v132 = vld [vmem:[#allocation2 + $0x198] sm:$0xff]
    %v133 = vld [vmem:[#allocation2 + $0x1a0] sm:$0xff]
    %v134 = vld [vmem:[#allocation2 + $0x1a8] sm:$0xff]
    %v135 = vld [vmem:[#allocation2 + $0x1b0] sm:$0xff]
    %v136 = vld [vmem:[#allocation2 + $0x1b8] sm:$0xff]
    %v137 = vld [vmem:[#allocation2 + $0x1c0] sm:$0xff]
    %v138 = vld [vmem:[#allocation2 + $0x1c8] sm:$0xff]
    %v139 = vld [vmem:[#allocation2 + $0x1d0] sm:$0xff]
    %v140 = vld [vmem:[#allocation2 + $0x1d8] sm:$0xff]
    %v141 = vld [vmem:[#allocation2 + $0x1e0] sm:$0xff]
    %v142 = vld [vmem:[#allocation2 + $0x1e8] sm:$0xff]
    %v143 = vld [vmem:[#allocation2 + $0x1f0] sm:$0xff]
    %v144 = vld [vmem:[#allocation2 + $0x1f8] sm:$0xff]
    %v145 = vld [vmem:[#allocation2 + $0x200] sm:$0xff]
    %v146 = vld [vmem:[#allocation2 + $0x208] sm:$0xff]
    %v147 = vld [vmem:[#allocation2 + $0x210] sm:$0xff]
    %v148 = vld [vmem:[#allocation2 + $0x218] sm:$0xff]
    %v149 = vld [vmem:[#allocation2 + $0x220] sm:$0xff]
    %v150 = vld [vmem:[#allocation2 + $0x228] sm:$0xff]
    %v151 = vld [vmem:[#allocation2 + $0x230] sm:$0xff]
    %v152 = vld [vmem:[#allocation2 + $0x238] sm:$0xff]
    %v153 = vld [vmem:[#allocation2 + $0x240] sm:$0xff]
    %v154 = vld [vmem:[#allocation2 + $0x248] sm:$0xff]
    %v155 = vld [vmem:[#allocation2 + $0x250] sm:$0xff]
    %v156 = vld [vmem:[#allocation2 + $0x258] sm:$0xff]
    %v157 = vld [vmem:[#allocation2 + $0x260] sm:$0xff]
    %v158 = vld [vmem:[#allocation2 + $0x268] sm:$0xff]
    %v159 = vld [vmem:[#allocation2 + $0x270] sm:$0xff]
    %v160 = vld [vmem:[#allocation2 + $0x278] sm:$0xff]
    %v161 = vld [vmem:[#allocation2 + $0x280] sm:$0xff]
    %v162 = vld [vmem:[#allocation2 + $0x288] sm:$0xff]
    %v163 = vld [vmem:[#allocation2 + $0x290] sm:$0xff]
    %v164 = vld [vmem:[#allocation2 + $0x298] sm:$0xff]
    %v165 = vld [vmem:[#allocation2 + $0x2a0] sm:$0xff]
    %v166 = vld [vmem:[#allocation2 + $0x2a8] sm:$0xff]
    %v167 = vld [vmem:[#allocation2 + $0x2b0] sm:$0xff]
    %v168 = vld [vmem:[#allocation2 + $0x2b8] sm:$0xff]
    %v169 = vld [vmem:[#allocation2 + $0x2c0] sm:$0xff]
    %v170 = vld [vmem:[#allocation2 + $0x2c8] sm:$0xff]
    %v171 = vld [vmem:[#allocation2 + $0x2d0] sm:$0xff]
    %v172 = vld [vmem:[#allocation2 + $0x2d8] sm:$0xff]
    %v173 = vld [vmem:[#allocation2 + $0x2e0] sm:$0xff]
    %v174 = vld [vmem:[#allocation2 + $0x2e8] sm:$0xff]
    %v175 = vld [vmem:[#allocation2 + $0x2f0] sm:$0xff]
    %v176 = vld [vmem:[#allocation2 + $0x2f8] sm:$0xff]
    %v177 = vld [vmem:[#allocation2 + $0x300] sm:$0xff]
    %v178 = vld [vmem:[#allocation2 + $0x308] sm:$0xff]
    %v179 = vld [vmem:[#allocation2 + $0x310] sm:$0xff]
    %v180 = vld [vmem:[#allocation2 + $0x318] sm:$0xff]
    %v181 = vld [vmem:[#allocation2 + $0x320] sm:$0xff]
    %v182 = vld [vmem:[#allocation2 + $0x328] sm:$0xff]
    %v183 = vld [vmem:[#allocation2 + $0x330] sm:$0xff]
    %v184 = vld [vmem:[#allocation2 + $0x338] sm:$0xff]
    %v185 = vld [vmem:[#allocation2 + $0x340] sm:$0xff]
    %v186 = vld [vmem:[#allocation2 + $0x348] sm:$0xff]
    %v187 = vld [vmem:[#allocation2 + $0x350] sm:$0xff]
    %v188 = vld [vmem:[#allocation2 + $0x358] sm:$0xff]
    %v189 = vld [vmem:[#allocation2 + $0x360] sm:$0xff]
    %v190 = vld [vmem:[#allocation2 + $0x368] sm:$0xff]
    %v191 = vld [vmem:[#allocation2 + $0x370] sm:$0xff]
    %v192 = vld [vmem:[#allocation2 + $0x378] sm:$0xff]
    %v193 = vld [vmem:[#allocation2 + $0x380] sm:$0xff]
    %v194 = vld [vmem:[#allocation2 + $0x388] sm:$0xff]
    %v195 = vld [vmem:[#allocation2 + $0x390] sm:$0xff]
    %v196 = vld [vmem:[#allocation2 + $0x398] sm:$0xff]
    %v197 = vld [vmem:[#allocation2 + $0x3a0] sm:$0xff]
    %v198 = vld [vmem:[#allocation2 + $0x3a8] sm:$0xff]
    %v199 = vld [vmem:[#allocation2 + $0x3b0] sm:$0xff]
    %v200 = vld [vmem:[#allocation2 + $0x3b8] sm:$0xff]
    %v201 = vld [vmem:[#allocation2 + $0x3c0] sm:$0xff]
    %v202 = vld [vmem:[#allocation2 + $0x3c8] sm:$0xff]
    %v203 = vld [vmem:[#allocation2 + $0x3d0] sm:$0xff]
    %v204 = vld [vmem:[#allocation2 + $0x3d8] sm:$0xff]
    %v205 = vld [vmem:[#allocation2 + $0x3e0] sm:$0xff]
    %v206 = vld [vmem:[#allocation2 + $0x3e8] sm:$0xff]
    %v207 = vld [vmem:[#allocation2 + $0x3f0] sm:$0xff]
    %v208 = vld [vmem:[#allocation2 + $0x3f8] sm:$0xff]
    %v209 = vld [vmem:[#allocation2 + $0x400] sm:$0xff]
    %v210 = vld [vmem:[#allocation2 + $0x408] sm:$0xff]
    %v211 = vld [vmem:[#allocation2 + $0x410] sm:$0xff]
    %v212 = vld [vmem:[#allocation2 + $0x418] sm:$0xff]
    %v213 = vld [vmem:[#allocation2 + $0x420] sm:$0xff]
    %v214 = vld [vmem:[#allocation2 + $0x428] sm:$0xff]
    %v215 = vld [vmem:[#allocation2 + $0x430] sm:$0xff]
    %v216 = vld [vmem:[#allocation2 + $0x438] sm:$0xff]
    %v217 = vld [vmem:[#allocation2 + $0x440] sm:$0xff]
    %v218 = vld [vmem:[#allocation2 + $0x448] sm:$0xff]
    %v219 = vld [vmem:[#allocation2 + $0x450] sm:$0xff]
    %v220 = vld [vmem:[#allocation2 + $0x458] sm:$0xff]
    %v221 = vld [vmem:[#allocation2 + $0x460] sm:$0xff]
    %v222 = vld [vmem:[#allocation2 + $0x468] sm:$0xff]
    %v223 = vld [vmem:[#allocation2 + $0x470] sm:$0xff]
    %v224 = vld [vmem:[#allocation2 + $0x478] sm:$0xff]
    %v225 = vld [vmem:[#allocation2 + $0x480] sm:$0xff]
    %v226 = vld [vmem:[#allocation2 + $0x488] sm:$0xff]
    %v227 = vld [vmem:[#allocation2 + $0x490] sm:$0xff]
    %v228 = vld [vmem:[#allocation2 + $0x498] sm:$0xff]
    %v229 = vld [vmem:[#allocation2 + $0x4a0] sm:$0xff]
    %v230 = vld [vmem:[#allocation2 + $0x4a8] sm:$0xff]
    %v231 = vld [vmem:[#allocation2 + $0x4b0] sm:$0xff]
    %v232 = vld [vmem:[#allocation2 + $0x4b8] sm:$0xff]
    %v233 = vld [vmem:[#allocation2 + $0x4c0] sm:$0xff]
    %v234 = vld [vmem:[#allocation2 + $0x4c8] sm:$0xff]
    %v235 = vld [vmem:[#allocation2 + $0x4d0] sm:$0xff]
    %v236 = vld [vmem:[#allocation2 + $0x4d8] sm:$0xff]
    %v237 = vld [vmem:[#allocation2 + $0x4e0] sm:$0xff]
    %v238 = vld [vmem:[#allocation2 + $0x4e8] sm:$0xff]
    %v239 = vld [vmem:[#allocation2 + $0x4f0] sm:$0xff]
    %v240 = vld [vmem:[#allocation2 + $0x4f8] sm:$0xff]
    %v241 = vld [vmem:[#allocation2 + $0x500] sm:$0xff]
    %v242 = vld [vmem:[#allocation2 + $0x508] sm:$0xff]
    %v243 = vld [vmem:[#allocation2 + $0x510] sm:$0xff]
    %v244 = vld [vmem:[#allocation2 + $0x518] sm:$0xff]
    %v245 = vld [vmem:[#allocation2 + $0x520] sm:$0xff]
    %v246 = vld [vmem:[#allocation2 + $0x528] sm:$0xff]
    %v247 = vld [vmem:[#allocation2 + $0x530] sm:$0xff]
    %v248 = vld [vmem:[#allocation2 + $0x538] sm:$0xff]
    %v249 = vld [vmem:[#allocation2 + $0x540] sm:$0xff]
    %v250 = vld [vmem:[#allocation2 + $0x548] sm:$0xff]
    %v251 = vld [vmem:[#allocation2 + $0x550] sm:$0xff]
    %v252 = vld [vmem:[#allocation2 + $0x558] sm:$0xff]
    %v253 = vld [vmem:[#allocation2 + $0x560] sm:$0xff]
    %v254 = vld [vmem:[#allocation2 + $0x568] sm:$0xff]
    %v255 = vld [vmem:[#allocation2 + $0x570] sm:$0xff]
    %v256 = vld [vmem:[#allocation2 + $0x578] sm:$0xff]
    %v257 = vld [vmem:[#allocation2 + $0x580] sm:$0xff]
    %v258 = vld [vmem:[#allocation2 + $0x588] sm:$0xff]
    %v259 = vld [vmem:[#allocation2 + $0x590] sm:$0xff]
    %v260 = vld [vmem:[#allocation2 + $0x598] sm:$0xff]
    %v261 = vld [vmem:[#allocation2 + $0x5a0] sm:$0xff]
    %v262 = vld [vmem:[#allocation2 + $0x5a8] sm:$0xff]
    %v263 = vld [vmem:[#allocation2 + $0x5b0] sm:$0xff]
    %v264 = vld [vmem:[#allocation2 + $0x5b8] sm:$0xff]
    %v265 = vld [vmem:[#allocation2 + $0x5c0] sm:$0xff]
    %v266 = vld [vmem:[#allocation2 + $0x5c8] sm:$0xff]
    %v267 = vld [vmem:[#allocation2 + $0x5d0] sm:$0xff]
    %v268 = vld [vmem:[#allocation2 + $0x5d8] sm:$0xff]
    %v269 = vld [vmem:[#allocation2 + $0x5e0] sm:$0xff]
    %v270 = vld [vmem:[#allocation2 + $0x5e8] sm:$0xff]
    %v271 = vld [vmem:[#allocation2 + $0x5f0] sm:$0xff]
    %v272 = vld [vmem:[#allocation2 + $0x5f8] sm:$0xff]
    %v273 = vld [vmem:[#allocation2 + $0x600] sm:$0xff]
    %v274 = vld [vmem:[#allocation2 + $0x608] sm:$0xff]
    %v275 = vld [vmem:[#allocation2 + $0x610] sm:$0xff]
    %v276 = vld [vmem:[#allocation2 + $0x618] sm:$0xff]
    %v277 = vld [vmem:[#allocation2 + $0x620] sm:$0xff]
    %v278 = vld [vmem:[#allocation2 + $0x628] sm:$0xff]
    %v279 = vld [vmem:[#allocation2 + $0x630] sm:$0xff]
    %v280 = vld [vmem:[#allocation2 + $0x638] sm:$0xff]
    %v281 = vld [vmem:[#allocation2 + $0x640] sm:$0xff]
    %v282 = vld [vmem:[#allocation2 + $0x648] sm:$0xff]
    %v283 = vld [vmem:[#allocation2 + $0x650] sm:$0xff]
    %v284 = vld [vmem:[#allocation2 + $0x658] sm:$0xff]
    %v285 = vld [vmem:[#allocation2 + $0x660] sm:$0xff]
    %v286 = vld [vmem:[#allocation2 + $0x668] sm:$0xff]
    %v287 = vld [vmem:[#allocation2 + $0x670] sm:$0xff]
    %v288 = vld [vmem:[#allocation2 + $0x678] sm:$0xff]
    %v289 = vld [vmem:[#allocation2 + $0x680] sm:$0xff]
    %v290 = vld [vmem:[#allocation2 + $0x688] sm:$0xff]
    %v291 = vld [vmem:[#allocation2 + $0x690] sm:$0xff]
    %v292 = vld [vmem:[#allocation2 + $0x698] sm:$0xff]
    %v293 = vld [vmem:[#allocation2 + $0x6a0] sm:$0xff]
    %v294 = vld [vmem:[#allocation2 + $0x6a8] sm:$0xff]
    %v295 = vld [vmem:[#allocation2 + $0x6b0] sm:$0xff]
    %v296 = vld [vmem:[#allocation2 + $0x6b8] sm:$0xff]
    %v297 = vld [vmem:[#allocation2 + $0x6c0] sm:$0xff]
    %v298 = vld [vmem:[#allocation2 + $0x6c8] sm:$0xff]
    %v299 = vld [vmem:[#allocation2 + $0x6d0] sm:$0xff]
    %v300 = vld [vmem:[#allocation2 + $0x6d8] sm:$0xff]
    %v301 = vld [vmem:[#allocation2 + $0x6e0] sm:$0xff]
    %v302 = vld [vmem:[#allocation2 + $0x6e8] sm:$0xff]
    %v303 = vld [vmem:[#allocation2 + $0x6f0] sm:$0xff]
    %v304 = vld [vmem:[#allocation2 + $0x6f8] sm:$0xff]
    %v305 = vld [vmem:[%s3] sm:$0xf]
    %v307 = vlaneseq
    %v308 = vshrl.u32 %v307, 7
    %v309 = vsub.s32 0, %v308
    %v310 = vrot.slane %v305, %v309
    %v311 = vlaneseq
    %v312 = vshrl.u32 %v311, 7
    %v313 = vsub.s32 1, %v312
    %v314 = vrot.slane %v305, %v313
    %v315 = vlaneseq
    %v316 = vshrl.u32 %v315, 7
    %v317 = vsub.s32 2, %v316
    %v318 = vrot.slane %v305, %v317
    %v319 = vlaneseq
    %v320 = vshrl.u32 %v319, 7
    %v321 = vsub.s32 3, %v320
    %v322 = vrot.slane %v305, %v321
    %v551 = vunpack.c.l.b16 %v81
    %v552 = vunpack.c.h.b16 %v81
    %v553 = vunpack.c.l.b16 %v82
    %v554 = vunpack.c.h.b16 %v82
    %v555 = vunpack.c.l.b16 %v83
    %v556 = vunpack.c.h.b16 %v83
    %v557 = vunpack.c.l.b16 %v84
    %v558 = vunpack.c.h.b16 %v84
    %v559 = vunpack.c.l.b16 %v85
    %v560 = vunpack.c.h.b16 %v85
    %v561 = vunpack.c.l.b16 %v86
    %v562 = vunpack.c.h.b16 %v86
    %v563 = vunpack.c.l.b16 %v87
    %v564 = vunpack.c.h.b16 %v87
    %v565 = vunpack.c.l.b16 %v88
    %v566 = vunpack.c.h.b16 %v88
    %v567 = vunpack.c.l.b16 %v89
    %v568 = vunpack.c.h.b16 %v89
    %v569 = vunpack.c.l.b16 %v90
    %v570 = vunpack.c.h.b16 %v90
    %v571 = vunpack.c.l.b16 %v91
    %v572 = vunpack.c.h.b16 %v91
    %v573 = vunpack.c.l.b16 %v92
    %v574 = vunpack.c.h.b16 %v92
    %v575 = vunpack.c.l.b16 %v93
    %v576 = vunpack.c.h.b16 %v93
    %v577 = vunpack.c.l.b16 %v94
    %v578 = vunpack.c.h.b16 %v94
    %v579 = vunpack.c.l.b16 %v95
    %v580 = vunpack.c.h.b16 %v95
    %v581 = vunpack.c.l.b16 %v96
    %v582 = vunpack.c.h.b16 %v96
    %v583 = vunpack.c.l.b16 %v97
    %v584 = vunpack.c.h.b16 %v97
    %v585 = vunpack.c.l.b16 %v98
    %v586 = vunpack.c.h.b16 %v98
    %v587 = vunpack.c.l.b16 %v99
    %v588 = vunpack.c.h.b16 %v99
    %v589 = vunpack.c.l.b16 %v100
    %v590 = vunpack.c.h.b16 %v100
    %v591 = vunpack.c.l.b16 %v101
    %v592 = vunpack.c.h.b16 %v101
    %v593 = vunpack.c.l.b16 %v102
    %v594 = vunpack.c.h.b16 %v102
    %v595 = vunpack.c.l.b16 %v103
    %v596 = vunpack.c.h.b16 %v103
    %v597 = vunpack.c.l.b16 %v104
    %v598 = vunpack.c.h.b16 %v104
    %v599 = vunpack.c.l.b16 %v105
    %v600 = vunpack.c.h.b16 %v105
    %v601 = vunpack.c.l.b16 %v106
    %v602 = vunpack.c.h.b16 %v106
    %v603 = vunpack.c.l.b16 %v107
    %v604 = vunpack.c.h.b16 %v107
    %v605 = vunpack.c.l.b16 %v108
    %v606 = vunpack.c.h.b16 %v108
    %v607 = vunpack.c.l.b16 %v109
    %v608 = vunpack.c.h.b16 %v109
    %v609 = vunpack.c.l.b16 %v110
    %v610 = vunpack.c.h.b16 %v110
    %v611 = vunpack.c.l.b16 %v111
    %v612 = vunpack.c.h.b16 %v111
    %v613 = vunpack.c.l.b16 %v112
    %v614 = vunpack.c.h.b16 %v112
    %v615 = vunpack.c.l.b16 %v113
    %v616 = vunpack.c.h.b16 %v113
    %v617 = vunpack.c.l.b16 %v114
    %v618 = vunpack.c.h.b16 %v114
    %v619 = vunpack.c.l.b16 %v115
    %v620 = vunpack.c.h.b16 %v115
    %v621 = vunpack.c.l.b16 %v116
    %v622 = vunpack.c.h.b16 %v116
    %v623 = vunpack.c.l.b16 %v117
    %v624 = vunpack.c.h.b16 %v117
    %v625 = vunpack.c.l.b16 %v118
    %v626 = vunpack.c.h.b16 %v118
    %v627 = vunpack.c.l.b16 %v119
    %v628 = vunpack.c.h.b16 %v119
    %v629 = vunpack.c.l.b16 %v120
    %v630 = vunpack.c.h.b16 %v120
    %v631 = vunpack.c.l.b16 %v121
    %v632 = vunpack.c.h.b16 %v121
    %v633 = vunpack.c.l.b16 %v122
    %v634 = vunpack.c.h.b16 %v122
    %v635 = vunpack.c.l.b16 %v123
    %v636 = vunpack.c.h.b16 %v123
    %v637 = vunpack.c.l.b16 %v124
    %v638 = vunpack.c.h.b16 %v124
    %v639 = vunpack.c.l.b16 %v125
    %v640 = vunpack.c.h.b16 %v125
    %v641 = vunpack.c.l.b16 %v126
    %v642 = vunpack.c.h.b16 %v126
    %v643 = vunpack.c.l.b16 %v127
    %v644 = vunpack.c.h.b16 %v127
    %v645 = vunpack.c.l.b16 %v128
    %v646 = vunpack.c.h.b16 %v128
    %v647 = vunpack.c.l.b16 %v129
    %v648 = vunpack.c.h.b16 %v129
    %v649 = vunpack.c.l.b16 %v130
    %v650 = vunpack.c.h.b16 %v130
    %v651 = vunpack.c.l.b16 %v131
    %v652 = vunpack.c.h.b16 %v131
    %v653 = vunpack.c.l.b16 %v132
    %v654 = vunpack.c.h.b16 %v132
    %v655 = vunpack.c.l.b16 %v133
    %v656 = vunpack.c.h.b16 %v133
    %v657 = vunpack.c.l.b16 %v134
    %v658 = vunpack.c.h.b16 %v134
    %v659 = vunpack.c.l.b16 %v135
    %v660 = vunpack.c.h.b16 %v135
    %v661 = vunpack.c.l.b16 %v136
    %v662 = vunpack.c.h.b16 %v136
    %v663 = vunpack.c.l.b16 %v137
    %v664 = vunpack.c.h.b16 %v137
    %v665 = vunpack.c.l.b16 %v138
    %v666 = vunpack.c.h.b16 %v138
    %v667 = vunpack.c.l.b16 %v139
    %v668 = vunpack.c.h.b16 %v139
    %v669 = vunpack.c.l.b16 %v140
    %v670 = vunpack.c.h.b16 %v140
    %v671 = vunpack.c.l.b16 %v141
    %v672 = vunpack.c.h.b16 %v141
    %v673 = vunpack.c.l.b16 %v142
    %v674 = vunpack.c.h.b16 %v142
    %v675 = vunpack.c.l.b16 %v143
    %v676 = vunpack.c.h.b16 %v143
    %v677 = vunpack.c.l.b16 %v144
    %v678 = vunpack.c.h.b16 %v144
    %v679 = vunpack.c.l.b16 %v145
    %v680 = vunpack.c.h.b16 %v145
    %v681 = vunpack.c.l.b16 %v146
    %v682 = vunpack.c.h.b16 %v146
    %v683 = vunpack.c.l.b16 %v147
    %v684 = vunpack.c.h.b16 %v147
    %v685 = vunpack.c.l.b16 %v148
    %v686 = vunpack.c.h.b16 %v148
    %v687 = vunpack.c.l.b16 %v149
    %v688 = vunpack.c.h.b16 %v149
    %v689 = vunpack.c.l.b16 %v150
    %v690 = vunpack.c.h.b16 %v150
    %v691 = vunpack.c.l.b16 %v151
    %v692 = vunpack.c.h.b16 %v151
    %v693 = vunpack.c.l.b16 %v152
    %v694 = vunpack.c.h.b16 %v152
    %v695 = vunpack.c.l.b16 %v153
    %v696 = vunpack.c.h.b16 %v153
    %v697 = vunpack.c.l.b16 %v154
    %v698 = vunpack.c.h.b16 %v154
    %v699 = vunpack.c.l.b16 %v155
    %v700 = vunpack.c.h.b16 %v155
    %v701 = vunpack.c.l.b16 %v156
    %v702 = vunpack.c.h.b16 %v156
    %v703 = vunpack.c.l.b16 %v157
    %v704 = vunpack.c.h.b16 %v157
    %v705 = vunpack.c.l.b16 %v158
    %v706 = vunpack.c.h.b16 %v158
    %v707 = vunpack.c.l.b16 %v159
    %v708 = vunpack.c.h.b16 %v159
    %v709 = vunpack.c.l.b16 %v160
    %v710 = vunpack.c.h.b16 %v160
    %v711 = vunpack.c.l.b16 %v161
    %v712 = vunpack.c.h.b16 %v161
    %v713 = vunpack.c.l.b16 %v162
    %v714 = vunpack.c.h.b16 %v162
    %v715 = vunpack.c.l.b16 %v163
    %v716 = vunpack.c.h.b16 %v163
    %v717 = vunpack.c.l.b16 %v164
    %v718 = vunpack.c.h.b16 %v164
    %v719 = vunpack.c.l.b16 %v165
    %v720 = vunpack.c.h.b16 %v165
    %v721 = vunpack.c.l.b16 %v166
    %v722 = vunpack.c.h.b16 %v166
    %v723 = vunpack.c.l.b16 %v167
    %v724 = vunpack.c.h.b16 %v167
    %v725 = vunpack.c.l.b16 %v168
    %v726 = vunpack.c.h.b16 %v168
    %v727 = vunpack.c.l.b16 %v169
    %v728 = vunpack.c.h.b16 %v169
    %v729 = vunpack.c.l.b16 %v170
    %v730 = vunpack.c.h.b16 %v170
    %v731 = vunpack.c.l.b16 %v171
    %v732 = vunpack.c.h.b16 %v171
    %v733 = vunpack.c.l.b16 %v172
    %v734 = vunpack.c.h.b16 %v172
    %v735 = vunpack.c.l.b16 %v173
    %v736 = vunpack.c.h.b16 %v173
    %v737 = vunpack.c.l.b16 %v174
    %v738 = vunpack.c.h.b16 %v174
    %v739 = vunpack.c.l.b16 %v175
    %v740 = vunpack.c.h.b16 %v175
    %v741 = vunpack.c.l.b16 %v176
    %v742 = vunpack.c.h.b16 %v176
    %v743 = vunpack.c.l.b16 %v177
    %v744 = vunpack.c.h.b16 %v177
    %v745 = vunpack.c.l.b16 %v178
    %v746 = vunpack.c.h.b16 %v178
    %v747 = vunpack.c.l.b16 %v179
    %v748 = vunpack.c.h.b16 %v179
    %v749 = vunpack.c.l.b16 %v180
    %v750 = vunpack.c.h.b16 %v180
    %v751 = vunpack.c.l.b16 %v181
    %v752 = vunpack.c.h.b16 %v181
    %v753 = vunpack.c.l.b16 %v182
    %v754 = vunpack.c.h.b16 %v182
    %v755 = vunpack.c.l.b16 %v183
    %v756 = vunpack.c.h.b16 %v183
    %v757 = vunpack.c.l.b16 %v184
    %v758 = vunpack.c.h.b16 %v184
    %v759 = vunpack.c.l.b16 %v185
    %v760 = vunpack.c.h.b16 %v185
    %v761 = vunpack.c.l.b16 %v186
    %v762 = vunpack.c.h.b16 %v186
    %v763 = vunpack.c.l.b16 %v187
    %v764 = vunpack.c.h.b16 %v187
    %v765 = vunpack.c.l.b16 %v188
    %v766 = vunpack.c.h.b16 %v188
    %v767 = vunpack.c.l.b16 %v189
    %v768 = vunpack.c.h.b16 %v189
    %v769 = vunpack.c.l.b16 %v190
    %v770 = vunpack.c.h.b16 %v190
    %v771 = vunpack.c.l.b16 %v191
    %v772 = vunpack.c.h.b16 %v191
    %v773 = vunpack.c.l.b16 %v192
    %v774 = vunpack.c.h.b16 %v192
    %v775 = vunpack.c.l.b16 %v193
    %v776 = vunpack.c.h.b16 %v193
    %v777 = vunpack.c.l.b16 %v194
    %v778 = vunpack.c.h.b16 %v194
    %v779 = vunpack.c.l.b16 %v195
    %v780 = vunpack.c.h.b16 %v195
    %v781 = vunpack.c.l.b16 %v196
    %v782 = vunpack.c.h.b16 %v196
    %v783 = vunpack.c.l.b16 %v197
    %v784 = vunpack.c.h.b16 %v197
    %v785 = vunpack.c.l.b16 %v198
    %v786 = vunpack.c.h.b16 %v198
    %v787 = vunpack.c.l.b16 %v199
    %v788 = vunpack.c.h.b16 %v199
    %v789 = vunpack.c.l.b16 %v200
    %v790 = vunpack.c.h.b16 %v200
    %v791 = vunpack.c.l.b16 %v201
    %v792 = vunpack.c.h.b16 %v201
    %v793 = vunpack.c.l.b16 %v202
    %v794 = vunpack.c.h.b16 %v202
    %v795 = vunpack.c.l.b16 %v203
    %v796 = vunpack.c.h.b16 %v203
    %v797 = vunpack.c.l.b16 %v204
    %v798 = vunpack.c.h.b16 %v204
    %v799 = vunpack.c.l.b16 %v205
    %v800 = vunpack.c.h.b16 %v205
    %v801 = vunpack.c.l.b16 %v206
    %v802 = vunpack.c.h.b16 %v206
    %v803 = vunpack.c.l.b16 %v207
    %v804 = vunpack.c.h.b16 %v207
    %v805 = vunpack.c.l.b16 %v208
    %v806 = vunpack.c.h.b16 %v208
    %v807 = vunpack.c.l.b16 %v209
    %v808 = vunpack.c.h.b16 %v209
    %v809 = vunpack.c.l.b16 %v210
    %v810 = vunpack.c.h.b16 %v210
    %v811 = vunpack.c.l.b16 %v211
    %v812 = vunpack.c.h.b16 %v211
    %v813 = vunpack.c.l.b16 %v212
    %v814 = vunpack.c.h.b16 %v212
    %v815 = vunpack.c.l.b16 %v213
    %v816 = vunpack.c.h.b16 %v213
    %v817 = vunpack.c.l.b16 %v214
    %v818 = vunpack.c.h.b16 %v214
    %v819 = vunpack.c.l.b16 %v215
    %v820 = vunpack.c.h.b16 %v215
    %v821 = vunpack.c.l.b16 %v216
    %v822 = vunpack.c.h.b16 %v216
    %v823 = vunpack.c.l.b16 %v217
    %v824 = vunpack.c.h.b16 %v217
    %v825 = vunpack.c.l.b16 %v218
    %v826 = vunpack.c.h.b16 %v218
    %v827 = vunpack.c.l.b16 %v219
    %v828 = vunpack.c.h.b16 %v219
    %v829 = vunpack.c.l.b16 %v220
    %v830 = vunpack.c.h.b16 %v220
    %v831 = vunpack.c.l.b16 %v221
    %v832 = vunpack.c.h.b16 %v221
    %v833 = vunpack.c.l.b16 %v222
    %v834 = vunpack.c.h.b16 %v222
    %v835 = vunpack.c.l.b16 %v223
    %v836 = vunpack.c.h.b16 %v223
    %v837 = vunpack.c.l.b16 %v224
    %v838 = vunpack.c.h.b16 %v224
    %v839 = vunpack.c.l.b16 %v225
    %v840 = vunpack.c.h.b16 %v225
    %v841 = vunpack.c.l.b16 %v226
    %v842 = vunpack.c.h.b16 %v226
    %v843 = vunpack.c.l.b16 %v227
    %v844 = vunpack.c.h.b16 %v227
    %v845 = vunpack.c.l.b16 %v228
    %v846 = vunpack.c.h.b16 %v228
    %v847 = vunpack.c.l.b16 %v229
    %v848 = vunpack.c.h.b16 %v229
    %v849 = vunpack.c.l.b16 %v230
    %v850 = vunpack.c.h.b16 %v230
    %v851 = vunpack.c.l.b16 %v231
    %v852 = vunpack.c.h.b16 %v231
    %v853 = vunpack.c.l.b16 %v232
    %v854 = vunpack.c.h.b16 %v232
    %v855 = vunpack.c.l.b16 %v233
    %v856 = vunpack.c.h.b16 %v233
    %v857 = vunpack.c.l.b16 %v234
    %v858 = vunpack.c.h.b16 %v234
    %v859 = vunpack.c.l.b16 %v235
    %v860 = vunpack.c.h.b16 %v235
    %v861 = vunpack.c.l.b16 %v236
    %v862 = vunpack.c.h.b16 %v236
    %v863 = vunpack.c.l.b16 %v237
    %v864 = vunpack.c.h.b16 %v237
    %v865 = vunpack.c.l.b16 %v238
    %v866 = vunpack.c.h.b16 %v238
    %v867 = vunpack.c.l.b16 %v239
    %v868 = vunpack.c.h.b16 %v239
    %v869 = vunpack.c.l.b16 %v240
    %v870 = vunpack.c.h.b16 %v240
    %v871 = vunpack.c.l.b16 %v241
    %v872 = vunpack.c.h.b16 %v241
    %v873 = vunpack.c.l.b16 %v242
    %v874 = vunpack.c.h.b16 %v242
    %v875 = vunpack.c.l.b16 %v243
    %v876 = vunpack.c.h.b16 %v243
    %v877 = vunpack.c.l.b16 %v244
    %v878 = vunpack.c.h.b16 %v244
    %v879 = vunpack.c.l.b16 %v245
    %v880 = vunpack.c.h.b16 %v245
    %v881 = vunpack.c.l.b16 %v246
    %v882 = vunpack.c.h.b16 %v246
    %v883 = vunpack.c.l.b16 %v247
    %v884 = vunpack.c.h.b16 %v247
    %v885 = vunpack.c.l.b16 %v248
    %v886 = vunpack.c.h.b16 %v248
    %v887 = vunpack.c.l.b16 %v249
    %v888 = vunpack.c.h.b16 %v249
    %v889 = vunpack.c.l.b16 %v250
    %v890 = vunpack.c.h.b16 %v250
    %v891 = vunpack.c.l.b16 %v251
    %v892 = vunpack.c.h.b16 %v251
    %v893 = vunpack.c.l.b16 %v252
    %v894 = vunpack.c.h.b16 %v252
    %v895 = vunpack.c.l.b16 %v253
    %v896 = vunpack.c.h.b16 %v253
    %v897 = vunpack.c.l.b16 %v254
    %v898 = vunpack.c.h.b16 %v254
    %v899 = vunpack.c.l.b16 %v255
    %v900 = vunpack.c.h.b16 %v255
    %v901 = vunpack.c.l.b16 %v256
    %v902 = vunpack.c.h.b16 %v256
    %v903 = vunpack.c.l.b16 %v257
    %v904 = vunpack.c.h.b16 %v257
    %v905 = vunpack.c.l.b16 %v258
    %v906 = vunpack.c.h.b16 %v258
    %v907 = vunpack.c.l.b16 %v259
    %v908 = vunpack.c.h.b16 %v259
    %v909 = vunpack.c.l.b16 %v260
    %v910 = vunpack.c.h.b16 %v260
    %v911 = vunpack.c.l.b16 %v261
    %v912 = vunpack.c.h.b16 %v261
    %v913 = vunpack.c.l.b16 %v262
    %v914 = vunpack.c.h.b16 %v262
    %v915 = vunpack.c.l.b16 %v263
    %v916 = vunpack.c.h.b16 %v263
    %v917 = vunpack.c.l.b16 %v264
    %v918 = vunpack.c.h.b16 %v264
    %v919 = vunpack.c.l.b16 %v265
    %v920 = vunpack.c.h.b16 %v265
    %v921 = vunpack.c.l.b16 %v266
    %v922 = vunpack.c.h.b16 %v266
    %v923 = vunpack.c.l.b16 %v267
    %v924 = vunpack.c.h.b16 %v267
    %v925 = vunpack.c.l.b16 %v268
    %v926 = vunpack.c.h.b16 %v268
    %v927 = vunpack.c.l.b16 %v269
    %v928 = vunpack.c.h.b16 %v269
    %v929 = vunpack.c.l.b16 %v270
    %v930 = vunpack.c.h.b16 %v270
    %v931 = vunpack.c.l.b16 %v271
    %v932 = vunpack.c.h.b16 %v271
    %v933 = vunpack.c.l.b16 %v272
    %v934 = vunpack.c.h.b16 %v272
    %v935 = vunpack.c.l.b16 %v273
    %v936 = vunpack.c.h.b16 %v273
    %v937 = vunpack.c.l.b16 %v274
    %v938 = vunpack.c.h.b16 %v274
    %v939 = vunpack.c.l.b16 %v275
    %v940 = vunpack.c.h.b16 %v275
    %v941 = vunpack.c.l.b16 %v276
    %v942 = vunpack.c.h.b16 %v276
    %v943 = vunpack.c.l.b16 %v277
    %v944 = vunpack.c.h.b16 %v277
    %v945 = vunpack.c.l.b16 %v278
    %v946 = vunpack.c.h.b16 %v278
    %v947 = vunpack.c.l.b16 %v279
    %v948 = vunpack.c.h.b16 %v279
    %v949 = vunpack.c.l.b16 %v280
    %v950 = vunpack.c.h.b16 %v280
    %v951 = vunpack.c.l.b16 %v281
    %v952 = vunpack.c.h.b16 %v281
    %v953 = vunpack.c.l.b16 %v282
    %v954 = vunpack.c.h.b16 %v282
    %v955 = vunpack.c.l.b16 %v283
    %v956 = vunpack.c.h.b16 %v283
    %v957 = vunpack.c.l.b16 %v284
    %v958 = vunpack.c.h.b16 %v284
    %v959 = vunpack.c.l.b16 %v285
    %v960 = vunpack.c.h.b16 %v285
    %v961 = vunpack.c.l.b16 %v286
    %v962 = vunpack.c.h.b16 %v286
    %v963 = vunpack.c.l.b16 %v287
    %v964 = vunpack.c.h.b16 %v287
    %v965 = vunpack.c.l.b16 %v288
    %v966 = vunpack.c.h.b16 %v288
    %v967 = vunpack.c.l.b16 %v289
    %v968 = vunpack.c.h.b16 %v289
    %v969 = vunpack.c.l.b16 %v290
    %v970 = vunpack.c.h.b16 %v290
    %v971 = vunpack.c.l.b16 %v291
    %v972 = vunpack.c.h.b16 %v291
    %v973 = vunpack.c.l.b16 %v292
    %v974 = vunpack.c.h.b16 %v292
    %v975 = vunpack.c.l.b16 %v293
    %v976 = vunpack.c.h.b16 %v293
    %v977 = vunpack.c.l.b16 %v294
    %v978 = vunpack.c.h.b16 %v294
    %v979 = vunpack.c.l.b16 %v295
    %v980 = vunpack.c.h.b16 %v295
    %v981 = vunpack.c.l.b16 %v296
    %v982 = vunpack.c.h.b16 %v296
    %v983 = vunpack.c.l.b16 %v297
    %v984 = vunpack.c.h.b16 %v297
    %v985 = vunpack.c.l.b16 %v298
    %v986 = vunpack.c.h.b16 %v298
    %v987 = vunpack.c.l.b16 %v299
    %v988 = vunpack.c.h.b16 %v299
    %v989 = vunpack.c.l.b16 %v300
    %v990 = vunpack.c.h.b16 %v300
    %v991 = vunpack.c.l.b16 %v301
    %v992 = vunpack.c.h.b16 %v301
    %v993 = vunpack.c.l.b16 %v302
    %v994 = vunpack.c.h.b16 %v302
    %v995 = vunpack.c.l.b16 %v303
    %v996 = vunpack.c.h.b16 %v303
    %v997 = vunpack.c.l.b16 %v304
    %v998 = vunpack.c.h.b16 %v304
    %v999 = vpack.c.b16 %v555, %v551
    %v1000 = vpack.c.b16 %v556, %v552
    %v1001 = vpack.c.b16 %v557, %v553
    %v1002 = vpack.c.b16 %v558, %v554
    %v1003 = vpack.c.b16 %v563, %v559
    %v1004 = vpack.c.b16 %v564, %v560
    %v1005 = vpack.c.b16 %v565, %v561
    %v1006 = vpack.c.b16 %v566, %v562
    %v1007 = vpack.c.b16 %v571, %v567
    %v1008 = vpack.c.b16 %v572, %v568
    %v1009 = vpack.c.b16 %v573, %v569
    %v1010 = vpack.c.b16 %v574, %v570
    %v1011 = vpack.c.b16 %v579, %v575
    %v1012 = vpack.c.b16 %v580, %v576
    %v1013 = vpack.c.b16 %v581, %v577
    %v1014 = vpack.c.b16 %v582, %v578
    %v1015 = vpack.c.b16 %v587, %v583
    %v1016 = vpack.c.b16 %v588, %v584
    %v1017 = vpack.c.b16 %v589, %v585
    %v1018 = vpack.c.b16 %v590, %v586
    %v1019 = vpack.c.b16 %v595, %v591
    %v1020 = vpack.c.b16 %v596, %v592
    %v1021 = vpack.c.b16 %v597, %v593
    %v1022 = vpack.c.b16 %v598, %v594
    %v1023 = vpack.c.b16 %v603, %v599
    %v1024 = vpack.c.b16 %v604, %v600
    %v1025 = vpack.c.b16 %v605, %v601
    %v1026 = vpack.c.b16 %v606, %v602
    %v1027 = vpack.c.b16 %v611, %v607
    %v1028 = vpack.c.b16 %v612, %v608
    %v1029 = vpack.c.b16 %v613, %v609
    %v1030 = vpack.c.b16 %v614, %v610
    %v1031 = vpack.c.b16 %v619, %v615
    %v1032 = vpack.c.b16 %v620, %v616
    %v1033 = vpack.c.b16 %v621, %v617
    %v1034 = vpack.c.b16 %v622, %v618
    %v1035 = vpack.c.b16 %v627, %v623
    %v1036 = vpack.c.b16 %v628, %v624
    %v1037 = vpack.c.b16 %v629, %v625
    %v1038 = vpack.c.b16 %v630, %v626
    %v1039 = vpack.c.b16 %v635, %v631
    %v1040 = vpack.c.b16 %v636, %v632
    %v1041 = vpack.c.b16 %v637, %v633
    %v1042 = vpack.c.b16 %v638, %v634
    %v1043 = vpack.c.b16 %v643, %v639
    %v1044 = vpack.c.b16 %v644, %v640
    %v1045 = vpack.c.b16 %v645, %v641
    %v1046 = vpack.c.b16 %v646, %v642
    %v1047 = vpack.c.b16 %v651, %v647
    %v1048 = vpack.c.b16 %v652, %v648
    %v1049 = vpack.c.b16 %v653, %v649
    %v1050 = vpack.c.b16 %v654, %v650
    %v1051 = vpack.c.b16 %v659, %v655
    %v1052 = vpack.c.b16 %v660, %v656
    %v1053 = vpack.c.b16 %v661, %v657
    %v1054 = vpack.c.b16 %v662, %v658
    %v1055 = vpack.c.b16 %v667, %v663
    %v1056 = vpack.c.b16 %v668, %v664
    %v1057 = vpack.c.b16 %v669, %v665
    %v1058 = vpack.c.b16 %v670, %v666
    %v1059 = vpack.c.b16 %v675, %v671
    %v1060 = vpack.c.b16 %v676, %v672
    %v1061 = vpack.c.b16 %v677, %v673
    %v1062 = vpack.c.b16 %v678, %v674
    %v1063 = vpack.c.b16 %v683, %v679
    %v1064 = vpack.c.b16 %v684, %v680
    %v1065 = vpack.c.b16 %v685, %v681
    %v1066 = vpack.c.b16 %v686, %v682
    %v1067 = vpack.c.b16 %v691, %v687
    %v1068 = vpack.c.b16 %v692, %v688
    %v1069 = vpack.c.b16 %v693, %v689
    %v1070 = vpack.c.b16 %v694, %v690
    %v1071 = vpack.c.b16 %v699, %v695
    %v1072 = vpack.c.b16 %v700, %v696
    %v1073 = vpack.c.b16 %v701, %v697
    %v1074 = vpack.c.b16 %v702, %v698
    %v1075 = vpack.c.b16 %v707, %v703
    %v1076 = vpack.c.b16 %v708, %v704
    %v1077 = vpack.c.b16 %v709, %v705
    %v1078 = vpack.c.b16 %v710, %v706
    %v1079 = vpack.c.b16 %v715, %v711
    %v1080 = vpack.c.b16 %v716, %v712
    %v1081 = vpack.c.b16 %v717, %v713
    %v1082 = vpack.c.b16 %v718, %v714
    %v1083 = vpack.c.b16 %v723, %v719
    %v1084 = vpack.c.b16 %v724, %v720
    %v1085 = vpack.c.b16 %v725, %v721
    %v1086 = vpack.c.b16 %v726, %v722
    %v1087 = vpack.c.b16 %v731, %v727
    %v1088 = vpack.c.b16 %v732, %v728
    %v1089 = vpack.c.b16 %v733, %v729
    %v1090 = vpack.c.b16 %v734, %v730
    %v1091 = vpack.c.b16 %v739, %v735
    %v1092 = vpack.c.b16 %v740, %v736
    %v1093 = vpack.c.b16 %v741, %v737
    %v1094 = vpack.c.b16 %v742, %v738
    %v1095 = vpack.c.b16 %v747, %v743
    %v1096 = vpack.c.b16 %v748, %v744
    %v1097 = vpack.c.b16 %v749, %v745
    %v1098 = vpack.c.b16 %v750, %v746
    %v1099 = vpack.c.b16 %v755, %v751
    %v1100 = vpack.c.b16 %v756, %v752
    %v1101 = vpack.c.b16 %v757, %v753
    %v1102 = vpack.c.b16 %v758, %v754
    %v1103 = vpack.c.b16 %v763, %v759
    %v1104 = vpack.c.b16 %v764, %v760
    %v1105 = vpack.c.b16 %v765, %v761
    %v1106 = vpack.c.b16 %v766, %v762
    %v1107 = vpack.c.b16 %v771, %v767
    %v1108 = vpack.c.b16 %v772, %v768
    %v1109 = vpack.c.b16 %v773, %v769
    %v1110 = vpack.c.b16 %v774, %v770
    %v1111 = vpack.c.b16 %v779, %v775
    %v1112 = vpack.c.b16 %v780, %v776
    %v1113 = vpack.c.b16 %v781, %v777
    %v1114 = vpack.c.b16 %v782, %v778
    %v1115 = vpack.c.b16 %v787, %v783
    %v1116 = vpack.c.b16 %v788, %v784
    %v1117 = vpack.c.b16 %v789, %v785
    %v1118 = vpack.c.b16 %v790, %v786
    %v1119 = vpack.c.b16 %v795, %v791
    %v1120 = vpack.c.b16 %v796, %v792
    %v1121 = vpack.c.b16 %v797, %v793
    %v1122 = vpack.c.b16 %v798, %v794
    %v1123 = vpack.c.b16 %v803, %v799
    %v1124 = vpack.c.b16 %v804, %v800
    %v1125 = vpack.c.b16 %v805, %v801
    %v1126 = vpack.c.b16 %v806, %v802
    %v1127 = vpack.c.b16 %v811, %v807
    %v1128 = vpack.c.b16 %v812, %v808
    %v1129 = vpack.c.b16 %v813, %v809
    %v1130 = vpack.c.b16 %v814, %v810
    %v1131 = vpack.c.b16 %v819, %v815
    %v1132 = vpack.c.b16 %v820, %v816
    %v1133 = vpack.c.b16 %v821, %v817
    %v1134 = vpack.c.b16 %v822, %v818
    %v1135 = vpack.c.b16 %v827, %v823
    %v1136 = vpack.c.b16 %v828, %v824
    %v1137 = vpack.c.b16 %v829, %v825
    %v1138 = vpack.c.b16 %v830, %v826
    %v1139 = vpack.c.b16 %v835, %v831
    %v1140 = vpack.c.b16 %v836, %v832
    %v1141 = vpack.c.b16 %v837, %v833
    %v1142 = vpack.c.b16 %v838, %v834
    %v1143 = vpack.c.b16 %v843, %v839
    %v1144 = vpack.c.b16 %v844, %v840
    %v1145 = vpack.c.b16 %v845, %v841
    %v1146 = vpack.c.b16 %v846, %v842
    %v1147 = vpack.c.b16 %v851, %v847
    %v1148 = vpack.c.b16 %v852, %v848
    %v1149 = vpack.c.b16 %v853, %v849
    %v1150 = vpack.c.b16 %v854, %v850
    %v1151 = vpack.c.b16 %v859, %v855
    %v1152 = vpack.c.b16 %v860, %v856
    %v1153 = vpack.c.b16 %v861, %v857
    %v1154 = vpack.c.b16 %v862, %v858
    %v1155 = vpack.c.b16 %v867, %v863
    %v1156 = vpack.c.b16 %v868, %v864
    %v1157 = vpack.c.b16 %v869, %v865
    %v1158 = vpack.c.b16 %v870, %v866
    %v1159 = vpack.c.b16 %v875, %v871
    %v1160 = vpack.c.b16 %v876, %v872
    %v1161 = vpack.c.b16 %v877, %v873
    %v1162 = vpack.c.b16 %v878, %v874
    %v1163 = vpack.c.b16 %v883, %v879
    %v1164 = vpack.c.b16 %v884, %v880
    %v1165 = vpack.c.b16 %v885, %v881
    %v1166 = vpack.c.b16 %v886, %v882
    %v1167 = vpack.c.b16 %v891, %v887
    %v1168 = vpack.c.b16 %v892, %v888
    %v1169 = vpack.c.b16 %v893, %v889
    %v1170 = vpack.c.b16 %v894, %v890
    %v1171 = vpack.c.b16 %v899, %v895
    %v1172 = vpack.c.b16 %v900, %v896
    %v1173 = vpack.c.b16 %v901, %v897
    %v1174 = vpack.c.b16 %v902, %v898
    %v1175 = vpack.c.b16 %v907, %v903
    %v1176 = vpack.c.b16 %v908, %v904
    %v1177 = vpack.c.b16 %v909, %v905
    %v1178 = vpack.c.b16 %v910, %v906
    %v1179 = vpack.c.b16 %v915, %v911
    %v1180 = vpack.c.b16 %v916, %v912
    %v1181 = vpack.c.b16 %v917, %v913
    %v1182 = vpack.c.b16 %v918, %v914
    %v1183 = vpack.c.b16 %v923, %v919
    %v1184 = vpack.c.b16 %v924, %v920
    %v1185 = vpack.c.b16 %v925, %v921
    %v1186 = vpack.c.b16 %v926, %v922
    %v1187 = vpack.c.b16 %v931, %v927
    %v1188 = vpack.c.b16 %v932, %v928
    %v1189 = vpack.c.b16 %v933, %v929
    %v1190 = vpack.c.b16 %v934, %v930
    %v1191 = vpack.c.b16 %v939, %v935
    %v1192 = vpack.c.b16 %v940, %v936
    %v1193 = vpack.c.b16 %v941, %v937
    %v1194 = vpack.c.b16 %v942, %v938
    %v1195 = vpack.c.b16 %v947, %v943
    %v1196 = vpack.c.b16 %v948, %v944
    %v1197 = vpack.c.b16 %v949, %v945
    %v1198 = vpack.c.b16 %v950, %v946
    %v1199 = vpack.c.b16 %v955, %v951
    %v1200 = vpack.c.b16 %v956, %v952
    %v1201 = vpack.c.b16 %v957, %v953
    %v1202 = vpack.c.b16 %v958, %v954
    %v1203 = vpack.c.b16 %v963, %v959
    %v1204 = vpack.c.b16 %v964, %v960
    %v1205 = vpack.c.b16 %v965, %v961
    %v1206 = vpack.c.b16 %v966, %v962
    %v1207 = vpack.c.b16 %v971, %v967
    %v1208 = vpack.c.b16 %v972, %v968
    %v1209 = vpack.c.b16 %v973, %v969
    %v1210 = vpack.c.b16 %v974, %v970
    %v1211 = vpack.c.b16 %v979, %v975
    %v1212 = vpack.c.b16 %v980, %v976
    %v1213 = vpack.c.b16 %v981, %v977
    %v1214 = vpack.c.b16 %v982, %v978
    %v1215 = vpack.c.b16 %v987, %v983
    %v1216 = vpack.c.b16 %v988, %v984
    %v1217 = vpack.c.b16 %v989, %v985
    %v1218 = vpack.c.b16 %v990, %v986
    %v1219 = vpack.c.b16 %v995, %v991
    %v1220 = vpack.c.b16 %v996, %v992
    %v1221 = vpack.c.b16 %v997, %v993
    %v1222 = vpack.c.b16 %v998, %v994
    %1447 = vmatprep.subr.bf16.mxu0 %v1000
    %1448 = vmatpush1.bf16.msra.mxu0 %v999
    %1449 = vmatprep.subr.bf16.mxu0 %v1004
    %1450 = vmatpush1.bf16.msra.mxu0 %v1003
    %1451 = vmatprep.subr.bf16.mxu0 %v1008
    %1452 = vmatpush1.bf16.msra.mxu0 %v1007
    %1453 = vmatprep.subr.bf16.mxu0 %v1012
    %1454 = vmatpush1.bf16.msra.mxu0 %v1011
    %1455 = vmatprep.subr.bf16.mxu0 %v1016
    %1456 = vmatpush1.bf16.msra.mxu0 %v1015
    %1457 = vmatprep.subr.bf16.mxu0 %v1020
    %1458 = vmatpush1.bf16.msra.mxu0 %v1019
    %1459 = vmatprep.subr.bf16.mxu0 %v1024
    %1460 = vmatpush1.bf16.msra.mxu0 %v1023
    %1461 = vmatprep.subr.bf16.mxu0 %v1028
    %1462 = vmatpush1.bf16.msra.mxu0 %v1027
    %1463 = vmatprep.subr.bf16.mxu0 %v1032
    %1464 = vmatpush1.bf16.msra.mxu0 %v1031
    %1465 = vmatprep.subr.bf16.mxu0 %v1036
    %1466 = vmatpush1.bf16.msra.mxu0 %v1035
    %1467 = vmatprep.subr.bf16.mxu0 %v1040
    %1468 = vmatpush1.bf16.msra.mxu0 %v1039
    %1469 = vmatprep.subr.bf16.mxu0 %v1044
    %1470 = vmatpush1.bf16.msra.mxu0 %v1043
    %1471 = vmatprep.subr.bf16.mxu0 %v1048
    %1472 = vmatpush1.bf16.msra.mxu0 %v1047
    %1473 = vmatprep.subr.bf16.mxu0 %v1052
    %1474 = vmatpush1.bf16.msra.mxu0 %v1051
    %1475 = vmatprep.subr.bf16.mxu0 %v1056
    %1476 = vmatpush1.bf16.msra.mxu0 %v1055
    %1477 = vmatprep.subr.bf16.mxu0 %v1060
    %1478 = vmatpush1.bf16.msra.mxu0 %v1059
    %1479 = vmatprep.mubr.bf16.mxu0 %v75
    %1480 = vmatmul.mubr.bf16.gmra.mrb[0].mxu0 %v74
    %v1481 = vpop.f32.mrb[0].mxu0
    %v1482 = vadd.f32 %v310, %v1481
    %v1483 = vpop.f32.mrb[0].mxu0
    %v1484 = vadd.f32 %v314, %v1483
    %v1485 = vpop.f32.mrb[0].mxu0
    %v1486 = vpop.f32.mrb[0].mxu0
    %1487 = vdwg.mxu0
    %1488 = vmatprep.subr.bf16.mxu0 %v1064
    %1489 = vmatpush1.bf16.msra.mxu0 %v1063
    %1490 = vmatprep.subr.bf16.mxu0 %v1068
    %1491 = vmatpush1.bf16.msra.mxu0 %v1067
    %1492 = vmatprep.subr.bf16.mxu0 %v1072
    %1493 = vmatpush1.bf16.msra.mxu0 %v1071
    %1494 = vmatprep.subr.bf16.mxu0 %v1076
    %1495 = vmatpush1.bf16.msra.mxu0 %v1075
    %1496 = vmatprep.subr.bf16.mxu0 %v1080
    %1497 = vmatpush1.bf16.msra.mxu0 %v1079
    %1498 = vmatprep.subr.bf16.mxu0 %v1084
    %1499 = vmatpush1.bf16.msra.mxu0 %v1083
    %1500 = vmatprep.subr.bf16.mxu0 %v1088
    %1501 = vmatpush1.bf16.msra.mxu0 %v1087
    %1502 = vmatprep.subr.bf16.mxu0 %v1092
    %1503 = vmatpush1.bf16.msra.mxu0 %v1091
    %1504 = vmatprep.subr.bf16.mxu0 %v1096
    %1505 = vmatpush1.bf16.msra.mxu0 %v1095
    %1506 = vmatprep.subr.bf16.mxu0 %v1100
    %1507 = vmatpush1.bf16.msra.mxu0 %v1099
    %1508 = vmatprep.subr.bf16.mxu0 %v1104
    %1509 = vmatpush1.bf16.msra.mxu0 %v1103
    %1510 = vmatprep.subr.bf16.mxu0 %v1108
    %1511 = vmatpush1.bf16.msra.mxu0 %v1107
    %1512 = vmatprep.subr.bf16.mxu0 %v1112
    %1513 = vmatpush1.bf16.msra.mxu0 %v1111
    %1514 = vmatprep.subr.bf16.mxu0 %v1116
    %1515 = vmatpush1.bf16.msra.mxu0 %v1115
    %1516 = vmatprep.subr.bf16.mxu0 %v1120
    %1517 = vmatpush1.bf16.msra.mxu0 %v1119
    %1518 = vmatprep.subr.bf16.mxu0 %v1124
    %1519 = vmatpush1.bf16.msra.mxu0 %v1123
    %1520 = vmatprep.mubr.bf16.mxu0 %v77
    %1521 = vmatmul.mubr.bf16.gmra.mrb[0].mxu0 %v76
    %v1522 = vpop.f32.mrb[0].mxu0
    %v1523 = vadd.f32 %v1482, %v1522
    %v1524 = vpop.f32.mrb[0].mxu0
    %v1525 = vadd.f32 %v1484, %v1524
    %v1526 = vpop.f32.mrb[0].mxu0
    %v1527 = vpop.f32.mrb[0].mxu0
    %1528 = vdwg.mxu0
    %1529 = vmatprep.subr.bf16.mxu0 %v1128
    %1530 = vmatpush1.bf16.msra.mxu0 %v1127
    %1531 = vmatprep.subr.bf16.mxu0 %v1132
    %1532 = vmatpush1.bf16.msra.mxu0 %v1131
    %1533 = vmatprep.subr.bf16.mxu0 %v1136
    %1534 = vmatpush1.bf16.msra.mxu0 %v1135
    %1535 = vmatprep.subr.bf16.mxu0 %v1140
    %1536 = vmatpush1.bf16.msra.mxu0 %v1139
    %1537 = vmatprep.subr.bf16.mxu0 %v1144
    %1538 = vmatpush1.bf16.msra.mxu0 %v1143
    %1539 = vmatprep.subr.bf16.mxu0 %v1148
    %1540 = vmatpush1.bf16.msra.mxu0 %v1147
    %1541 = vmatprep.subr.bf16.mxu0 %v1152
    %1542 = vmatpush1.bf16.msra.mxu0 %v1151
    %1543 = vmatprep.subr.bf16.mxu0 %v1156
    %1544 = vmatpush1.bf16.msra.mxu0 %v1155
    %1545 = vmatprep.subr.bf16.mxu0 %v1160
    %1546 = vmatpush1.bf16.msra.mxu0 %v1159
    %1547 = vmatprep.subr.bf16.mxu0 %v1164
    %1548 = vmatpush1.bf16.msra.mxu0 %v1163
    %1549 = vmatprep.subr.bf16.mxu0 %v1168
    %1550 = vmatpush1.bf16.msra.mxu0 %v1167
    %1551 = vmatprep.subr.bf16.mxu0 %v1172
    %1552 = vmatpush1.bf16.msra.mxu0 %v1171
    %1553 = vmatprep.subr.bf16.mxu0 %v1176
    %1554 = vmatpush1.bf16.msra.mxu0 %v1175
    %1555 = vmatprep.subr.bf16.mxu0 %v1180
    %1556 = vmatpush1.bf16.msra.mxu0 %v1179
    %1557 = vmatprep.subr.bf16.mxu0 %v1184
    %1558 = vmatpush1.bf16.msra.mxu0 %v1183
    %1559 = vmatprep.subr.bf16.mxu0 %v1188
    %1560 = vmatpush1.bf16.msra.mxu0 %v1187
    %1561 = vmatprep.mubr.bf16.mxu0 %v79
    %1562 = vmatmul.mubr.bf16.gmra.mrb[0].mxu0 %v78
    %v1563 = vpop.f32.mrb[0].mxu0
    %v1564 = vadd.f32 %v1523, %v1563
    %v1565 = vpop.f32.mrb[0].mxu0
    %v1566 = vadd.f32 %v1525, %v1565
    %v1567 = vpop.f32.mrb[0].mxu0
    %v1568 = vpop.f32.mrb[0].mxu0
    %1569 = vdwg.mxu0
    %1570 = vmatprep.subr.bf16.mxu0 %v1192
    %1571 = vmatpush1.bf16.msra.mxu0 %v1191
    %1572 = vmatprep.subr.bf16.mxu0 %v1196
    %1573 = vmatpush1.bf16.msra.mxu0 %v1195
    %1574 = vmatprep.subr.bf16.mxu0 %v1200
    %1575 = vmatpush1.bf16.msra.mxu0 %v1199
    %1576 = vmatprep.subr.bf16.mxu0 %v1204
    %1577 = vmatpush1.bf16.msra.mxu0 %v1203
    %1578 = vmatprep.subr.bf16.mxu0 %v1208
    %1579 = vmatpush1.bf16.msra.mxu0 %v1207
    %1580 = vmatprep.subr.bf16.mxu0 %v1212
    %1581 = vmatpush1.bf16.msra.mxu0 %v1211
    %1582 = vmatprep.subr.bf16.mxu0 %v1216
    %1583 = vmatpush1.bf16.msra.mxu0 %v1215
    %1584 = vmatprep.subr.bf16.mxu0 %v1220
    %1585 = vmatpush1.bf16.msra.mxu0 %v1219
    %1586 = vmatprep.subr.bf16.mxu0 0
    %1587 = vmatpush1.bf16.msra.mxu0 0
    %1588 = vmatprep.subr.bf16.mxu0 0
    %1589 = vmatpush1.bf16.msra.mxu0 0
    %1590 = vmatprep.subr.bf16.mxu0 0
    %1591 = vmatpush1.bf16.msra.mxu0 0
    %1592 = vmatprep.subr.bf16.mxu0 0
    %1593 = vmatpush1.bf16.msra.mxu0 0
    %1594 = vmatprep.subr.bf16.mxu0 0
    %1595 = vmatpush1.bf16.msra.mxu0 0
    %1596 = vmatprep.subr.bf16.mxu0 0
    %1597 = vmatpush1.bf16.msra.mxu0 0
    %1598 = vmatprep.subr.bf16.mxu0 0
    %1599 = vmatpush1.bf16.msra.mxu0 0
    %1600 = vmatprep.subr.bf16.mxu0 0
    %1601 = vmatpush1.bf16.msra.mxu0 0
    %1602 = vmatprep.mubr.bf16.mxu0 0
    %1603 = vmatmul.mubr.bf16.gmra.mrb[0].mxu0 %v80
    %v1604 = vpop.f32.mrb[0].mxu0
    %v1605 = vadd.f32 %v1564, %v1604
    %v1606 = vpop.f32.mrb[0].mxu0
    %v1607 = vadd.f32 %v1566, %v1606
    %v1608 = vpop.f32.mrb[0].mxu0
    %v1609 = vpop.f32.mrb[0].mxu0
    %1610 = vdwg.mxu0
    %1611 = vmatprep.subr.bf16.mxu0 %v1002
    %1612 = vmatpush1.bf16.msra.mxu0 %v1001
    %1613 = vmatprep.subr.bf16.mxu0 %v1006
    %1614 = vmatpush1.bf16.msra.mxu0 %v1005
    %1615 = vmatprep.subr.bf16.mxu0 %v1010
    %1616 = vmatpush1.bf16.msra.mxu0 %v1009
    %1617 = vmatprep.subr.bf16.mxu0 %v1014
    %1618 = vmatpush1.bf16.msra.mxu0 %v1013
    %1619 = vmatprep.subr.bf16.mxu0 %v1018
    %1620 = vmatpush1.bf16.msra.mxu0 %v1017
    %1621 = vmatprep.subr.bf16.mxu0 %v1022
    %1622 = vmatpush1.bf16.msra.mxu0 %v1021
    %1623 = vmatprep.subr.bf16.mxu0 %v1026
    %1624 = vmatpush1.bf16.msra.mxu0 %v1025
    %1625 = vmatprep.subr.bf16.mxu0 %v1030
    %1626 = vmatpush1.bf16.msra.mxu0 %v1029
    %1627 = vmatprep.subr.bf16.mxu0 %v1034
    %1628 = vmatpush1.bf16.msra.mxu0 %v1033
    %1629 = vmatprep.subr.bf16.mxu0 %v1038
    %1630 = vmatpush1.bf16.msra.mxu0 %v1037
    %1631 = vmatprep.subr.bf16.mxu0 %v1042
    %1632 = vmatpush1.bf16.msra.mxu0 %v1041
    %1633 = vmatprep.subr.bf16.mxu0 %v1046
    %1634 = vmatpush1.bf16.msra.mxu0 %v1045
    %1635 = vmatprep.subr.bf16.mxu0 %v1050
    %1636 = vmatpush1.bf16.msra.mxu0 %v1049
    %1637 = vmatprep.subr.bf16.mxu0 %v1054
    %1638 = vmatpush1.bf16.msra.mxu0 %v1053
    %1639 = vmatprep.subr.bf16.mxu0 %v1058
    %1640 = vmatpush1.bf16.msra.mxu0 %v1057
    %1641 = vmatprep.subr.bf16.mxu0 %v1062
    %1642 = vmatpush1.bf16.msra.mxu0 %v1061
    %1643 = vmatprep.mubr.bf16.mxu0 %v75
    %1644 = vmatmul.mubr.bf16.gmra.mrb[0].mxu0 %v74
    %v1645 = vpop.f32.mrb[0].mxu0
    %v1646 = vadd.f32 %v318, %v1645
    %v1647 = vpop.f32.mrb[0].mxu0
    %v1648 = vadd.f32 %v322, %v1647
    %v1649 = vpop.f32.mrb[0].mxu0
    %v1650 = vpop.f32.mrb[0].mxu0
    %1651 = vdwg.mxu0
    %1652 = vmatprep.subr.bf16.mxu0 %v1066
    %1653 = vmatpush1.bf16.msra.mxu0 %v1065
    %1654 = vmatprep.subr.bf16.mxu0 %v1070
    %1655 = vmatpush1.bf16.msra.mxu0 %v1069
    %1656 = vmatprep.subr.bf16.mxu0 %v1074
    %1657 = vmatpush1.bf16.msra.mxu0 %v1073
    %1658 = vmatprep.subr.bf16.mxu0 %v1078
    %1659 = vmatpush1.bf16.msra.mxu0 %v1077
    %1660 = vmatprep.subr.bf16.mxu0 %v1082
    %1661 = vmatpush1.bf16.msra.mxu0 %v1081
    %1662 = vmatprep.subr.bf16.mxu0 %v1086
    %1663 = vmatpush1.bf16.msra.mxu0 %v1085
    %1664 = vmatprep.subr.bf16.mxu0 %v1090
    %1665 = vmatpush1.bf16.msra.mxu0 %v1089
    %1666 = vmatprep.subr.bf16.mxu0 %v1094
    %1667 = vmatpush1.bf16.msra.mxu0 %v1093
    %1668 = vmatprep.subr.bf16.mxu0 %v1098
    %1669 = vmatpush1.bf16.msra.mxu0 %v1097
    %1670 = vmatprep.subr.bf16.mxu0 %v1102
    %1671 = vmatpush1.bf16.msra.mxu0 %v1101
    %1672 = vmatprep.subr.bf16.mxu0 %v1106
    %1673 = vmatpush1.bf16.msra.mxu0 %v1105
    %1674 = vmatprep.subr.bf16.mxu0 %v1110
    %1675 = vmatpush1.bf16.msra.mxu0 %v1109
    %1676 = vmatprep.subr.bf16.mxu0 %v1114
    %1677 = vmatpush1.bf16.msra.mxu0 %v1113
    %1678 = vmatprep.subr.bf16.mxu0 %v1118
    %1679 = vmatpush1.bf16.msra.mxu0 %v1117
    %1680 = vmatprep.subr.bf16.mxu0 %v1122
    %1681 = vmatpush1.bf16.msra.mxu0 %v1121
    %1682 = vmatprep.subr.bf16.mxu0 %v1126
    %1683 = vmatpush1.bf16.msra.mxu0 %v1125
    %1684 = vmatprep.mubr.bf16.mxu0 %v77
    %1685 = vmatmul.mubr.bf16.gmra.mrb[0].mxu0 %v76
    %v1686 = vpop.f32.mrb[0].mxu0
    %v1687 = vadd.f32 %v1646, %v1686
    %v1688 = vpop.f32.mrb[0].mxu0
    %v1689 = vadd.f32 %v1648, %v1688
    %v1690 = vpop.f32.mrb[0].mxu0
    %v1691 = vpop.f32.mrb[0].mxu0
    %1692 = vdwg.mxu0
    %1693 = vmatprep.subr.bf16.mxu0 %v1130
    %1694 = vmatpush1.bf16.msra.mxu0 %v1129
    %1695 = vmatprep.subr.bf16.mxu0 %v1134
    %1696 = vmatpush1.bf16.msra.mxu0 %v1133
    %1697 = vmatprep.subr.bf16.mxu0 %v1138
    %1698 = vmatpush1.bf16.msra.mxu0 %v1137
    %1699 = vmatprep.subr.bf16.mxu0 %v1142
    %1700 = vmatpush1.bf16.msra.mxu0 %v1141
    %1701 = vmatprep.subr.bf16.mxu0 %v1146
    %1702 = vmatpush1.bf16.msra.mxu0 %v1145
    %1703 = vmatprep.subr.bf16.mxu0 %v1150
    %1704 = vmatpush1.bf16.msra.mxu0 %v1149
    %1705 = vmatprep.subr.bf16.mxu0 %v1154
    %1706 = vmatpush1.bf16.msra.mxu0 %v1153
    %1707 = vmatprep.subr.bf16.mxu0 %v1158
    %1708 = vmatpush1.bf16.msra.mxu0 %v1157
    %1709 = vmatprep.subr.bf16.mxu0 %v1162
    %1710 = vmatpush1.bf16.msra.mxu0 %v1161
    %1711 = vmatprep.subr.bf16.mxu0 %v1166
    %1712 = vmatpush1.bf16.msra.mxu0 %v1165
    %1713 = vmatprep.subr.bf16.mxu0 %v1170
    %1714 = vmatpush1.bf16.msra.mxu0 %v1169
    %1715 = vmatprep.subr.bf16.mxu0 %v1174
    %1716 = vmatpush1.bf16.msra.mxu0 %v1173
    %1717 = vmatprep.subr.bf16.mxu0 %v1178
    %1718 = vmatpush1.bf16.msra.mxu0 %v1177
    %1719 = vmatprep.subr.bf16.mxu0 %v1182
    %1720 = vmatpush1.bf16.msra.mxu0 %v1181
    %1721 = vmatprep.subr.bf16.mxu0 %v1186
    %1722 = vmatpush1.bf16.msra.mxu0 %v1185
    %1723 = vmatprep.subr.bf16.mxu0 %v1190
    %1724 = vmatpush1.bf16.msra.mxu0 %v1189
    %1725 = vmatprep.mubr.bf16.mxu0 %v79
    %1726 = vmatmul.mubr.bf16.gmra.mrb[0].mxu0 %v78
    %v1727 = vpop.f32.mrb[0].mxu0
    %v1728 = vadd.f32 %v1687, %v1727
    %v1729 = vpop.f32.mrb[0].mxu0
    %v1730 = vadd.f32 %v1689, %v1729
    %v1731 = vpop.f32.mrb[0].mxu0
    %v1732 = vpop.f32.mrb[0].mxu0
    %1733 = vdwg.mxu0
    %1734 = vmatprep.subr.bf16.mxu0 %v1194
    %1735 = vmatpush1.bf16.msra.mxu0 %v1193
    %1736 = vmatprep.subr.bf16.mxu0 %v1198
    %1737 = vmatpush1.bf16.msra.mxu0 %v1197
    %1738 = vmatprep.subr.bf16.mxu0 %v1202
    %1739 = vmatpush1.bf16.msra.mxu0 %v1201
    %1740 = vmatprep.subr.bf16.mxu0 %v1206
    %1741 = vmatpush1.bf16.msra.mxu0 %v1205
    %1742 = vmatprep.subr.bf16.mxu0 %v1210
    %1743 = vmatpush1.bf16.msra.mxu0 %v1209
    %1744 = vmatprep.subr.bf16.mxu0 %v1214
    %1745 = vmatpush1.bf16.msra.mxu0 %v1213
    %1746 = vmatprep.subr.bf16.mxu0 %v1218
    %1747 = vmatpush1.bf16.msra.mxu0 %v1217
    %1748 = vmatprep.subr.bf16.mxu0 %v1222
    %1749 = vmatpush1.bf16.msra.mxu0 %v1221
    %1750 = vmatprep.subr.bf16.mxu0 0
    %1751 = vmatpush1.bf16.msra.mxu0 0
    %1752 = vmatprep.subr.bf16.mxu0 0
    %1753 = vmatpush1.bf16.msra.mxu0 0
    %1754 = vmatprep.subr.bf16.mxu0 0
    %1755 = vmatpush1.bf16.msra.mxu0 0
    %1756 = vmatprep.subr.bf16.mxu0 0
    %1757 = vmatpush1.bf16.msra.mxu0 0
    %1758 = vmatprep.subr.bf16.mxu0 0
    %1759 = vmatpush1.bf16.msra.mxu0 0
    %1760 = vmatprep.subr.bf16.mxu0 0
    %1761 = vmatpush1.bf16.msra.mxu0 0
    %1762 = vmatprep.subr.bf16.mxu0 0
    %1763 = vmatpush1.bf16.msra.mxu0 0
    %1764 = vmatprep.subr.bf16.mxu0 0
    %1765 = vmatpush1.bf16.msra.mxu0 0
    %1766 = vmatprep.mubr.bf16.mxu0 0
    %1767 = vmatmul.mubr.bf16.gmra.mrb[0].mxu0 %v80
    %v1768 = vpop.f32.mrb[0].mxu0
    %v1769 = vadd.f32 %v1728, %v1768
    %v1770 = vpop.f32.mrb[0].mxu0
    %v1771 = vadd.f32 %v1730, %v1770
    %v1772 = vpop.f32.mrb[0].mxu0
    %v1773 = vpop.f32.mrb[0].mxu0
    %1774 = vdwg.mxu0
    %v1775 = vmax.f32 %v1605, 0.0
    %v1776 = vmax.f32 %v1607, 0.0
    %v1777 = vmax.f32 %v1769, 0.0
    %v1778 = vmax.f32 %v1771, 0.0
    %v1779 = vpack.c.bf16 %v1775, %v1775
    %v1780 = vpack.c.bf16 %v1776, %v1776
    %v1781 = vpack.c.bf16 %v1777, %v1777
    %v1782 = vpack.c.bf16 %v1778, %v1778
    %v1783 = vld [vmem:[%s4] sm:$0xf]
    %v1784 = vld [vmem:[%s4 + $0x4] sm:$0xf]
    %v1785 = vld [vmem:[%s4 + $0x8] sm:$0xf]
    %v1786 = vld [vmem:[%s4 + $0xc] sm:$0xf]
    %v1787 = vld [vmem:[%s4 + $0x10] sm:$0xf]
    %v1788 = vld [vmem:[%s4 + $0x14] sm:$0xf]
    %v1789 = vld [vmem:[%s4 + $0x18] sm:$0xf]
    %v1790 = vld [vmem:[%s4 + $0x1c] sm:$0xf]
    %v1791 = vld [vmem:[%s4 + $0x20] sm:$0xf]
    %v1792 = vld [vmem:[%s4 + $0x24] sm:$0xf]
    %v1793 = vld [vmem:[%s4 + $0x28] sm:$0xf]
    %v1794 = vld [vmem:[%s4 + $0x2c] sm:$0xf]
    %v1795 = vld [vmem:[%s4 + $0x30] sm:$0xf]
    %v1796 = vld [vmem:[%s4 + $0x34] sm:$0xf]
    %v1797 = vld [vmem:[%s4 + $0x38] sm:$0xf]
    %v1798 = vld [vmem:[%s4 + $0x3c] sm:$0xf]
    %v1799 = vld [vmem:[%s4 + $0x40] sm:$0xf]
    %v1800 = vld [vmem:[%s4 + $0x44] sm:$0xf]
    %v1801 = vld [vmem:[%s4 + $0x48] sm:$0xf]
    %v1802 = vld [vmem:[%s4 + $0x4c] sm:$0xf]
    %v1803 = vld [vmem:[%s4 + $0x50] sm:$0xf]
    %v1804 = vld [vmem:[%s4 + $0x54] sm:$0xf]
    %v1805 = vld [vmem:[%s4 + $0x58] sm:$0xf]
    %v1806 = vld [vmem:[%s4 + $0x5c] sm:$0xf]
    %v1807 = vld [vmem:[%s4 + $0x60] sm:$0xf]
    %v1808 = vld [vmem:[%s4 + $0x64] sm:$0xf]
    %v1809 = vld [vmem:[%s4 + $0x68] sm:$0xf]
    %v1810 = vld [vmem:[%s4 + $0x6c] sm:$0xf]
    %v1811 = vld [vmem:[%s4 + $0x70] sm:$0xf]
    %v1812 = vld [vmem:[%s4 + $0x74] sm:$0xf]
    %v1813 = vld [vmem:[%s4 + $0x78] sm:$0xf]
    %v1814 = vld [vmem:[%s4 + $0x7c] sm:$0xf]
    %v1815 = vld [vmem:[%s4 + $0x80] sm:$0xf]
    %v1816 = vld [vmem:[%s4 + $0x84] sm:$0xf]
    %v1817 = vld [vmem:[%s4 + $0x88] sm:$0xf]
    %v1818 = vld [vmem:[%s4 + $0x8c] sm:$0xf]
    %v1819 = vld [vmem:[%s4 + $0x90] sm:$0xf]
    %v1820 = vld [vmem:[%s4 + $0x94] sm:$0xf]
    %v1821 = vld [vmem:[%s4 + $0x98] sm:$0xf]
    %v1822 = vld [vmem:[%s4 + $0x9c] sm:$0xf]
    %v1823 = vld [vmem:[%s4 + $0xa0] sm:$0xf]
    %v1824 = vld [vmem:[%s4 + $0xa4] sm:$0xf]
    %v1825 = vld [vmem:[%s4 + $0xa8] sm:$0xf]
    %v1826 = vld [vmem:[%s4 + $0xac] sm:$0xf]
    %v1827 = vld [vmem:[%s4 + $0xb0] sm:$0xf]
    %v1828 = vld [vmem:[%s4 + $0xb4] sm:$0xf]
    %v1829 = vld [vmem:[%s4 + $0xb8] sm:$0xf]
    %v1830 = vld [vmem:[%s4 + $0xbc] sm:$0xf]
    %v1831 = vld [vmem:[%s4 + $0xc0] sm:$0xf]
    %v1832 = vld [vmem:[%s4 + $0xc4] sm:$0xf]
    %v1833 = vld [vmem:[%s4 + $0xc8] sm:$0xf]
    %v1834 = vld [vmem:[%s4 + $0xcc] sm:$0xf]
    %v1835 = vld [vmem:[%s4 + $0xd0] sm:$0xf]
    %v1836 = vld [vmem:[%s4 + $0xd4] sm:$0xf]
    %v1837 = vld [vmem:[%s4 + $0xd8] sm:$0xf]
    %v1838 = vld [vmem:[%s4 + $0xdc] sm:$0xf]
    %v1839 = vld [vmem:[%s4 + $0xe0] sm:$0xf]
    %v1840 = vld [vmem:[%s4 + $0xe4] sm:$0xf]
    %v1841 = vld [vmem:[%s4 + $0xe8] sm:$0xf]
    %v1842 = vld [vmem:[%s4 + $0xec] sm:$0xf]
    %v1843 = vld [vmem:[%s4 + $0xf0] sm:$0xf]
    %v1844 = vld [vmem:[%s4 + $0xf4] sm:$0xf]
    %v1845 = vld [vmem:[%s4 + $0xf8] sm:$0xf]
    %v1846 = vld [vmem:[%s4 + $0xfc] sm:$0xf]
    %v1847 = vld [vmem:[%s5] sm:$0x1]
    %v1849 = vlaneseq
    %v1850 = vshrl.u32 %v1849, 7
    %v1851 = vsub.s32 0, %v1850
    %v1852 = vrot.slane %v1847, %v1851
    %v1918 = vunpack.c.l.b16 %v1783
    %v1919 = vunpack.c.l.b16 %v1784
    %v1920 = vunpack.c.l.b16 %v1785
    %v1921 = vunpack.c.l.b16 %v1786
    %v1922 = vunpack.c.l.b16 %v1787
    %v1923 = vunpack.c.l.b16 %v1788
    %v1924 = vunpack.c.l.b16 %v1789
    %v1925 = vunpack.c.l.b16 %v1790
    %v1926 = vunpack.c.l.b16 %v1791
    %v1927 = vunpack.c.l.b16 %v1792
    %v1928 = vunpack.c.l.b16 %v1793
    %v1929 = vunpack.c.l.b16 %v1794
    %v1930 = vunpack.c.l.b16 %v1795
    %v1931 = vunpack.c.l.b16 %v1796
    %v1932 = vunpack.c.l.b16 %v1797
    %v1933 = vunpack.c.l.b16 %v1798
    %v1934 = vunpack.c.l.b16 %v1799
    %v1935 = vunpack.c.l.b16 %v1800
    %v1936 = vunpack.c.l.b16 %v1801
    %v1937 = vunpack.c.l.b16 %v1802
    %v1938 = vunpack.c.l.b16 %v1803
    %v1939 = vunpack.c.l.b16 %v1804
    %v1940 = vunpack.c.l.b16 %v1805
    %v1941 = vunpack.c.l.b16 %v1806
    %v1942 = vunpack.c.l.b16 %v1807
    %v1943 = vunpack.c.l.b16 %v1808
    %v1944 = vunpack.c.l.b16 %v1809
    %v1945 = vunpack.c.l.b16 %v1810
    %v1946 = vunpack.c.l.b16 %v1811
    %v1947 = vunpack.c.l.b16 %v1812
    %v1948 = vunpack.c.l.b16 %v1813
    %v1949 = vunpack.c.l.b16 %v1814
    %v1950 = vunpack.c.l.b16 %v1815
    %v1951 = vunpack.c.l.b16 %v1816
    %v1952 = vunpack.c.l.b16 %v1817
    %v1953 = vunpack.c.l.b16 %v1818
    %v1954 = vunpack.c.l.b16 %v1819
    %v1955 = vunpack.c.l.b16 %v1820
    %v1956 = vunpack.c.l.b16 %v1821
    %v1957 = vunpack.c.l.b16 %v1822
    %v1958 = vunpack.c.l.b16 %v1823
    %v1959 = vunpack.c.l.b16 %v1824
    %v1960 = vunpack.c.l.b16 %v1825
    %v1961 = vunpack.c.l.b16 %v1826
    %v1962 = vunpack.c.l.b16 %v1827
    %v1963 = vunpack.c.l.b16 %v1828
    %v1964 = vunpack.c.l.b16 %v1829
    %v1965 = vunpack.c.l.b16 %v1830
    %v1966 = vunpack.c.l.b16 %v1831
    %v1967 = vunpack.c.l.b16 %v1832
    %v1968 = vunpack.c.l.b16 %v1833
    %v1969 = vunpack.c.l.b16 %v1834
    %v1970 = vunpack.c.l.b16 %v1835
    %v1971 = vunpack.c.l.b16 %v1836
    %v1972 = vunpack.c.l.b16 %v1837
    %v1973 = vunpack.c.l.b16 %v1838
    %v1974 = vunpack.c.l.b16 %v1839
    %v1975 = vunpack.c.l.b16 %v1840
    %v1976 = vunpack.c.l.b16 %v1841
    %v1977 = vunpack.c.l.b16 %v1842
    %v1978 = vunpack.c.l.b16 %v1843
    %v1979 = vunpack.c.l.b16 %v1844
    %v1980 = vunpack.c.l.b16 %v1845
    %v1981 = vunpack.c.l.b16 %v1846
    %v1982 = vpack.c.b16 %v1919, %v1918
    %v1983 = vpack.c.b16 %v1921, %v1920
    %v1984 = vpack.c.b16 %v1923, %v1922
    %v1985 = vpack.c.b16 %v1925, %v1924
    %v1986 = vpack.c.b16 %v1927, %v1926
    %v1987 = vpack.c.b16 %v1929, %v1928
    %v1988 = vpack.c.b16 %v1931, %v1930
    %v1989 = vpack.c.b16 %v1933, %v1932
    %v1990 = vpack.c.b16 %v1935, %v1934
    %v1991 = vpack.c.b16 %v1937, %v1936
    %v1992 = vpack.c.b16 %v1939, %v1938
    %v1993 = vpack.c.b16 %v1941, %v1940
    %v1994 = vpack.c.b16 %v1943, %v1942
    %v1995 = vpack.c.b16 %v1945, %v1944
    %v1996 = vpack.c.b16 %v1947, %v1946
    %v1997 = vpack.c.b16 %v1949, %v1948
    %v1998 = vpack.c.b16 %v1951, %v1950
    %v1999 = vpack.c.b16 %v1953, %v1952
    %v2000 = vpack.c.b16 %v1955, %v1954
    %v2001 = vpack.c.b16 %v1957, %v1956
    %v2002 = vpack.c.b16 %v1959, %v1958
    %v2003 = vpack.c.b16 %v1961, %v1960
    %v2004 = vpack.c.b16 %v1963, %v1962
    %v2005 = vpack.c.b16 %v1965, %v1964
    %v2006 = vpack.c.b16 %v1967, %v1966
    %v2007 = vpack.c.b16 %v1969, %v1968
    %v2008 = vpack.c.b16 %v1971, %v1970
    %v2009 = vpack.c.b16 %v1973, %v1972
    %v2010 = vpack.c.b16 %v1975, %v1974
    %v2011 = vpack.c.b16 %v1977, %v1976
    %v2012 = vpack.c.b16 %v1979, %v1978
    %v2013 = vpack.c.b16 %v1981, %v1980
    %2046 = vmatprep.subr.bf16.mxu0 0
    %2047 = vmatpush1.bf16.msra.mxu0 %v1982
    %2048 = vmatprep.subr.bf16.mxu0 0
    %2049 = vmatpush1.bf16.msra.mxu0 %v1983
    %2050 = vmatprep.subr.bf16.mxu0 0
    %2051 = vmatpush1.bf16.msra.mxu0 %v1984
    %2052 = vmatprep.subr.bf16.mxu0 0
    %2053 = vmatpush1.bf16.msra.mxu0 %v1985
    %2054 = vmatprep.subr.bf16.mxu0 0
    %2055 = vmatpush1.bf16.msra.mxu0 %v1986
    %2056 = vmatprep.subr.bf16.mxu0 0
    %2057 = vmatpush1.bf16.msra.mxu0 %v1987
    %2058 = vmatprep.subr.bf16.mxu0 0
    %2059 = vmatpush1.bf16.msra.mxu0 %v1988
    %2060 = vmatprep.subr.bf16.mxu0 0
    %2061 = vmatpush1.bf16.msra.mxu0 %v1989
    %2062 = vmatprep.subr.bf16.mxu0 0
    %2063 = vmatpush1.bf16.msra.mxu0 %v1990
    %2064 = vmatprep.subr.bf16.mxu0 0
    %2065 = vmatpush1.bf16.msra.mxu0 %v1991
    %2066 = vmatprep.subr.bf16.mxu0 0
    %2067 = vmatpush1.bf16.msra.mxu0 %v1992
    %2068 = vmatprep.subr.bf16.mxu0 0
    %2069 = vmatpush1.bf16.msra.mxu0 %v1993
    %2070 = vmatprep.subr.bf16.mxu0 0
    %2071 = vmatpush1.bf16.msra.mxu0 %v1994
    %2072 = vmatprep.subr.bf16.mxu0 0
    %2073 = vmatpush1.bf16.msra.mxu0 %v1995
    %2074 = vmatprep.subr.bf16.mxu0 0
    %2075 = vmatpush1.bf16.msra.mxu0 %v1996
    %2076 = vmatprep.subr.bf16.mxu0 0
    %2077 = vmatpush1.bf16.msra.mxu0 %v1997
    %2078 = vmatprep.mubr.bf16.mxu0 %v1780
    %2079 = vmatmul.mubr.bf16.gmra.mrb[0].mxu0 %v1779
    %v2080 = vpop.f32.mrb[0].mxu0
    %v2081 = vadd.f32 %v1852, %v2080
    %v2082 = vpop.f32.mrb[0].mxu0
    %v2083 = vpop.f32.mrb[0].mxu0
    %v2084 = vpop.f32.mrb[0].mxu0
    %2085 = vdwg.mxu0
    %2086 = vmatprep.subr.bf16.mxu0 0
    %2087 = vmatpush1.bf16.msra.mxu0 %v1998
    %2088 = vmatprep.subr.bf16.mxu0 0
    %2089 = vmatpush1.bf16.msra.mxu0 %v1999
    %2090 = vmatprep.subr.bf16.mxu0 0
    %2091 = vmatpush1.bf16.msra.mxu0 %v2000
    %2092 = vmatprep.subr.bf16.mxu0 0
    %2093 = vmatpush1.bf16.msra.mxu0 %v2001
    %2094 = vmatprep.subr.bf16.mxu0 0
    %2095 = vmatpush1.bf16.msra.mxu0 %v2002
    %2096 = vmatprep.subr.bf16.mxu0 0
    %2097 = vmatpush1.bf16.msra.mxu0 %v2003
    %2098 = vmatprep.subr.bf16.mxu0 0
    %2099 = vmatpush1.bf16.msra.mxu0 %v2004
    %2100 = vmatprep.subr.bf16.mxu0 0
    %2101 = vmatpush1.bf16.msra.mxu0 %v2005
    %2102 = vmatprep.subr.bf16.mxu0 0
    %2103 = vmatpush1.bf16.msra.mxu0 %v2006
    %2104 = vmatprep.subr.bf16.mxu0 0
    %2105 = vmatpush1.bf16.msra.mxu0 %v2007
    %2106 = vmatprep.subr.bf16.mxu0 0
    %2107 = vmatpush1.bf16.msra.mxu0 %v2008
    %2108 = vmatprep.subr.bf16.mxu0 0
    %2109 = vmatpush1.bf16.msra.mxu0 %v2009
    %2110 = vmatprep.subr.bf16.mxu0 0
    %2111 = vmatpush1.bf16.msra.mxu0 %v2010
    %2112 = vmatprep.subr.bf16.mxu0 0
    %2113 = vmatpush1.bf16.msra.mxu0 %v2011
    %2114 = vmatprep.subr.bf16.mxu0 0
    %2115 = vmatpush1.bf16.msra.mxu0 %v2012
    %2116 = vmatprep.subr.bf16.mxu0 0
    %2117 = vmatpush1.bf16.msra.mxu0 %v2013
    %2118 = vmatprep.mubr.bf16.mxu0 %v1782
    %2119 = vmatmul.mubr.bf16.gmra.mrb[0].mxu0 %v1781
    %v2120 = vpop.f32.mrb[0].mxu0
    %v2121 = vadd.f32 %v2081, %v2120
    %v2122 = vpop.f32.mrb[0].mxu0
    %v2123 = vpop.f32.mrb[0].mxu0
    %v2124 = vpop.f32.mrb[0].mxu0
    %2125 = vdwg.mxu0
    %2126 = vst [vmem:[%s11] sm:$0xff] %v2121
    %v2127 = vld [vmem:[%s1] sm:$0xff]
    %v2128 = vmul.f32 %v2121, 0.5
    %v2129 = vmul.f32 %v2128, 1.442695
    %v2130 = vpow.pop %v2129
    %2132 = vrot.lane.b32.xlu0 %v2130, 96
    %v2133 = vpop.permute.xlu0 %2132
    %v2135 = vmul.f32 %v2127, %v2133
    %v2136 = vadd.f32 %v2121, %v2135
    %v2137 = vpack.c.bf16 %v2136, %v2136
    %v2138 = vld [vmem:[%s6] sm:$0xff]
    %v2139 = vld [vmem:[%s6 + $0x8] sm:$0xff]
    %v2140 = vld [vmem:[%s6 + $0x10] sm:$0xff]
    %v2141 = vld [vmem:[%s6 + $0x18] sm:$0xff]
    %v2142 = vld [vmem:[%s6 + $0x20] sm:$0xff]
    %v2143 = vld [vmem:[%s6 + $0x28] sm:$0xff]
    %v2144 = vld [vmem:[%s6 + $0x30] sm:$0xff]
    %v2145 = vld [vmem:[%s6 + $0x38] sm:$0xff]
    %v2146 = vld [vmem:[%s7] sm:$0xf]
    %v2148 = vlaneseq
    %v2149 = vshrl.u32 %v2148, 7
    %v2150 = vsub.s32 0, %v2149
    %v2151 = vrot.slane %v2146, %v2150
    %v2152 = vlaneseq
    %v2153 = vshrl.u32 %v2152, 7
    %v2154 = vsub.s32 1, %v2153
    %v2155 = vrot.slane %v2146, %v2154
    %v2156 = vlaneseq
    %v2157 = vshrl.u32 %v2156, 7
    %v2158 = vsub.s32 2, %v2157
    %v2159 = vrot.slane %v2146, %v2158
    %v2160 = vlaneseq
    %v2161 = vshrl.u32 %v2160, 7
    %v2162 = vsub.s32 3, %v2161
    %v2163 = vrot.slane %v2146, %v2162
    %v2176 = vunpack.c.l.b16 %v2138
    %v2177 = vunpack.c.h.b16 %v2138
    %v2178 = vunpack.c.l.b16 %v2139
    %v2179 = vunpack.c.h.b16 %v2139
    %v2180 = vunpack.c.l.b16 %v2140
    %v2181 = vunpack.c.h.b16 %v2140
    %v2182 = vunpack.c.l.b16 %v2141
    %v2183 = vunpack.c.h.b16 %v2141
    %v2184 = vunpack.c.l.b16 %v2142
    %v2185 = vunpack.c.h.b16 %v2142
    %v2186 = vunpack.c.l.b16 %v2143
    %v2187 = vunpack.c.h.b16 %v2143
    %v2188 = vunpack.c.l.b16 %v2144
    %v2189 = vunpack.c.h.b16 %v2144
    %v2190 = vunpack.c.l.b16 %v2145
    %v2191 = vunpack.c.h.b16 %v2145
    %v2192 = vpack.c.b16 %v2180, %v2176
    %v2193 = vpack.c.b16 %v2181, %v2177
    %v2194 = vpack.c.b16 %v2182, %v2178
    %v2195 = vpack.c.b16 %v2183, %v2179
    %v2196 = vpack.c.b16 %v2188, %v2184
    %v2197 = vpack.c.b16 %v2189, %v2185
    %v2198 = vpack.c.b16 %v2190, %v2186
    %v2199 = vpack.c.b16 %v2191, %v2187
    %vm2208 = vcmask 261120
    %v2210 = vsel %vm2208, %v2137, 0
    %2212 = vmatprep.subr.bf16.mxu0 %v2193
    %2213 = vmatpush1.bf16.msra.mxu0 %v2192
    %2214 = vmatprep.subr.bf16.mxu0 %v2197
    %2215 = vmatpush1.bf16.msra.mxu0 %v2196
    %2216 = vmatprep.subr.bf16.mxu0 0
    %2217 = vmatpush1.bf16.msra.mxu0 0
    %2218 = vmatprep.subr.bf16.mxu0 0
    %2219 = vmatpush1.bf16.msra.mxu0 0
    %2220 = vmatprep.subr.bf16.mxu0 0
    %2221 = vmatpush1.bf16.msra.mxu0 0
    %2222 = vmatprep.subr.bf16.mxu0 0
    %2223 = vmatpush1.bf16.msra.mxu0 0
    %2224 = vmatprep.subr.bf16.mxu0 0
    %2225 = vmatpush1.bf16.msra.mxu0 0
    %2226 = vmatprep.subr.bf16.mxu0 0
    %2227 = vmatpush1.bf16.msra.mxu0 0
    %2228 = vmatprep.subr.bf16.mxu0 0
    %2229 = vmatpush1.bf16.msra.mxu0 0
    %2230 = vmatprep.subr.bf16.mxu0 0
    %2231 = vmatpush1.bf16.msra.mxu0 0
    %2232 = vmatprep.subr.bf16.mxu0 0
    %2233 = vmatpush1.bf16.msra.mxu0 0
    %2234 = vmatprep.subr.bf16.mxu0 0
    %2235 = vmatpush1.bf16.msra.mxu0 0
    %2236 = vmatprep.subr.bf16.mxu0 0
    %2237 = vmatpush1.bf16.msra.mxu0 0
    %2238 = vmatprep.subr.bf16.mxu0 0
    %2239 = vmatpush1.bf16.msra.mxu0 0
    %2240 = vmatprep.subr.bf16.mxu0 0
    %2241 = vmatpush1.bf16.msra.mxu0 0
    %2242 = vmatprep.subr.bf16.mxu0 0
    %2243 = vmatpush1.bf16.msra.mxu0 0
    %2244 = vmatprep.mubr.bf16.mxu0 0
    %2245 = vmatmul.mubr.bf16.gmra.mrb[0].mxu0 %v2210
    %v2246 = vpop.f32.mrb[0].mxu0
    %v2247 = vadd.f32 %v2151, %v2246
    %v2248 = vpop.f32.mrb[0].mxu0
    %v2249 = vadd.f32 %v2155, %v2248
    %v2250 = vpop.f32.mrb[0].mxu0
    %v2251 = vpop.f32.mrb[0].mxu0
    %2252 = vdwg.mxu0
    %2253 = vmatprep.subr.bf16.mxu0 %v2195
    %2254 = vmatpush1.bf16.msra.mxu0 %v2194
    %2255 = vmatprep.subr.bf16.mxu0 %v2199
    %2256 = vmatpush1.bf16.msra.mxu0 %v2198
    %2257 = vmatprep.subr.bf16.mxu0 0
    %2258 = vmatpush1.bf16.msra.mxu0 0
    %2259 = vmatprep.subr.bf16.mxu0 0
    %2260 = vmatpush1.bf16.msra.mxu0 0
    %2261 = vmatprep.subr.bf16.mxu0 0
    %2262 = vmatpush1.bf16.msra.mxu0 0
    %2263 = vmatprep.subr.bf16.mxu0 0
    %2264 = vmatpush1.bf16.msra.mxu0 0
    %2265 = vmatprep.subr.bf16.mxu0 0
    %2266 = vmatpush1.bf16.msra.mxu0 0
    %2267 = vmatprep.subr.bf16.mxu0 0
    %2268 = vmatpush1.bf16.msra.mxu0 0
    %2269 = vmatprep.subr.bf16.mxu0 0
    %2270 = vmatpush1.bf16.msra.mxu0 0
    %2271 = vmatprep.subr.bf16.mxu0 0
    %2272 = vmatpush1.bf16.msra.mxu0 0
    %2273 = vmatprep.subr.bf16.mxu0 0
    %2274 = vmatpush1.bf16.msra.mxu0 0
    %2275 = vmatprep.subr.bf16.mxu0 0
    %2276 = vmatpush1.bf16.msra.mxu0 0
    %2277 = vmatprep.subr.bf16.mxu0 0
    %2278 = vmatpush1.bf16.msra.mxu0 0
    %2279 = vmatprep.subr.bf16.mxu0 0
    %2280 = vmatpush1.bf16.msra.mxu0 0
    %2281 = vmatprep.subr.bf16.mxu0 0
    %2282 = vmatpush1.bf16.msra.mxu0 0
    %2283 = vmatprep.subr.bf16.mxu0 0
    %2284 = vmatpush1.bf16.msra.mxu0 0
    %2285 = vmatprep.mubr.bf16.mxu0 0
    %2286 = vmatmul.mubr.bf16.gmra.mrb[0].mxu0 %v2210
    %v2287 = vpop.f32.mrb[0].mxu0
    %v2288 = vadd.f32 %v2159, %v2287
    %v2289 = vpop.f32.mrb[0].mxu0
    %v2290 = vadd.f32 %v2163, %v2289
    %v2291 = vpop.f32.mrb[0].mxu0
    %v2292 = vpop.f32.mrb[0].mxu0
    %2293 = vdwg.mxu0
    %v2294 = vmax.f32 %v2247, 0.0
    %v2295 = vmax.f32 %v2249, 0.0
    %v2296 = vmax.f32 %v2288, 0.0
    %v2297 = vmax.f32 %v2290, 0.0
    %v2298 = vpack.c.bf16 %v2294, %v2294
    %v2299 = vpack.c.bf16 %v2295, %v2295
    %v2300 = vpack.c.bf16 %v2296, %v2296
    %v2301 = vpack.c.bf16 %v2297, %v2297
    %v2302 = vld [vmem:[#allocation5] sm:$0xff]
    %v2303 = vld [vmem:[#allocation5 + $0x8] sm:$0xff]
    %v2304 = vld [vmem:[#allocation5 + $0x10] sm:$0xff]
    %v2305 = vld [vmem:[#allocation5 + $0x18] sm:$0xf]
    %v2306 = vld [vmem:[#allocation5 + $0x1c] sm:$0xff]
    %v2307 = vld [vmem:[#allocation5 + $0x24] sm:$0xff]
    %v2308 = vld [vmem:[#allocation5 + $0x2c] sm:$0xff]
    %v2309 = vld [vmem:[#allocation5 + $0x34] sm:$0xf]
    %v2310 = vld [vmem:[#allocation5 + $0x38] sm:$0xff]
    %v2311 = vld [vmem:[#allocation5 + $0x40] sm:$0xff]
    %v2312 = vld [vmem:[#allocation5 + $0x48] sm:$0xff]
    %v2313 = vld [vmem:[#allocation5 + $0x50] sm:$0xf]
    %v2314 = vld [vmem:[#allocation5 + $0x54] sm:$0xff]
    %v2315 = vld [vmem:[#allocation5 + $0x5c] sm:$0xff]
    %v2316 = vld [vmem:[#allocation5 + $0x64] sm:$0xff]
    %v2317 = vld [vmem:[#allocation5 + $0x6c] sm:$0xf]
    %v2318 = vld [vmem:[#allocation5 + $0x70] sm:$0xff]
    %v2319 = vld [vmem:[#allocation5 + $0x78] sm:$0xff]
    %v2320 = vld [vmem:[#allocation5 + $0x80] sm:$0xff]
    %v2321 = vld [vmem:[#allocation5 + $0x88] sm:$0xf]
    %v2322 = vld [vmem:[#allocation5 + $0x8c] sm:$0xff]
    %v2323 = vld [vmem:[#allocation5 + $0x94] sm:$0xff]
    %v2324 = vld [vmem:[#allocation5 + $0x9c] sm:$0xff]
    %v2325 = vld [vmem:[#allocation5 + $0xa4] sm:$0xf]
    %v2326 = vld [vmem:[#allocation5 + $0xa8] sm:$0xff]
    %v2327 = vld [vmem:[#allocation5 + $0xb0] sm:$0xff]
    %v2328 = vld [vmem:[#allocation5 + $0xb8] sm:$0xff]
    %v2329 = vld [vmem:[#allocation5 + $0xc0] sm:$0xf]
    %v2330 = vld [vmem:[#allocation5 + $0xc4] sm:$0xff]
    %v2331 = vld [vmem:[#allocation5 + $0xcc] sm:$0xff]
    %v2332 = vld [vmem:[#allocation5 + $0xd4] sm:$0xff]
    %v2333 = vld [vmem:[#allocation5 + $0xdc] sm:$0xf]
    %v2334 = vld [vmem:[#allocation5 + $0xe0] sm:$0xff]
    %v2335 = vld [vmem:[#allocation5 + $0xe8] sm:$0xff]
    %v2336 = vld [vmem:[#allocation5 + $0xf0] sm:$0xff]
    %v2337 = vld [vmem:[#allocation5 + $0xf8] sm:$0xf]
    %v2338 = vld [vmem:[#allocation5 + $0xfc] sm:$0xff]
    %v2339 = vld [vmem:[#allocation5 + $0x104] sm:$0xff]
    %v2340 = vld [vmem:[#allocation5 + $0x10c] sm:$0xff]
    %v2341 = vld [vmem:[#allocation5 + $0x114] sm:$0xf]
    %v2342 = vld [vmem:[#allocation5 + $0x118] sm:$0xff]
    %v2343 = vld [vmem:[#allocation5 + $0x120] sm:$0xff]
    %v2344 = vld [vmem:[#allocation5 + $0x128] sm:$0xff]
    %v2345 = vld [vmem:[#allocation5 + $0x130] sm:$0xf]
    %v2346 = vld [vmem:[#allocation5 + $0x134] sm:$0xff]
    %v2347 = vld [vmem:[#allocation5 + $0x13c] sm:$0xff]
    %v2348 = vld [vmem:[#allocation5 + $0x144] sm:$0xff]
    %v2349 = vld [vmem:[#allocation5 + $0x14c] sm:$0xf]
    %v2350 = vld [vmem:[#allocation5 + $0x150] sm:$0xff]
    %v2351 = vld [vmem:[#allocation5 + $0x158] sm:$0xff]
    %v2352 = vld [vmem:[#allocation5 + $0x160] sm:$0xff]
    %v2353 = vld [vmem:[#allocation5 + $0x168] sm:$0xf]
    %v2354 = vld [vmem:[#allocation5 + $0x16c] sm:$0xff]
    %v2355 = vld [vmem:[#allocation5 + $0x174] sm:$0xff]
    %v2356 = vld [vmem:[#allocation5 + $0x17c] sm:$0xff]
    %v2357 = vld [vmem:[#allocation5 + $0x184] sm:$0xf]
    %v2358 = vld [vmem:[#allocation5 + $0x188] sm:$0xff]
    %v2359 = vld [vmem:[#allocation5 + $0x190] sm:$0xff]
    %v2360 = vld [vmem:[#allocation5 + $0x198] sm:$0xff]
    %v2361 = vld [vmem:[#allocation5 + $0x1a0] sm:$0xf]
    %v2362 = vld [vmem:[#allocation5 + $0x1a4] sm:$0xff]
    %v2363 = vld [vmem:[#allocation5 + $0x1ac] sm:$0xff]
    %v2364 = vld [vmem:[#allocation5 + $0x1b4] sm:$0xff]
    %v2365 = vld [vmem:[#allocation5 + $0x1bc] sm:$0xf]
    %v2366 = vld [vmem:[#allocation5 + $0x1c0] sm:$0xff]
    %v2367 = vld [vmem:[#allocation5 + $0x1c8] sm:$0xff]
    %v2368 = vld [vmem:[#allocation5 + $0x1d0] sm:$0xff]
    %v2369 = vld [vmem:[#allocation5 + $0x1d8] sm:$0xf]
    %v2370 = vld [vmem:[#allocation5 + $0x1dc] sm:$0xff]
    %v2371 = vld [vmem:[#allocation5 + $0x1e4] sm:$0xff]
    %v2372 = vld [vmem:[#allocation5 + $0x1ec] sm:$0xff]
    %v2373 = vld [vmem:[#allocation5 + $0x1f4] sm:$0xf]
    %v2374 = vld [vmem:[#allocation5 + $0x1f8] sm:$0xff]
    %v2375 = vld [vmem:[#allocation5 + $0x200] sm:$0xff]
    %v2376 = vld [vmem:[#allocation5 + $0x208] sm:$0xff]
    %v2377 = vld [vmem:[#allocation5 + $0x210] sm:$0xf]
    %v2378 = vld [vmem:[#allocation5 + $0x214] sm:$0xff]
    %v2379 = vld [vmem:[#allocation5 + $0x21c] sm:$0xff]
    %v2380 = vld [vmem:[#allocation5 + $0x224] sm:$0xff]
    %v2381 = vld [vmem:[#allocation5 + $0x22c] sm:$0xf]
    %v2382 = vld [vmem:[#allocation5 + $0x230] sm:$0xff]
    %v2383 = vld [vmem:[#allocation5 + $0x238] sm:$0xff]
    %v2384 = vld [vmem:[#allocation5 + $0x240] sm:$0xff]
    %v2385 = vld [vmem:[#allocation5 + $0x248] sm:$0xf]
    %v2386 = vld [vmem:[#allocation5 + $0x24c] sm:$0xff]
    %v2387 = vld [vmem:[#allocation5 + $0x254] sm:$0xff]
    %v2388 = vld [vmem:[#allocation5 + $0x25c] sm:$0xff]
    %v2389 = vld [vmem:[#allocation5 + $0x264] sm:$0xf]
    %v2390 = vld [vmem:[#allocation5 + $0x268] sm:$0xff]
    %v2391 = vld [vmem:[#allocation5 + $0x270] sm:$0xff]
    %v2392 = vld [vmem:[#allocation5 + $0x278] sm:$0xff]
    %v2393 = vld [vmem:[#allocation5 + $0x280] sm:$0xf]
    %v2394 = vld [vmem:[#allocation5 + $0x284] sm:$0xff]
    %v2395 = vld [vmem:[#allocation5 + $0x28c] sm:$0xff]
    %v2396 = vld [vmem:[#allocation5 + $0x294] sm:$0xff]
    %v2397 = vld [vmem:[#allocation5 + $0x29c] sm:$0xf]
    %v2398 = vld [vmem:[#allocation5 + $0x2a0] sm:$0xff]
    %v2399 = vld [vmem:[#allocation5 + $0x2a8] sm:$0xff]
    %v2400 = vld [vmem:[#allocation5 + $0x2b0] sm:$0xff]
    %v2401 = vld [vmem:[#allocation5 + $0x2b8] sm:$0xf]
    %v2402 = vld [vmem:[#allocation5 + $0x2bc] sm:$0xff]
    %v2403 = vld [vmem:[#allocation5 + $0x2c4] sm:$0xff]
    %v2404 = vld [vmem:[#allocation5 + $0x2cc] sm:$0xff]
    %v2405 = vld [vmem:[#allocation5 + $0x2d4] sm:$0xf]
    %v2406 = vld [vmem:[#allocation5 + $0x2d8] sm:$0xff]
    %v2407 = vld [vmem:[#allocation5 + $0x2e0] sm:$0xff]
    %v2408 = vld [vmem:[#allocation5 + $0x2e8] sm:$0xff]
    %v2409 = vld [vmem:[#allocation5 + $0x2f0] sm:$0xf]
    %v2410 = vld [vmem:[#allocation5 + $0x2f4] sm:$0xff]
    %v2411 = vld [vmem:[#allocation5 + $0x2fc] sm:$0xff]
    %v2412 = vld [vmem:[#allocation5 + $0x304] sm:$0xff]
    %v2413 = vld [vmem:[#allocation5 + $0x30c] sm:$0xf]
    %v2414 = vld [vmem:[#allocation5 + $0x310] sm:$0xff]
    %v2415 = vld [vmem:[#allocation5 + $0x318] sm:$0xff]
    %v2416 = vld [vmem:[#allocation5 + $0x320] sm:$0xff]
    %v2417 = vld [vmem:[#allocation5 + $0x328] sm:$0xf]
    %v2418 = vld [vmem:[#allocation5 + $0x32c] sm:$0xff]
    %v2419 = vld [vmem:[#allocation5 + $0x334] sm:$0xff]
    %v2420 = vld [vmem:[#allocation5 + $0x33c] sm:$0xff]
    %v2421 = vld [vmem:[#allocation5 + $0x344] sm:$0xf]
    %v2422 = vld [vmem:[#allocation5 + $0x348] sm:$0xff]
    %v2423 = vld [vmem:[#allocation5 + $0x350] sm:$0xff]
    %v2424 = vld [vmem:[#allocation5 + $0x358] sm:$0xff]
    %v2425 = vld [vmem:[#allocation5 + $0x360] sm:$0xf]
    %v2426 = vld [vmem:[#allocation5 + $0x364] sm:$0xff]
    %v2427 = vld [vmem:[#allocation5 + $0x36c] sm:$0xff]
    %v2428 = vld [vmem:[#allocation5 + $0x374] sm:$0xff]
    %v2429 = vld [vmem:[#allocation5 + $0x37c] sm:$0xf]
    %v2430 = vld [vmem:[#allocation5 + $0x380] sm:$0xff]
    %v2431 = vld [vmem:[#allocation5 + $0x388] sm:$0xff]
    %v2432 = vld [vmem:[#allocation5 + $0x390] sm:$0xff]
    %v2433 = vld [vmem:[#allocation5 + $0x398] sm:$0xf]
    %v2434 = vld [vmem:[#allocation5 + $0x39c] sm:$0xff]
    %v2435 = vld [vmem:[#allocation5 + $0x3a4] sm:$0xff]
    %v2436 = vld [vmem:[#allocation5 + $0x3ac] sm:$0xff]
    %v2437 = vld [vmem:[#allocation5 + $0x3b4] sm:$0xf]
    %v2438 = vld [vmem:[#allocation5 + $0x3b8] sm:$0xff]
    %v2439 = vld [vmem:[#allocation5 + $0x3c0] sm:$0xff]
    %v2440 = vld [vmem:[#allocation5 + $0x3c8] sm:$0xff]
    %v2441 = vld [vmem:[#allocation5 + $0x3d0] sm:$0xf]
    %v2442 = vld [vmem:[#allocation5 + $0x3d4] sm:$0xff]
    %v2443 = vld [vmem:[#allocation5 + $0x3dc] sm:$0xff]
    %v2444 = vld [vmem:[#allocation5 + $0x3e4] sm:$0xff]
    %v2445 = vld [vmem:[#allocation5 + $0x3ec] sm:$0xf]
    %v2446 = vld [vmem:[#allocation5 + $0x3f0] sm:$0xff]
    %v2447 = vld [vmem:[#allocation5 + $0x3f8] sm:$0xff]
    %v2448 = vld [vmem:[#allocation5 + $0x400] sm:$0xff]
    %v2449 = vld [vmem:[#allocation5 + $0x408] sm:$0xf]
    %v2450 = vld [vmem:[#allocation5 + $0x40c] sm:$0xff]
    %v2451 = vld [vmem:[#allocation5 + $0x414] sm:$0xff]
    %v2452 = vld [vmem:[#allocation5 + $0x41c] sm:$0xff]
    %v2453 = vld [vmem:[#allocation5 + $0x424] sm:$0xf]
    %v2454 = vld [vmem:[#allocation5 + $0x428] sm:$0xff]
    %v2455 = vld [vmem:[#allocation5 + $0x430] sm:$0xff]
    %v2456 = vld [vmem:[#allocation5 + $0x438] sm:$0xff]
    %v2457 = vld [vmem:[#allocation5 + $0x440] sm:$0xf]
    %v2458 = vld [vmem:[#allocation5 + $0x444] sm:$0xff]
    %v2459 = vld [vmem:[#allocation5 + $0x44c] sm:$0xff]
    %v2460 = vld [vmem:[#allocation5 + $0x454] sm:$0xff]
    %v2461 = vld [vmem:[#allocation5 + $0x45c] sm:$0xf]
    %v2462 = vld [vmem:[#allocation5 + $0x460] sm:$0xff]
    %v2463 = vld [vmem:[#allocation5 + $0x468] sm:$0xff]
    %v2464 = vld [vmem:[#allocation5 + $0x470] sm:$0xff]
    %v2465 = vld [vmem:[#allocation5 + $0x478] sm:$0xf]
    %v2466 = vld [vmem:[#allocation5 + $0x47c] sm:$0xff]
    %v2467 = vld [vmem:[#allocation5 + $0x484] sm:$0xff]
    %v2468 = vld [vmem:[#allocation5 + $0x48c] sm:$0xff]
    %v2469 = vld [vmem:[#allocation5 + $0x494] sm:$0xf]
    %v2470 = vld [vmem:[#allocation5 + $0x498] sm:$0xff]
    %v2471 = vld [vmem:[#allocation5 + $0x4a0] sm:$0xff]
    %v2472 = vld [vmem:[#allocation5 + $0x4a8] sm:$0xff]
    %v2473 = vld [vmem:[#allocation5 + $0x4b0] sm:$0xf]
    %v2474 = vld [vmem:[#allocation5 + $0x4b4] sm:$0xff]
    %v2475 = vld [vmem:[#allocation5 + $0x4bc] sm:$0xff]
    %v2476 = vld [vmem:[#allocation5 + $0x4c4] sm:$0xff]
    %v2477 = vld [vmem:[#allocation5 + $0x4cc] sm:$0xf]
    %v2478 = vld [vmem:[#allocation5 + $0x4d0] sm:$0xff]
    %v2479 = vld [vmem:[#allocation5 + $0x4d8] sm:$0xff]
    %v2480 = vld [vmem:[#allocation5 + $0x4e0] sm:$0xff]
    %v2481 = vld [vmem:[#allocation5 + $0x4e8] sm:$0xf]
    %v2482 = vld [vmem:[#allocation5 + $0x4ec] sm:$0xff]
    %v2483 = vld [vmem:[#allocation5 + $0x4f4] sm:$0xff]
    %v2484 = vld [vmem:[#allocation5 + $0x4fc] sm:$0xff]
    %v2485 = vld [vmem:[#allocation5 + $0x504] sm:$0xf]
    %v2486 = vld [vmem:[#allocation5 + $0x508] sm:$0xff]
    %v2487 = vld [vmem:[#allocation5 + $0x510] sm:$0xff]
    %v2488 = vld [vmem:[#allocation5 + $0x518] sm:$0xff]
    %v2489 = vld [vmem:[#allocation5 + $0x520] sm:$0xf]
    %v2490 = vld [vmem:[#allocation5 + $0x524] sm:$0xff]
    %v2491 = vld [vmem:[#allocation5 + $0x52c] sm:$0xff]
    %v2492 = vld [vmem:[#allocation5 + $0x534] sm:$0xff]
    %v2493 = vld [vmem:[#allocation5 + $0x53c] sm:$0xf]
    %v2494 = vld [vmem:[#allocation5 + $0x540] sm:$0xff]
    %v2495 = vld [vmem:[#allocation5 + $0x548] sm:$0xff]
    %v2496 = vld [vmem:[#allocation5 + $0x550] sm:$0xff]
    %v2497 = vld [vmem:[#allocation5 + $0x558] sm:$0xf]
    %v2498 = vld [vmem:[#allocation5 + $0x55c] sm:$0xff]
    %v2499 = vld [vmem:[#allocation5 + $0x564] sm:$0xff]
    %v2500 = vld [vmem:[#allocation5 + $0x56c] sm:$0xff]
    %v2501 = vld [vmem:[#allocation5 + $0x574] sm:$0xf]
    %v2502 = vld [vmem:[#allocation5 + $0x578] sm:$0xff]
    %v2503 = vld [vmem:[#allocation5 + $0x580] sm:$0xff]
    %v2504 = vld [vmem:[#allocation5 + $0x588] sm:$0xff]
    %v2505 = vld [vmem:[#allocation5 + $0x590] sm:$0xf]
    %v2506 = vld [vmem:[#allocation5 + $0x594] sm:$0xff]
    %v2507 = vld [vmem:[#allocation5 + $0x59c] sm:$0xff]
    %v2508 = vld [vmem:[#allocation5 + $0x5a4] sm:$0xff]
    %v2509 = vld [vmem:[#allocation5 + $0x5ac] sm:$0xf]
    %v2510 = vld [vmem:[#allocation5 + $0x5b0] sm:$0xff]
    %v2511 = vld [vmem:[#allocation5 + $0x5b8] sm:$0xff]
    %v2512 = vld [vmem:[#allocation5 + $0x5c0] sm:$0xff]
    %v2513 = vld [vmem:[#allocation5 + $0x5c8] sm:$0xf]
    %v2514 = vld [vmem:[#allocation5 + $0x5cc] sm:$0xff]
    %v2515 = vld [vmem:[#allocation5 + $0x5d4] sm:$0xff]
    %v2516 = vld [vmem:[#allocation5 + $0x5dc] sm:$0xff]
    %v2517 = vld [vmem:[#allocation5 + $0x5e4] sm:$0xf]
    %v2518 = vld [vmem:[#allocation5 + $0x5e8] sm:$0xff]
    %v2519 = vld [vmem:[#allocation5 + $0x5f0] sm:$0xff]
    %v2520 = vld [vmem:[#allocation5 + $0x5f8] sm:$0xff]
    %v2521 = vld [vmem:[#allocation5 + $0x600] sm:$0xf]
    %v2522 = vld [vmem:[#allocation5 + $0x604] sm:$0xff]
    %v2523 = vld [vmem:[#allocation5 + $0x60c] sm:$0xff]
    %v2524 = vld [vmem:[#allocation5 + $0x614] sm:$0xff]
    %v2525 = vld [vmem:[#allocation5 + $0x61c] sm:$0xf]
    %v2526 = vld [vmem:[#allocation5 + $0x620] sm:$0xff]
    %v2527 = vld [vmem:[#allocation5 + $0x628] sm:$0xff]
    %v2528 = vld [vmem:[#allocation5 + $0x630] sm:$0xff]
    %v2529 = vld [vmem:[#allocation5 + $0x638] sm:$0xf]
    %v2530 = vld [vmem:[#allocation5 + $0x63c] sm:$0xff]
    %v2531 = vld [vmem:[#allocation5 + $0x644] sm:$0xff]
    %v2532 = vld [vmem:[#allocation5 + $0x64c] sm:$0xff]
    %v2533 = vld [vmem:[#allocation5 + $0x654] sm:$0xf]
    %v2534 = vld [vmem:[#allocation5 + $0x658] sm:$0xff]
    %v2535 = vld [vmem:[#allocation5 + $0x660] sm:$0xff]
    %v2536 = vld [vmem:[#allocation5 + $0x668] sm:$0xff]
    %v2537 = vld [vmem:[#allocation5 + $0x670] sm:$0xf]
    %v2538 = vld [vmem:[#allocation5 + $0x674] sm:$0xff]
    %v2539 = vld [vmem:[#allocation5 + $0x67c] sm:$0xff]
    %v2540 = vld [vmem:[#allocation5 + $0x684] sm:$0xff]
    %v2541 = vld [vmem:[#allocation5 + $0x68c] sm:$0xf]
    %v2542 = vld [vmem:[#allocation5 + $0x690] sm:$0xff]
    %v2543 = vld [vmem:[#allocation5 + $0x698] sm:$0xff]
    %v2544 = vld [vmem:[#allocation5 + $0x6a0] sm:$0xff]
    %v2545 = vld [vmem:[#allocation5 + $0x6a8] sm:$0xf]
    %v2546 = vld [vmem:[#allocation5 + $0x6ac] sm:$0xff]
    %v2547 = vld [vmem:[#allocation5 + $0x6b4] sm:$0xff]
    %v2548 = vld [vmem:[#allocation5 + $0x6bc] sm:$0xff]
    %v2549 = vld [vmem:[#allocation5 + $0x6c4] sm:$0xf]
    %v2550 = vld [vmem:[#allocation5 + $0x6c8] sm:$0xff]
    %v2551 = vld [vmem:[#allocation5 + $0x6d0] sm:$0xff]
    %v2552 = vld [vmem:[#allocation5 + $0x6d8] sm:$0xff]
    %v2553 = vld [vmem:[#allocation5 + $0x6e0] sm:$0xf]
    %v2554 = vld [vmem:[#allocation5 + $0x6e4] sm:$0xff]
    %v2555 = vld [vmem:[#allocation5 + $0x6ec] sm:$0xff]
    %v2556 = vld [vmem:[#allocation5 + $0x6f4] sm:$0xff]
    %v2557 = vld [vmem:[#allocation5 + $0x6fc] sm:$0xf]
    %v2558 = vld [vmem:[%s9] sm:$0xff]
    %v2560 = vlaneseq
    %v2561 = vshrl.u32 %v2560, 7
    %v2562 = vsub.s32 0, %v2561
    %v2563 = vrot.slane %v2558, %v2562
    %v2564 = vlaneseq
    %v2565 = vshrl.u32 %v2564, 7
    %v2566 = vsub.s32 1, %v2565
    %v2567 = vrot.slane %v2558, %v2566
    %v2568 = vlaneseq
    %v2569 = vshrl.u32 %v2568, 7
    %v2570 = vsub.s32 2, %v2569
    %v2571 = vrot.slane %v2558, %v2570
    %v2572 = vlaneseq
    %v2573 = vshrl.u32 %v2572, 7
    %v2574 = vsub.s32 3, %v2573
    %v2575 = vrot.slane %v2558, %v2574
    %v2576 = vlaneseq
    %v2577 = vshrl.u32 %v2576, 7
    %v2578 = vsub.s32 4, %v2577
    %v2579 = vrot.slane %v2558, %v2578
    %v2580 = vlaneseq
    %v2581 = vshrl.u32 %v2580, 7
    %v2582 = vsub.s32 5, %v2581
    %v2583 = vrot.slane %v2558, %v2582
    %v2584 = vlaneseq
    %v2585 = vshrl.u32 %v2584, 7
    %v2586 = vsub.s32 6, %v2585
    %v2587 = vrot.slane %v2558, %v2586
    %v2851 = vunpack.c.l.b16 %v2302
    %v2852 = vunpack.c.h.b16 %v2302
    %v2853 = vunpack.c.l.b16 %v2303
    %v2854 = vunpack.c.h.b16 %v2303
    %v2855 = vunpack.c.l.b16 %v2304
    %v2856 = vunpack.c.h.b16 %v2304
    %v2857 = vunpack.c.l.b16 %v2305
    %v2858 = vunpack.c.l.b16 %v2306
    %v2859 = vunpack.c.h.b16 %v2306
    %v2860 = vunpack.c.l.b16 %v2307
    %v2861 = vunpack.c.h.b16 %v2307
    %v2862 = vunpack.c.l.b16 %v2308
    %v2863 = vunpack.c.h.b16 %v2308
    %v2864 = vunpack.c.l.b16 %v2309
    %v2865 = vunpack.c.l.b16 %v2310
    %v2866 = vunpack.c.h.b16 %v2310
    %v2867 = vunpack.c.l.b16 %v2311
    %v2868 = vunpack.c.h.b16 %v2311
    %v2869 = vunpack.c.l.b16 %v2312
    %v2870 = vunpack.c.h.b16 %v2312
    %v2871 = vunpack.c.l.b16 %v2313
    %v2872 = vunpack.c.l.b16 %v2314
    %v2873 = vunpack.c.h.b16 %v2314
    %v2874 = vunpack.c.l.b16 %v2315
    %v2875 = vunpack.c.h.b16 %v2315
    %v2876 = vunpack.c.l.b16 %v2316
    %v2877 = vunpack.c.h.b16 %v2316
    %v2878 = vunpack.c.l.b16 %v2317
    %v2879 = vunpack.c.l.b16 %v2318
    %v2880 = vunpack.c.h.b16 %v2318
    %v2881 = vunpack.c.l.b16 %v2319
    %v2882 = vunpack.c.h.b16 %v2319
    %v2883 = vunpack.c.l.b16 %v2320
    %v2884 = vunpack.c.h.b16 %v2320
    %v2885 = vunpack.c.l.b16 %v2321
    %v2886 = vunpack.c.l.b16 %v2322
    %v2887 = vunpack.c.h.b16 %v2322
    %v2888 = vunpack.c.l.b16 %v2323
    %v2889 = vunpack.c.h.b16 %v2323
    %v2890 = vunpack.c.l.b16 %v2324
    %v2891 = vunpack.c.h.b16 %v2324
    %v2892 = vunpack.c.l.b16 %v2325
    %v2893 = vunpack.c.l.b16 %v2326
    %v2894 = vunpack.c.h.b16 %v2326
    %v2895 = vunpack.c.l.b16 %v2327
    %v2896 = vunpack.c.h.b16 %v2327
    %v2897 = vunpack.c.l.b16 %v2328
    %v2898 = vunpack.c.h.b16 %v2328
    %v2899 = vunpack.c.l.b16 %v2329
    %v2900 = vunpack.c.l.b16 %v2330
    %v2901 = vunpack.c.h.b16 %v2330
    %v2902 = vunpack.c.l.b16 %v2331
    %v2903 = vunpack.c.h.b16 %v2331
    %v2904 = vunpack.c.l.b16 %v2332
    %v2905 = vunpack.c.h.b16 %v2332
    %v2906 = vunpack.c.l.b16 %v2333
    %v2907 = vunpack.c.l.b16 %v2334
    %v2908 = vunpack.c.h.b16 %v2334
    %v2909 = vunpack.c.l.b16 %v2335
    %v2910 = vunpack.c.h.b16 %v2335
    %v2911 = vunpack.c.l.b16 %v2336
    %v2912 = vunpack.c.h.b16 %v2336
    %v2913 = vunpack.c.l.b16 %v2337
    %v2914 = vunpack.c.l.b16 %v2338
    %v2915 = vunpack.c.h.b16 %v2338
    %v2916 = vunpack.c.l.b16 %v2339
    %v2917 = vunpack.c.h.b16 %v2339
    %v2918 = vunpack.c.l.b16 %v2340
    %v2919 = vunpack.c.h.b16 %v2340
    %v2920 = vunpack.c.l.b16 %v2341
    %v2921 = vunpack.c.l.b16 %v2342
    %v2922 = vunpack.c.h.b16 %v2342
    %v2923 = vunpack.c.l.b16 %v2343
    %v2924 = vunpack.c.h.b16 %v2343
    %v2925 = vunpack.c.l.b16 %v2344
    %v2926 = vunpack.c.h.b16 %v2344
    %v2927 = vunpack.c.l.b16 %v2345
    %v2928 = vunpack.c.l.b16 %v2346
    %v2929 = vunpack.c.h.b16 %v2346
    %v2930 = vunpack.c.l.b16 %v2347
    %v2931 = vunpack.c.h.b16 %v2347
    %v2932 = vunpack.c.l.b16 %v2348
    %v2933 = vunpack.c.h.b16 %v2348
    %v2934 = vunpack.c.l.b16 %v2349
    %v2935 = vunpack.c.l.b16 %v2350
    %v2936 = vunpack.c.h.b16 %v2350
    %v2937 = vunpack.c.l.b16 %v2351
    %v2938 = vunpack.c.h.b16 %v2351
    %v2939 = vunpack.c.l.b16 %v2352
    %v2940 = vunpack.c.h.b16 %v2352
    %v2941 = vunpack.c.l.b16 %v2353
    %v2942 = vunpack.c.l.b16 %v2354
    %v2943 = vunpack.c.h.b16 %v2354
    %v2944 = vunpack.c.l.b16 %v2355
    %v2945 = vunpack.c.h.b16 %v2355
    %v2946 = vunpack.c.l.b16 %v2356
    %v2947 = vunpack.c.h.b16 %v2356
    %v2948 = vunpack.c.l.b16 %v2357
    %v2949 = vunpack.c.l.b16 %v2358
    %v2950 = vunpack.c.h.b16 %v2358
    %v2951 = vunpack.c.l.b16 %v2359
    %v2952 = vunpack.c.h.b16 %v2359
    %v2953 = vunpack.c.l.b16 %v2360
    %v2954 = vunpack.c.h.b16 %v2360
    %v2955 = vunpack.c.l.b16 %v2361
    %v2956 = vunpack.c.l.b16 %v2362
    %v2957 = vunpack.c.h.b16 %v2362
    %v2958 = vunpack.c.l.b16 %v2363
    %v2959 = vunpack.c.h.b16 %v2363
    %v2960 = vunpack.c.l.b16 %v2364
    %v2961 = vunpack.c.h.b16 %v2364
    %v2962 = vunpack.c.l.b16 %v2365
    %v2963 = vunpack.c.l.b16 %v2366
    %v2964 = vunpack.c.h.b16 %v2366
    %v2965 = vunpack.c.l.b16 %v2367
    %v2966 = vunpack.c.h.b16 %v2367
    %v2967 = vunpack.c.l.b16 %v2368
    %v2968 = vunpack.c.h.b16 %v2368
    %v2969 = vunpack.c.l.b16 %v2369
    %v2970 = vunpack.c.l.b16 %v2370
    %v2971 = vunpack.c.h.b16 %v2370
    %v2972 = vunpack.c.l.b16 %v2371
    %v2973 = vunpack.c.h.b16 %v2371
    %v2974 = vunpack.c.l.b16 %v2372
    %v2975 = vunpack.c.h.b16 %v2372
    %v2976 = vunpack.c.l.b16 %v2373
    %v2977 = vunpack.c.l.b16 %v2374
    %v2978 = vunpack.c.h.b16 %v2374
    %v2979 = vunpack.c.l.b16 %v2375
    %v2980 = vunpack.c.h.b16 %v2375
    %v2981 = vunpack.c.l.b16 %v2376
    %v2982 = vunpack.c.h.b16 %v2376
    %v2983 = vunpack.c.l.b16 %v2377
    %v2984 = vunpack.c.l.b16 %v2378
    %v2985 = vunpack.c.h.b16 %v2378
    %v2986 = vunpack.c.l.b16 %v2379
    %v2987 = vunpack.c.h.b16 %v2379
    %v2988 = vunpack.c.l.b16 %v2380
    %v2989 = vunpack.c.h.b16 %v2380
    %v2990 = vunpack.c.l.b16 %v2381
    %v2991 = vunpack.c.l.b16 %v2382
    %v2992 = vunpack.c.h.b16 %v2382
    %v2993 = vunpack.c.l.b16 %v2383
    %v2994 = vunpack.c.h.b16 %v2383
    %v2995 = vunpack.c.l.b16 %v2384
    %v2996 = vunpack.c.h.b16 %v2384
    %v2997 = vunpack.c.l.b16 %v2385
    %v2998 = vunpack.c.l.b16 %v2386
    %v2999 = vunpack.c.h.b16 %v2386
    %v3000 = vunpack.c.l.b16 %v2387
    %v3001 = vunpack.c.h.b16 %v2387
    %v3002 = vunpack.c.l.b16 %v2388
    %v3003 = vunpack.c.h.b16 %v2388
    %v3004 = vunpack.c.l.b16 %v2389
    %v3005 = vunpack.c.l.b16 %v2390
    %v3006 = vunpack.c.h.b16 %v2390
    %v3007 = vunpack.c.l.b16 %v2391
    %v3008 = vunpack.c.h.b16 %v2391
    %v3009 = vunpack.c.l.b16 %v2392
    %v3010 = vunpack.c.h.b16 %v2392
    %v3011 = vunpack.c.l.b16 %v2393
    %v3012 = vunpack.c.l.b16 %v2394
    %v3013 = vunpack.c.h.b16 %v2394
    %v3014 = vunpack.c.l.b16 %v2395
    %v3015 = vunpack.c.h.b16 %v2395
    %v3016 = vunpack.c.l.b16 %v2396
    %v3017 = vunpack.c.h.b16 %v2396
    %v3018 = vunpack.c.l.b16 %v2397
    %v3019 = vunpack.c.l.b16 %v2398
    %v3020 = vunpack.c.h.b16 %v2398
    %v3021 = vunpack.c.l.b16 %v2399
    %v3022 = vunpack.c.h.b16 %v2399
    %v3023 = vunpack.c.l.b16 %v2400
    %v3024 = vunpack.c.h.b16 %v2400
    %v3025 = vunpack.c.l.b16 %v2401
    %v3026 = vunpack.c.l.b16 %v2402
    %v3027 = vunpack.c.h.b16 %v2402
    %v3028 = vunpack.c.l.b16 %v2403
    %v3029 = vunpack.c.h.b16 %v2403
    %v3030 = vunpack.c.l.b16 %v2404
    %v3031 = vunpack.c.h.b16 %v2404
    %v3032 = vunpack.c.l.b16 %v2405
    %v3033 = vunpack.c.l.b16 %v2406
    %v3034 = vunpack.c.h.b16 %v2406
    %v3035 = vunpack.c.l.b16 %v2407
    %v3036 = vunpack.c.h.b16 %v2407
    %v3037 = vunpack.c.l.b16 %v2408
    %v3038 = vunpack.c.h.b16 %v2408
    %v3039 = vunpack.c.l.b16 %v2409
    %v3040 = vunpack.c.l.b16 %v2410
    %v3041 = vunpack.c.h.b16 %v2410
    %v3042 = vunpack.c.l.b16 %v2411
    %v3043 = vunpack.c.h.b16 %v2411
    %v3044 = vunpack.c.l.b16 %v2412
    %v3045 = vunpack.c.h.b16 %v2412
    %v3046 = vunpack.c.l.b16 %v2413
    %v3047 = vunpack.c.l.b16 %v2414
    %v3048 = vunpack.c.h.b16 %v2414
    %v3049 = vunpack.c.l.b16 %v2415
    %v3050 = vunpack.c.h.b16 %v2415
    %v3051 = vunpack.c.l.b16 %v2416
    %v3052 = vunpack.c.h.b16 %v2416
    %v3053 = vunpack.c.l.b16 %v2417
    %v3054 = vunpack.c.l.b16 %v2418
    %v3055 = vunpack.c.h.b16 %v2418
    %v3056 = vunpack.c.l.b16 %v2419
    %v3057 = vunpack.c.h.b16 %v2419
    %v3058 = vunpack.c.l.b16 %v2420
    %v3059 = vunpack.c.h.b16 %v2420
    %v3060 = vunpack.c.l.b16 %v2421
    %v3061 = vunpack.c.l.b16 %v2422
    %v3062 = vunpack.c.h.b16 %v2422
    %v3063 = vunpack.c.l.b16 %v2423
    %v3064 = vunpack.c.h.b16 %v2423
    %v3065 = vunpack.c.l.b16 %v2424
    %v3066 = vunpack.c.h.b16 %v2424
    %v3067 = vunpack.c.l.b16 %v2425
    %v3068 = vunpack.c.l.b16 %v2426
    %v3069 = vunpack.c.h.b16 %v2426
    %v3070 = vunpack.c.l.b16 %v2427
    %v3071 = vunpack.c.h.b16 %v2427
    %v3072 = vunpack.c.l.b16 %v2428
    %v3073 = vunpack.c.h.b16 %v2428
    %v3074 = vunpack.c.l.b16 %v2429
    %v3075 = vunpack.c.l.b16 %v2430
    %v3076 = vunpack.c.h.b16 %v2430
    %v3077 = vunpack.c.l.b16 %v2431
    %v3078 = vunpack.c.h.b16 %v2431
    %v3079 = vunpack.c.l.b16 %v2432
    %v3080 = vunpack.c.h.b16 %v2432
    %v3081 = vunpack.c.l.b16 %v2433
    %v3082 = vunpack.c.l.b16 %v2434
    %v3083 = vunpack.c.h.b16 %v2434
    %v3084 = vunpack.c.l.b16 %v2435
    %v3085 = vunpack.c.h.b16 %v2435
    %v3086 = vunpack.c.l.b16 %v2436
    %v3087 = vunpack.c.h.b16 %v2436
    %v3088 = vunpack.c.l.b16 %v2437
    %v3089 = vunpack.c.l.b16 %v2438
    %v3090 = vunpack.c.h.b16 %v2438
    %v3091 = vunpack.c.l.b16 %v2439
    %v3092 = vunpack.c.h.b16 %v2439
    %v3093 = vunpack.c.l.b16 %v2440
    %v3094 = vunpack.c.h.b16 %v2440
    %v3095 = vunpack.c.l.b16 %v2441
    %v3096 = vunpack.c.l.b16 %v2442
    %v3097 = vunpack.c.h.b16 %v2442
    %v3098 = vunpack.c.l.b16 %v2443
    %v3099 = vunpack.c.h.b16 %v2443
    %v3100 = vunpack.c.l.b16 %v2444
    %v3101 = vunpack.c.h.b16 %v2444
    %v3102 = vunpack.c.l.b16 %v2445
    %v3103 = vunpack.c.l.b16 %v2446
    %v3104 = vunpack.c.h.b16 %v2446
    %v3105 = vunpack.c.l.b16 %v2447
    %v3106 = vunpack.c.h.b16 %v2447
    %v3107 = vunpack.c.l.b16 %v2448
    %v3108 = vunpack.c.h.b16 %v2448
    %v3109 = vunpack.c.l.b16 %v2449
    %v3110 = vunpack.c.l.b16 %v2450
    %v3111 = vunpack.c.h.b16 %v2450
    %v3112 = vunpack.c.l.b16 %v2451
    %v3113 = vunpack.c.h.b16 %v2451
    %v3114 = vunpack.c.l.b16 %v2452
    %v3115 = vunpack.c.h.b16 %v2452
    %v3116 = vunpack.c.l.b16 %v2453
    %v3117 = vunpack.c.l.b16 %v2454
    %v3118 = vunpack.c.h.b16 %v2454
    %v3119 = vunpack.c.l.b16 %v2455
    %v3120 = vunpack.c.h.b16 %v2455
    %v3121 = vunpack.c.l.b16 %v2456
    %v3122 = vunpack.c.h.b16 %v2456
    %v3123 = vunpack.c.l.b16 %v2457
    %v3124 = vunpack.c.l.b16 %v2458
    %v3125 = vunpack.c.h.b16 %v2458
    %v3126 = vunpack.c.l.b16 %v2459
    %v3127 = vunpack.c.h.b16 %v2459
    %v3128 = vunpack.c.l.b16 %v2460
    %v3129 = vunpack.c.h.b16 %v2460
    %v3130 = vunpack.c.l.b16 %v2461
    %v3131 = vunpack.c.l.b16 %v2462
    %v3132 = vunpack.c.h.b16 %v2462
    %v3133 = vunpack.c.l.b16 %v2463
    %v3134 = vunpack.c.h.b16 %v2463
    %v3135 = vunpack.c.l.b16 %v2464
    %v3136 = vunpack.c.h.b16 %v2464
    %v3137 = vunpack.c.l.b16 %v2465
    %v3138 = vunpack.c.l.b16 %v2466
    %v3139 = vunpack.c.h.b16 %v2466
    %v3140 = vunpack.c.l.b16 %v2467
    %v3141 = vunpack.c.h.b16 %v2467
    %v3142 = vunpack.c.l.b16 %v2468
    %v3143 = vunpack.c.h.b16 %v2468
    %v3144 = vunpack.c.l.b16 %v2469
    %v3145 = vunpack.c.l.b16 %v2470
    %v3146 = vunpack.c.h.b16 %v2470
    %v3147 = vunpack.c.l.b16 %v2471
    %v3148 = vunpack.c.h.b16 %v2471
    %v3149 = vunpack.c.l.b16 %v2472
    %v3150 = vunpack.c.h.b16 %v2472
    %v3151 = vunpack.c.l.b16 %v2473
    %v3152 = vunpack.c.l.b16 %v2474
    %v3153 = vunpack.c.h.b16 %v2474
    %v3154 = vunpack.c.l.b16 %v2475
    %v3155 = vunpack.c.h.b16 %v2475
    %v3156 = vunpack.c.l.b16 %v2476
    %v3157 = vunpack.c.h.b16 %v2476
    %v3158 = vunpack.c.l.b16 %v2477
    %v3159 = vunpack.c.l.b16 %v2478
    %v3160 = vunpack.c.h.b16 %v2478
    %v3161 = vunpack.c.l.b16 %v2479
    %v3162 = vunpack.c.h.b16 %v2479
    %v3163 = vunpack.c.l.b16 %v2480
    %v3164 = vunpack.c.h.b16 %v2480
    %v3165 = vunpack.c.l.b16 %v2481
    %v3166 = vunpack.c.l.b16 %v2482
    %v3167 = vunpack.c.h.b16 %v2482
    %v3168 = vunpack.c.l.b16 %v2483
    %v3169 = vunpack.c.h.b16 %v2483
    %v3170 = vunpack.c.l.b16 %v2484
    %v3171 = vunpack.c.h.b16 %v2484
    %v3172 = vunpack.c.l.b16 %v2485
    %v3173 = vunpack.c.l.b16 %v2486
    %v3174 = vunpack.c.h.b16 %v2486
    %v3175 = vunpack.c.l.b16 %v2487
    %v3176 = vunpack.c.h.b16 %v2487
    %v3177 = vunpack.c.l.b16 %v2488
    %v3178 = vunpack.c.h.b16 %v2488
    %v3179 = vunpack.c.l.b16 %v2489
    %v3180 = vunpack.c.l.b16 %v2490
    %v3181 = vunpack.c.h.b16 %v2490
    %v3182 = vunpack.c.l.b16 %v2491
    %v3183 = vunpack.c.h.b16 %v2491
    %v3184 = vunpack.c.l.b16 %v2492
    %v3185 = vunpack.c.h.b16 %v2492
    %v3186 = vunpack.c.l.b16 %v2493
    %v3187 = vunpack.c.l.b16 %v2494
    %v3188 = vunpack.c.h.b16 %v2494
    %v3189 = vunpack.c.l.b16 %v2495
    %v3190 = vunpack.c.h.b16 %v2495
    %v3191 = vunpack.c.l.b16 %v2496
    %v3192 = vunpack.c.h.b16 %v2496
    %v3193 = vunpack.c.l.b16 %v2497
    %v3194 = vunpack.c.l.b16 %v2498
    %v3195 = vunpack.c.h.b16 %v2498
    %v3196 = vunpack.c.l.b16 %v2499
    %v3197 = vunpack.c.h.b16 %v2499
    %v3198 = vunpack.c.l.b16 %v2500
    %v3199 = vunpack.c.h.b16 %v2500
    %v3200 = vunpack.c.l.b16 %v2501
    %v3201 = vunpack.c.l.b16 %v2502
    %v3202 = vunpack.c.h.b16 %v2502
    %v3203 = vunpack.c.l.b16 %v2503
    %v3204 = vunpack.c.h.b16 %v2503
    %v3205 = vunpack.c.l.b16 %v2504
    %v3206 = vunpack.c.h.b16 %v2504
    %v3207 = vunpack.c.l.b16 %v2505
    %v3208 = vunpack.c.l.b16 %v2506
    %v3209 = vunpack.c.h.b16 %v2506
    %v3210 = vunpack.c.l.b16 %v2507
    %v3211 = vunpack.c.h.b16 %v2507
    %v3212 = vunpack.c.l.b16 %v2508
    %v3213 = vunpack.c.h.b16 %v2508
    %v3214 = vunpack.c.l.b16 %v2509
    %v3215 = vunpack.c.l.b16 %v2510
    %v3216 = vunpack.c.h.b16 %v2510
    %v3217 = vunpack.c.l.b16 %v2511
    %v3218 = vunpack.c.h.b16 %v2511
    %v3219 = vunpack.c.l.b16 %v2512
    %v3220 = vunpack.c.h.b16 %v2512
    %v3221 = vunpack.c.l.b16 %v2513
    %v3222 = vunpack.c.l.b16 %v2514
    %v3223 = vunpack.c.h.b16 %v2514
    %v3224 = vunpack.c.l.b16 %v2515
    %v3225 = vunpack.c.h.b16 %v2515
    %v3226 = vunpack.c.l.b16 %v2516
    %v3227 = vunpack.c.h.b16 %v2516
    %v3228 = vunpack.c.l.b16 %v2517
    %v3229 = vunpack.c.l.b16 %v2518
    %v3230 = vunpack.c.h.b16 %v2518
    %v3231 = vunpack.c.l.b16 %v2519
    %v3232 = vunpack.c.h.b16 %v2519
    %v3233 = vunpack.c.l.b16 %v2520
    %v3234 = vunpack.c.h.b16 %v2520
    %v3235 = vunpack.c.l.b16 %v2521
    %v3236 = vunpack.c.l.b16 %v2522
    %v3237 = vunpack.c.h.b16 %v2522
    %v3238 = vunpack.c.l.b16 %v2523
    %v3239 = vunpack.c.h.b16 %v2523
    %v3240 = vunpack.c.l.b16 %v2524
    %v3241 = vunpack.c.h.b16 %v2524
    %v3242 = vunpack.c.l.b16 %v2525
    %v3243 = vunpack.c.l.b16 %v2526
    %v3244 = vunpack.c.h.b16 %v2526
    %v3245 = vunpack.c.l.b16 %v2527
    %v3246 = vunpack.c.h.b16 %v2527
    %v3247 = vunpack.c.l.b16 %v2528
    %v3248 = vunpack.c.h.b16 %v2528
    %v3249 = vunpack.c.l.b16 %v2529
    %v3250 = vunpack.c.l.b16 %v2530
    %v3251 = vunpack.c.h.b16 %v2530
    %v3252 = vunpack.c.l.b16 %v2531
    %v3253 = vunpack.c.h.b16 %v2531
    %v3254 = vunpack.c.l.b16 %v2532
    %v3255 = vunpack.c.h.b16 %v2532
    %v3256 = vunpack.c.l.b16 %v2533
    %v3257 = vunpack.c.l.b16 %v2534
    %v3258 = vunpack.c.h.b16 %v2534
    %v3259 = vunpack.c.l.b16 %v2535
    %v3260 = vunpack.c.h.b16 %v2535
    %v3261 = vunpack.c.l.b16 %v2536
    %v3262 = vunpack.c.h.b16 %v2536
    %v3263 = vunpack.c.l.b16 %v2537
    %v3264 = vunpack.c.l.b16 %v2538
    %v3265 = vunpack.c.h.b16 %v2538
    %v3266 = vunpack.c.l.b16 %v2539
    %v3267 = vunpack.c.h.b16 %v2539
    %v3268 = vunpack.c.l.b16 %v2540
    %v3269 = vunpack.c.h.b16 %v2540
    %v3270 = vunpack.c.l.b16 %v2541
    %v3271 = vunpack.c.l.b16 %v2542
    %v3272 = vunpack.c.h.b16 %v2542
    %v3273 = vunpack.c.l.b16 %v2543
    %v3274 = vunpack.c.h.b16 %v2543
    %v3275 = vunpack.c.l.b16 %v2544
    %v3276 = vunpack.c.h.b16 %v2544
    %v3277 = vunpack.c.l.b16 %v2545
    %v3278 = vunpack.c.l.b16 %v2546
    %v3279 = vunpack.c.h.b16 %v2546
    %v3280 = vunpack.c.l.b16 %v2547
    %v3281 = vunpack.c.h.b16 %v2547
    %v3282 = vunpack.c.l.b16 %v2548
    %v3283 = vunpack.c.h.b16 %v2548
    %v3284 = vunpack.c.l.b16 %v2549
    %v3285 = vunpack.c.l.b16 %v2550
    %v3286 = vunpack.c.h.b16 %v2550
    %v3287 = vunpack.c.l.b16 %v2551
    %v3288 = vunpack.c.h.b16 %v2551
    %v3289 = vunpack.c.l.b16 %v2552
    %v3290 = vunpack.c.h.b16 %v2552
    %v3291 = vunpack.c.l.b16 %v2553
    %v3292 = vunpack.c.l.b16 %v2554
    %v3293 = vunpack.c.h.b16 %v2554
    %v3294 = vunpack.c.l.b16 %v2555
    %v3295 = vunpack.c.h.b16 %v2555
    %v3296 = vunpack.c.l.b16 %v2556
    %v3297 = vunpack.c.h.b16 %v2556
    %v3298 = vunpack.c.l.b16 %v2557
    %v3299 = vpack.c.b16 %v2858, %v2851
    %v3300 = vpack.c.b16 %v2859, %v2852
    %v3301 = vpack.c.b16 %v2860, %v2853
    %v3302 = vpack.c.b16 %v2861, %v2854
    %v3303 = vpack.c.b16 %v2862, %v2855
    %v3304 = vpack.c.b16 %v2863, %v2856
    %v3305 = vpack.c.b16 %v2864, %v2857
    %v3306 = vpack.c.b16 %v2872, %v2865
    %v3307 = vpack.c.b16 %v2873, %v2866
    %v3308 = vpack.c.b16 %v2874, %v2867
    %v3309 = vpack.c.b16 %v2875, %v2868
    %v3310 = vpack.c.b16 %v2876, %v2869
    %v3311 = vpack.c.b16 %v2877, %v2870
    %v3312 = vpack.c.b16 %v2878, %v2871
    %v3313 = vpack.c.b16 %v2886, %v2879
    %v3314 = vpack.c.b16 %v2887, %v2880
    %v3315 = vpack.c.b16 %v2888, %v2881
    %v3316 = vpack.c.b16 %v2889, %v2882
    %v3317 = vpack.c.b16 %v2890, %v2883
    %v3318 = vpack.c.b16 %v2891, %v2884
    %v3319 = vpack.c.b16 %v2892, %v2885
    %v3320 = vpack.c.b16 %v2900, %v2893
    %v3321 = vpack.c.b16 %v2901, %v2894
    %v3322 = vpack.c.b16 %v2902, %v2895
    %v3323 = vpack.c.b16 %v2903, %v2896
    %v3324 = vpack.c.b16 %v2904, %v2897
    %v3325 = vpack.c.b16 %v2905, %v2898
    %v3326 = vpack.c.b16 %v2906, %v2899
    %v3327 = vpack.c.b16 %v2914, %v2907
    %v3328 = vpack.c.b16 %v2915, %v2908
    %v3329 = vpack.c.b16 %v2916, %v2909
    %v3330 = vpack.c.b16 %v2917, %v2910
    %v3331 = vpack.c.b16 %v2918, %v2911
    %v3332 = vpack.c.b16 %v2919, %v2912
    %v3333 = vpack.c.b16 %v2920, %v2913
    %v3334 = vpack.c.b16 %v2928, %v2921
    %v3335 = vpack.c.b16 %v2929, %v2922
    %v3336 = vpack.c.b16 %v2930, %v2923
    %v3337 = vpack.c.b16 %v2931, %v2924
    %v3338 = vpack.c.b16 %v2932, %v2925
    %v3339 = vpack.c.b16 %v2933, %v2926
    %v3340 = vpack.c.b16 %v2934, %v2927
    %v3341 = vpack.c.b16 %v2942, %v2935
    %v3342 = vpack.c.b16 %v2943, %v2936
    %v3343 = vpack.c.b16 %v2944, %v2937
    %v3344 = vpack.c.b16 %v2945, %v2938
    %v3345 = vpack.c.b16 %v2946, %v2939
    %v3346 = vpack.c.b16 %v2947, %v2940
    %v3347 = vpack.c.b16 %v2948, %v2941
    %v3348 = vpack.c.b16 %v2956, %v2949
    %v3349 = vpack.c.b16 %v2957, %v2950
    %v3350 = vpack.c.b16 %v2958, %v2951
    %v3351 = vpack.c.b16 %v2959, %v2952
    %v3352 = vpack.c.b16 %v2960, %v2953
    %v3353 = vpack.c.b16 %v2961, %v2954
    %v3354 = vpack.c.b16 %v2962, %v2955
    %v3355 = vpack.c.b16 %v2970, %v2963
    %v3356 = vpack.c.b16 %v2971, %v2964
    %v3357 = vpack.c.b16 %v2972, %v2965
    %v3358 = vpack.c.b16 %v2973, %v2966
    %v3359 = vpack.c.b16 %v2974, %v2967
    %v3360 = vpack.c.b16 %v2975, %v2968
    %v3361 = vpack.c.b16 %v2976, %v2969
    %v3362 = vpack.c.b16 %v2984, %v2977
    %v3363 = vpack.c.b16 %v2985, %v2978
    %v3364 = vpack.c.b16 %v2986, %v2979
    %v3365 = vpack.c.b16 %v2987, %v2980
    %v3366 = vpack.c.b16 %v2988, %v2981
    %v3367 = vpack.c.b16 %v2989, %v2982
    %v3368 = vpack.c.b16 %v2990, %v2983
    %v3369 = vpack.c.b16 %v2998, %v2991
    %v3370 = vpack.c.b16 %v2999, %v2992
    %v3371 = vpack.c.b16 %v3000, %v2993
    %v3372 = vpack.c.b16 %v3001, %v2994
    %v3373 = vpack.c.b16 %v3002, %v2995
    %v3374 = vpack.c.b16 %v3003, %v2996
    %v3375 = vpack.c.b16 %v3004, %v2997
    %v3376 = vpack.c.b16 %v3012, %v3005
    %v3377 = vpack.c.b16 %v3013, %v3006
    %v3378 = vpack.c.b16 %v3014, %v3007
    %v3379 = vpack.c.b16 %v3015, %v3008
    %v3380 = vpack.c.b16 %v3016, %v3009
    %v3381 = vpack.c.b16 %v3017, %v3010
    %v3382 = vpack.c.b16 %v3018, %v3011
    %v3383 = vpack.c.b16 %v3026, %v3019
    %v3384 = vpack.c.b16 %v3027, %v3020
    %v3385 = vpack.c.b16 %v3028, %v3021
    %v3386 = vpack.c.b16 %v3029, %v3022
    %v3387 = vpack.c.b16 %v3030, %v3023
    %v3388 = vpack.c.b16 %v3031, %v3024
    %v3389 = vpack.c.b16 %v3032, %v3025
    %v3390 = vpack.c.b16 %v3040, %v3033
    %v3391 = vpack.c.b16 %v3041, %v3034
    %v3392 = vpack.c.b16 %v3042, %v3035
    %v3393 = vpack.c.b16 %v3043, %v3036
    %v3394 = vpack.c.b16 %v3044, %v3037
    %v3395 = vpack.c.b16 %v3045, %v3038
    %v3396 = vpack.c.b16 %v3046, %v3039
    %v3397 = vpack.c.b16 %v3054, %v3047
    %v3398 = vpack.c.b16 %v3055, %v3048
    %v3399 = vpack.c.b16 %v3056, %v3049
    %v3400 = vpack.c.b16 %v3057, %v3050
    %v3401 = vpack.c.b16 %v3058, %v3051
    %v3402 = vpack.c.b16 %v3059, %v3052
    %v3403 = vpack.c.b16 %v3060, %v3053
    %v3404 = vpack.c.b16 %v3068, %v3061
    %v3405 = vpack.c.b16 %v3069, %v3062
    %v3406 = vpack.c.b16 %v3070, %v3063
    %v3407 = vpack.c.b16 %v3071, %v3064
    %v3408 = vpack.c.b16 %v3072, %v3065
    %v3409 = vpack.c.b16 %v3073, %v3066
    %v3410 = vpack.c.b16 %v3074, %v3067
    %v3411 = vpack.c.b16 %v3082, %v3075
    %v3412 = vpack.c.b16 %v3083, %v3076
    %v3413 = vpack.c.b16 %v3084, %v3077
    %v3414 = vpack.c.b16 %v3085, %v3078
    %v3415 = vpack.c.b16 %v3086, %v3079
    %v3416 = vpack.c.b16 %v3087, %v3080
    %v3417 = vpack.c.b16 %v3088, %v3081
    %v3418 = vpack.c.b16 %v3096, %v3089
    %v3419 = vpack.c.b16 %v3097, %v3090
    %v3420 = vpack.c.b16 %v3098, %v3091
    %v3421 = vpack.c.b16 %v3099, %v3092
    %v3422 = vpack.c.b16 %v3100, %v3093
    %v3423 = vpack.c.b16 %v3101, %v3094
    %v3424 = vpack.c.b16 %v3102, %v3095
    %v3425 = vpack.c.b16 %v3110, %v3103
    %v3426 = vpack.c.b16 %v3111, %v3104
    %v3427 = vpack.c.b16 %v3112, %v3105
    %v3428 = vpack.c.b16 %v3113, %v3106
    %v3429 = vpack.c.b16 %v3114, %v3107
    %v3430 = vpack.c.b16 %v3115, %v3108
    %v3431 = vpack.c.b16 %v3116, %v3109
    %v3432 = vpack.c.b16 %v3124, %v3117
    %v3433 = vpack.c.b16 %v3125, %v3118
    %v3434 = vpack.c.b16 %v3126, %v3119
    %v3435 = vpack.c.b16 %v3127, %v3120
    %v3436 = vpack.c.b16 %v3128, %v3121
    %v3437 = vpack.c.b16 %v3129, %v3122
    %v3438 = vpack.c.b16 %v3130, %v3123
    %v3439 = vpack.c.b16 %v3138, %v3131
    %v3440 = vpack.c.b16 %v3139, %v3132
    %v3441 = vpack.c.b16 %v3140, %v3133
    %v3442 = vpack.c.b16 %v3141, %v3134
    %v3443 = vpack.c.b16 %v3142, %v3135
    %v3444 = vpack.c.b16 %v3143, %v3136
    %v3445 = vpack.c.b16 %v3144, %v3137
    %v3446 = vpack.c.b16 %v3152, %v3145
    %v3447 = vpack.c.b16 %v3153, %v3146
    %v3448 = vpack.c.b16 %v3154, %v3147
    %v3449 = vpack.c.b16 %v3155, %v3148
    %v3450 = vpack.c.b16 %v3156, %v3149
    %v3451 = vpack.c.b16 %v3157, %v3150
    %v3452 = vpack.c.b16 %v3158, %v3151
    %v3453 = vpack.c.b16 %v3166, %v3159
    %v3454 = vpack.c.b16 %v3167, %v3160
    %v3455 = vpack.c.b16 %v3168, %v3161
    %v3456 = vpack.c.b16 %v3169, %v3162
    %v3457 = vpack.c.b16 %v3170, %v3163
    %v3458 = vpack.c.b16 %v3171, %v3164
    %v3459 = vpack.c.b16 %v3172, %v3165
    %v3460 = vpack.c.b16 %v3180, %v3173
    %v3461 = vpack.c.b16 %v3181, %v3174
    %v3462 = vpack.c.b16 %v3182, %v3175
    %v3463 = vpack.c.b16 %v3183, %v3176
    %v3464 = vpack.c.b16 %v3184, %v3177
    %v3465 = vpack.c.b16 %v3185, %v3178
    %v3466 = vpack.c.b16 %v3186, %v3179
    %v3467 = vpack.c.b16 %v3194, %v3187
    %v3468 = vpack.c.b16 %v3195, %v3188
    %v3469 = vpack.c.b16 %v3196, %v3189
    %v3470 = vpack.c.b16 %v3197, %v3190
    %v3471 = vpack.c.b16 %v3198, %v3191
    %v3472 = vpack.c.b16 %v3199, %v3192
    %v3473 = vpack.c.b16 %v3200, %v3193
    %v3474 = vpack.c.b16 %v3208, %v3201
    %v3475 = vpack.c.b16 %v3209, %v3202
    %v3476 = vpack.c.b16 %v3210, %v3203
    %v3477 = vpack.c.b16 %v3211, %v3204
    %v3478 = vpack.c.b16 %v3212, %v3205
    %v3479 = vpack.c.b16 %v3213, %v3206
    %v3480 = vpack.c.b16 %v3214, %v3207
    %v3481 = vpack.c.b16 %v3222, %v3215
    %v3482 = vpack.c.b16 %v3223, %v3216
    %v3483 = vpack.c.b16 %v3224, %v3217
    %v3484 = vpack.c.b16 %v3225, %v3218
    %v3485 = vpack.c.b16 %v3226, %v3219
    %v3486 = vpack.c.b16 %v3227, %v3220
    %v3487 = vpack.c.b16 %v3228, %v3221
    %v3488 = vpack.c.b16 %v3236, %v3229
    %v3489 = vpack.c.b16 %v3237, %v3230
    %v3490 = vpack.c.b16 %v3238, %v3231
    %v3491 = vpack.c.b16 %v3239, %v3232
    %v3492 = vpack.c.b16 %v3240, %v3233
    %v3493 = vpack.c.b16 %v3241, %v3234
    %v3494 = vpack.c.b16 %v3242, %v3235
    %v3495 = vpack.c.b16 %v3250, %v3243
    %v3496 = vpack.c.b16 %v3251, %v3244
    %v3497 = vpack.c.b16 %v3252, %v3245
    %v3498 = vpack.c.b16 %v3253, %v3246
    %v3499 = vpack.c.b16 %v3254, %v3247
    %v3500 = vpack.c.b16 %v3255, %v3248
    %v3501 = vpack.c.b16 %v3256, %v3249
    %v3502 = vpack.c.b16 %v3264, %v3257
    %v3503 = vpack.c.b16 %v3265, %v3258
    %v3504 = vpack.c.b16 %v3266, %v3259
    %v3505 = vpack.c.b16 %v3267, %v3260
    %v3506 = vpack.c.b16 %v3268, %v3261
    %v3507 = vpack.c.b16 %v3269, %v3262
    %v3508 = vpack.c.b16 %v3270, %v3263
    %v3509 = vpack.c.b16 %v3278, %v3271
    %v3510 = vpack.c.b16 %v3279, %v3272
    %v3511 = vpack.c.b16 %v3280, %v3273
    %v3512 = vpack.c.b16 %v3281, %v3274
    %v3513 = vpack.c.b16 %v3282, %v3275
    %v3514 = vpack.c.b16 %v3283, %v3276
    %v3515 = vpack.c.b16 %v3284, %v3277
    %v3516 = vpack.c.b16 %v3292, %v3285
    %v3517 = vpack.c.b16 %v3293, %v3286
    %v3518 = vpack.c.b16 %v3294, %v3287
    %v3519 = vpack.c.b16 %v3295, %v3288
    %v3520 = vpack.c.b16 %v3296, %v3289
    %v3521 = vpack.c.b16 %v3297, %v3290
    %v3522 = vpack.c.b16 %v3298, %v3291
    %3747 = vmatprep.subr.bf16.mxu0 %v3300
    %3748 = vmatpush1.bf16.msra.mxu0 %v3299
    %3749 = vmatprep.subr.bf16.mxu0 %v3307
    %3750 = vmatpush1.bf16.msra.mxu0 %v3306
    %3751 = vmatprep.subr.bf16.mxu0 %v3314
    %3752 = vmatpush1.bf16.msra.mxu0 %v3313
    %3753 = vmatprep.subr.bf16.mxu0 %v3321
    %3754 = vmatpush1.bf16.msra.mxu0 %v3320
    %3755 = vmatprep.subr.bf16.mxu0 %v3328
    %3756 = vmatpush1.bf16.msra.mxu0 %v3327
    %3757 = vmatprep.subr.bf16.mxu0 %v3335
    %3758 = vmatpush1.bf16.msra.mxu0 %v3334
    %3759 = vmatprep.subr.bf16.mxu0 %v3342
    %3760 = vmatpush1.bf16.msra.mxu0 %v3341
    %3761 = vmatprep.subr.bf16.mxu0 %v3349
    %3762 = vmatpush1.bf16.msra.mxu0 %v3348
    %3763 = vmatprep.subr.bf16.mxu0 %v3356
    %3764 = vmatpush1.bf16.msra.mxu0 %v3355
    %3765 = vmatprep.subr.bf16.mxu0 %v3363
    %3766 = vmatpush1.bf16.msra.mxu0 %v3362
    %3767 = vmatprep.subr.bf16.mxu0 %v3370
    %3768 = vmatpush1.bf16.msra.mxu0 %v3369
    %3769 = vmatprep.subr.bf16.mxu0 %v3377
    %3770 = vmatpush1.bf16.msra.mxu0 %v3376
    %3771 = vmatprep.subr.bf16.mxu0 %v3384
    %3772 = vmatpush1.bf16.msra.mxu0 %v3383
    %3773 = vmatprep.subr.bf16.mxu0 %v3391
    %3774 = vmatpush1.bf16.msra.mxu0 %v3390
    %3775 = vmatprep.subr.bf16.mxu0 %v3398
    %3776 = vmatpush1.bf16.msra.mxu0 %v3397
    %3777 = vmatprep.subr.bf16.mxu0 %v3405
    %3778 = vmatpush1.bf16.msra.mxu0 %v3404
    %3779 = vmatprep.mubr.bf16.mxu0 %v2299
    %3780 = vmatmul.mubr.bf16.gmra.mrb[0].mxu0 %v2298
    %v3781 = vpop.f32.mrb[0].mxu0
    %v3782 = vadd.f32 %v2563, %v3781
    %v3783 = vpop.f32.mrb[0].mxu0
    %v3784 = vadd.f32 %v2567, %v3783
    %v3785 = vpop.f32.mrb[0].mxu0
    %v3786 = vpop.f32.mrb[0].mxu0
    %3787 = vdwg.mxu0
    %3788 = vmatprep.subr.bf16.mxu0 %v3412
    %3789 = vmatpush1.bf16.msra.mxu0 %v3411
    %3790 = vmatprep.subr.bf16.mxu0 %v3419
    %3791 = vmatpush1.bf16.msra.mxu0 %v3418
    %3792 = vmatprep.subr.bf16.mxu0 %v3426
    %3793 = vmatpush1.bf16.msra.mxu0 %v3425
    %3794 = vmatprep.subr.bf16.mxu0 %v3433
    %3795 = vmatpush1.bf16.msra.mxu0 %v3432
    %3796 = vmatprep.subr.bf16.mxu0 %v3440
    %3797 = vmatpush1.bf16.msra.mxu0 %v3439
    %3798 = vmatprep.subr.bf16.mxu0 %v3447
    %3799 = vmatpush1.bf16.msra.mxu0 %v3446
    %3800 = vmatprep.subr.bf16.mxu0 %v3454
    %3801 = vmatpush1.bf16.msra.mxu0 %v3453
    %3802 = vmatprep.subr.bf16.mxu0 %v3461
    %3803 = vmatpush1.bf16.msra.mxu0 %v3460
    %3804 = vmatprep.subr.bf16.mxu0 %v3468
    %3805 = vmatpush1.bf16.msra.mxu0 %v3467
    %3806 = vmatprep.subr.bf16.mxu0 %v3475
    %3807 = vmatpush1.bf16.msra.mxu0 %v3474
    %3808 = vmatprep.subr.bf16.mxu0 %v3482
    %3809 = vmatpush1.bf16.msra.mxu0 %v3481
    %3810 = vmatprep.subr.bf16.mxu0 %v3489
    %3811 = vmatpush1.bf16.msra.mxu0 %v3488
    %3812 = vmatprep.subr.bf16.mxu0 %v3496
    %3813 = vmatpush1.bf16.msra.mxu0 %v3495
    %3814 = vmatprep.subr.bf16.mxu0 %v3503
    %3815 = vmatpush1.bf16.msra.mxu0 %v3502
    %3816 = vmatprep.subr.bf16.mxu0 %v3510
    %3817 = vmatpush1.bf16.msra.mxu0 %v3509
    %3818 = vmatprep.subr.bf16.mxu0 %v3517
    %3819 = vmatpush1.bf16.msra.mxu0 %v3516
    %3820 = vmatprep.mubr.bf16.mxu0 %v2301
    %3821 = vmatmul.mubr.bf16.gmra.mrb[0].mxu0 %v2300
    %v3822 = vpop.f32.mrb[0].mxu0
    %v3823 = vadd.f32 %v3782, %v3822
    %v3824 = vpop.f32.mrb[0].mxu0
    %v3825 = vadd.f32 %v3784, %v3824
    %v3826 = vpop.f32.mrb[0].mxu0
    %v3827 = vpop.f32.mrb[0].mxu0
    %3828 = vdwg.mxu0
    %3829 = vmatprep.subr.bf16.mxu0 %v3302
    %3830 = vmatpush1.bf16.msra.mxu0 %v3301
    %3831 = vmatprep.subr.bf16.mxu0 %v3309
    %3832 = vmatpush1.bf16.msra.mxu0 %v3308
    %3833 = vmatprep.subr.bf16.mxu0 %v3316
    %3834 = vmatpush1.bf16.msra.mxu0 %v3315
    %3835 = vmatprep.subr.bf16.mxu0 %v3323
    %3836 = vmatpush1.bf16.msra.mxu0 %v3322
    %3837 = vmatprep.subr.bf16.mxu0 %v3330
    %3838 = vmatpush1.bf16.msra.mxu0 %v3329
    %3839 = vmatprep.subr.bf16.mxu0 %v3337
    %3840 = vmatpush1.bf16.msra.mxu0 %v3336
    %3841 = vmatprep.subr.bf16.mxu0 %v3344
    %3842 = vmatpush1.bf16.msra.mxu0 %v3343
    %3843 = vmatprep.subr.bf16.mxu0 %v3351
    %3844 = vmatpush1.bf16.msra.mxu0 %v3350
    %3845 = vmatprep.subr.bf16.mxu0 %v3358
    %3846 = vmatpush1.bf16.msra.mxu0 %v3357
    %3847 = vmatprep.subr.bf16.mxu0 %v3365
    %3848 = vmatpush1.bf16.msra.mxu0 %v3364
    %3849 = vmatprep.subr.bf16.mxu0 %v3372
    %3850 = vmatpush1.bf16.msra.mxu0 %v3371
    %3851 = vmatprep.subr.bf16.mxu0 %v3379
    %3852 = vmatpush1.bf16.msra.mxu0 %v3378
    %3853 = vmatprep.subr.bf16.mxu0 %v3386
    %3854 = vmatpush1.bf16.msra.mxu0 %v3385
    %3855 = vmatprep.subr.bf16.mxu0 %v3393
    %3856 = vmatpush1.bf16.msra.mxu0 %v3392
    %3857 = vmatprep.subr.bf16.mxu0 %v3400
    %3858 = vmatpush1.bf16.msra.mxu0 %v3399
    %3859 = vmatprep.subr.bf16.mxu0 %v3407
    %3860 = vmatpush1.bf16.msra.mxu0 %v3406
    %3861 = vmatprep.mubr.bf16.mxu0 %v2299
    %3862 = vmatmul.mubr.bf16.gmra.mrb[0].mxu0 %v2298
    %v3863 = vpop.f32.mrb[0].mxu0
    %v3864 = vadd.f32 %v2571, %v3863
    %v3865 = vpop.f32.mrb[0].mxu0
    %v3866 = vadd.f32 %v2575, %v3865
    %v3867 = vpop.f32.mrb[0].mxu0
    %v3868 = vpop.f32.mrb[0].mxu0
    %3869 = vdwg.mxu0
    %3870 = vmatprep.subr.bf16.mxu0 %v3414
    %3871 = vmatpush1.bf16.msra.mxu0 %v3413
    %3872 = vmatprep.subr.bf16.mxu0 %v3421
    %3873 = vmatpush1.bf16.msra.mxu0 %v3420
    %3874 = vmatprep.subr.bf16.mxu0 %v3428
    %3875 = vmatpush1.bf16.msra.mxu0 %v3427
    %3876 = vmatprep.subr.bf16.mxu0 %v3435
    %3877 = vmatpush1.bf16.msra.mxu0 %v3434
    %3878 = vmatprep.subr.bf16.mxu0 %v3442
    %3879 = vmatpush1.bf16.msra.mxu0 %v3441
    %3880 = vmatprep.subr.bf16.mxu0 %v3449
    %3881 = vmatpush1.bf16.msra.mxu0 %v3448
    %3882 = vmatprep.subr.bf16.mxu0 %v3456
    %3883 = vmatpush1.bf16.msra.mxu0 %v3455
    %3884 = vmatprep.subr.bf16.mxu0 %v3463
    %3885 = vmatpush1.bf16.msra.mxu0 %v3462
    %3886 = vmatprep.subr.bf16.mxu0 %v3470
    %3887 = vmatpush1.bf16.msra.mxu0 %v3469
    %3888 = vmatprep.subr.bf16.mxu0 %v3477
    %3889 = vmatpush1.bf16.msra.mxu0 %v3476
    %3890 = vmatprep.subr.bf16.mxu0 %v3484
    %3891 = vmatpush1.bf16.msra.mxu0 %v3483
    %3892 = vmatprep.subr.bf16.mxu0 %v3491
    %3893 = vmatpush1.bf16.msra.mxu0 %v3490
    %3894 = vmatprep.subr.bf16.mxu0 %v3498
    %3895 = vmatpush1.bf16.msra.mxu0 %v3497
    %3896 = vmatprep.subr.bf16.mxu0 %v3505
    %3897 = vmatpush1.bf16.msra.mxu0 %v3504
    %3898 = vmatprep.subr.bf16.mxu0 %v3512
    %3899 = vmatpush1.bf16.msra.mxu0 %v3511
    %3900 = vmatprep.subr.bf16.mxu0 %v3519
    %3901 = vmatpush1.bf16.msra.mxu0 %v3518
    %3902 = vmatprep.mubr.bf16.mxu0 %v2301
    %3903 = vmatmul.mubr.bf16.gmra.mrb[0].mxu0 %v2300
    %v3904 = vpop.f32.mrb[0].mxu0
    %v3905 = vadd.f32 %v3864, %v3904
    %v3906 = vpop.f32.mrb[0].mxu0
    %v3907 = vadd.f32 %v3866, %v3906
    %v3908 = vpop.f32.mrb[0].mxu0
    %v3909 = vpop.f32.mrb[0].mxu0
    %3910 = vdwg.mxu0
    %3911 = vmatprep.subr.bf16.mxu0 %v3304
    %3912 = vmatpush1.bf16.msra.mxu0 %v3303
    %3913 = vmatprep.subr.bf16.mxu0 %v3311
    %3914 = vmatpush1.bf16.msra.mxu0 %v3310
    %3915 = vmatprep.subr.bf16.mxu0 %v3318
    %3916 = vmatpush1.bf16.msra.mxu0 %v3317
    %3917 = vmatprep.subr.bf16.mxu0 %v3325
    %3918 = vmatpush1.bf16.msra.mxu0 %v3324
    %3919 = vmatprep.subr.bf16.mxu0 %v3332
    %3920 = vmatpush1.bf16.msra.mxu0 %v3331
    %3921 = vmatprep.subr.bf16.mxu0 %v3339
    %3922 = vmatpush1.bf16.msra.mxu0 %v3338
    %3923 = vmatprep.subr.bf16.mxu0 %v3346
    %3924 = vmatpush1.bf16.msra.mxu0 %v3345
    %3925 = vmatprep.subr.bf16.mxu0 %v3353
    %3926 = vmatpush1.bf16.msra.mxu0 %v3352
    %3927 = vmatprep.subr.bf16.mxu0 %v3360
    %3928 = vmatpush1.bf16.msra.mxu0 %v3359
    %3929 = vmatprep.subr.bf16.mxu0 %v3367
    %3930 = vmatpush1.bf16.msra.mxu0 %v3366
    %3931 = vmatprep.subr.bf16.mxu0 %v3374
    %3932 = vmatpush1.bf16.msra.mxu0 %v3373
    %3933 = vmatprep.subr.bf16.mxu0 %v3381
    %3934 = vmatpush1.bf16.msra.mxu0 %v3380
    %3935 = vmatprep.subr.bf16.mxu0 %v3388
    %3936 = vmatpush1.bf16.msra.mxu0 %v3387
    %3937 = vmatprep.subr.bf16.mxu0 %v3395
    %3938 = vmatpush1.bf16.msra.mxu0 %v3394
    %3939 = vmatprep.subr.bf16.mxu0 %v3402
    %3940 = vmatpush1.bf16.msra.mxu0 %v3401
    %3941 = vmatprep.subr.bf16.mxu0 %v3409
    %3942 = vmatpush1.bf16.msra.mxu0 %v3408
    %3943 = vmatprep.mubr.bf16.mxu0 %v2299
    %3944 = vmatmul.mubr.bf16.gmra.mrb[0].mxu0 %v2298
    %v3945 = vpop.f32.mrb[0].mxu0
    %v3946 = vadd.f32 %v2579, %v3945
    %v3947 = vpop.f32.mrb[0].mxu0
    %v3948 = vadd.f32 %v2583, %v3947
    %v3949 = vpop.f32.mrb[0].mxu0
    %v3950 = vpop.f32.mrb[0].mxu0
    %3951 = vdwg.mxu0
    %3952 = vmatprep.subr.bf16.mxu0 %v3416
    %3953 = vmatpush1.bf16.msra.mxu0 %v3415
    %3954 = vmatprep.subr.bf16.mxu0 %v3423
    %3955 = vmatpush1.bf16.msra.mxu0 %v3422
    %3956 = vmatprep.subr.bf16.mxu0 %v3430
    %3957 = vmatpush1.bf16.msra.mxu0 %v3429
    %3958 = vmatprep.subr.bf16.mxu0 %v3437
    %3959 = vmatpush1.bf16.msra.mxu0 %v3436
    %3960 = vmatprep.subr.bf16.mxu0 %v3444
    %3961 = vmatpush1.bf16.msra.mxu0 %v3443
    %3962 = vmatprep.subr.bf16.mxu0 %v3451
    %3963 = vmatpush1.bf16.msra.mxu0 %v3450
    %3964 = vmatprep.subr.bf16.mxu0 %v3458
    %3965 = vmatpush1.bf16.msra.mxu0 %v3457
    %3966 = vmatprep.subr.bf16.mxu0 %v3465
    %3967 = vmatpush1.bf16.msra.mxu0 %v3464
    %3968 = vmatprep.subr.bf16.mxu0 %v3472
    %3969 = vmatpush1.bf16.msra.mxu0 %v3471
    %3970 = vmatprep.subr.bf16.mxu0 %v3479
    %3971 = vmatpush1.bf16.msra.mxu0 %v3478
    %3972 = vmatprep.subr.bf16.mxu0 %v3486
    %3973 = vmatpush1.bf16.msra.mxu0 %v3485
    %3974 = vmatprep.subr.bf16.mxu0 %v3493
    %3975 = vmatpush1.bf16.msra.mxu0 %v3492
    %3976 = vmatprep.subr.bf16.mxu0 %v3500
    %3977 = vmatpush1.bf16.msra.mxu0 %v3499
    %3978 = vmatprep.subr.bf16.mxu0 %v3507
    %3979 = vmatpush1.bf16.msra.mxu0 %v3506
    %3980 = vmatprep.subr.bf16.mxu0 %v3514
    %3981 = vmatpush1.bf16.msra.mxu0 %v3513
    %3982 = vmatprep.subr.bf16.mxu0 %v3521
    %3983 = vmatpush1.bf16.msra.mxu0 %v3520
    %3984 = vmatprep.mubr.bf16.mxu0 %v2301
    %3985 = vmatmul.mubr.bf16.gmra.mrb[0].mxu0 %v2300
    %v3986 = vpop.f32.mrb[0].mxu0
    %v3987 = vadd.f32 %v3946, %v3986
    %v3988 = vpop.f32.mrb[0].mxu0
    %v3989 = vadd.f32 %v3948, %v3988
    %v3990 = vpop.f32.mrb[0].mxu0
    %v3991 = vpop.f32.mrb[0].mxu0
    %3992 = vdwg.mxu0
    %3993 = vmatprep.subr.bf16.mxu0 0
    %3994 = vmatpush1.bf16.msra.mxu0 %v3305
    %3995 = vmatprep.subr.bf16.mxu0 0
    %3996 = vmatpush1.bf16.msra.mxu0 %v3312
    %3997 = vmatprep.subr.bf16.mxu0 0
    %3998 = vmatpush1.bf16.msra.mxu0 %v3319
    %3999 = vmatprep.subr.bf16.mxu0 0
    %4000 = vmatpush1.bf16.msra.mxu0 %v3326
    %4001 = vmatprep.subr.bf16.mxu0 0
    %4002 = vmatpush1.bf16.msra.mxu0 %v3333
    %4003 = vmatprep.subr.bf16.mxu0 0
    %4004 = vmatpush1.bf16.msra.mxu0 %v3340
    %4005 = vmatprep.subr.bf16.mxu0 0
    %4006 = vmatpush1.bf16.msra.mxu0 %v3347
    %4007 = vmatprep.subr.bf16.mxu0 0
    %4008 = vmatpush1.bf16.msra.mxu0 %v3354
    %4009 = vmatprep.subr.bf16.mxu0 0
    %4010 = vmatpush1.bf16.msra.mxu0 %v3361
    %4011 = vmatprep.subr.bf16.mxu0 0
    %4012 = vmatpush1.bf16.msra.mxu0 %v3368
    %4013 = vmatprep.subr.bf16.mxu0 0
    %4014 = vmatpush1.bf16.msra.mxu0 %v3375
    %4015 = vmatprep.subr.bf16.mxu0 0
    %4016 = vmatpush1.bf16.msra.mxu0 %v3382
    %4017 = vmatprep.subr.bf16.mxu0 0
    %4018 = vmatpush1.bf16.msra.mxu0 %v3389
    %4019 = vmatprep.subr.bf16.mxu0 0
    %4020 = vmatpush1.bf16.msra.mxu0 %v3396
    %4021 = vmatprep.subr.bf16.mxu0 0
    %4022 = vmatpush1.bf16.msra.mxu0 %v3403
    %4023 = vmatprep.subr.bf16.mxu0 0
    %4024 = vmatpush1.bf16.msra.mxu0 %v3410
    %4025 = vmatprep.mubr.bf16.mxu0 %v2299
    %4026 = vmatmul.mubr.bf16.gmra.mrb[0].mxu0 %v2298
    %v4027 = vpop.f32.mrb[0].mxu0
    %v4028 = vadd.f32 %v2587, %v4027
    %v4029 = vpop.f32.mrb[0].mxu0
    %v4030 = vpop.f32.mrb[0].mxu0
    %v4031 = vpop.f32.mrb[0].mxu0
    %4032 = vdwg.mxu0
    %4033 = vmatprep.subr.bf16.mxu0 0
    %4034 = vmatpush1.bf16.msra.mxu0 %v3417
    %4035 = vmatprep.subr.bf16.mxu0 0
    %4036 = vmatpush1.bf16.msra.mxu0 %v3424
    %4037 = vmatprep.subr.bf16.mxu0 0
    %4038 = vmatpush1.bf16.msra.mxu0 %v3431
    %4039 = vmatprep.subr.bf16.mxu0 0
    %4040 = vmatpush1.bf16.msra.mxu0 %v3438
    %4041 = vmatprep.subr.bf16.mxu0 0
    %4042 = vmatpush1.bf16.msra.mxu0 %v3445
    %4043 = vmatprep.subr.bf16.mxu0 0
    %4044 = vmatpush1.bf16.msra.mxu0 %v3452
    %4045 = vmatprep.subr.bf16.mxu0 0
    %4046 = vmatpush1.bf16.msra.mxu0 %v3459
    %4047 = vmatprep.subr.bf16.mxu0 0
    %4048 = vmatpush1.bf16.msra.mxu0 %v3466
    %4049 = vmatprep.subr.bf16.mxu0 0
    %4050 = vmatpush1.bf16.msra.mxu0 %v3473
    %4051 = vmatprep.subr.bf16.mxu0 0
    %4052 = vmatpush1.bf16.msra.mxu0 %v3480
    %4053 = vmatprep.subr.bf16.mxu0 0
    %4054 = vmatpush1.bf16.msra.mxu0 %v3487
    %4055 = vmatprep.subr.bf16.mxu0 0
    %4056 = vmatpush1.bf16.msra.mxu0 %v3494
    %4057 = vmatprep.subr.bf16.mxu0 0
    %4058 = vmatpush1.bf16.msra.mxu0 %v3501
    %4059 = vmatprep.subr.bf16.mxu0 0
    %4060 = vmatpush1.bf16.msra.mxu0 %v3508
    %4061 = vmatprep.subr.bf16.mxu0 0
    %4062 = vmatpush1.bf16.msra.mxu0 %v3515
    %4063 = vmatprep.subr.bf16.mxu0 0
    %4064 = vmatpush1.bf16.msra.mxu0 %v3522
    %4065 = vmatprep.mubr.bf16.mxu0 %v2301
    %4066 = vmatmul.mubr.bf16.gmra.mrb[0].mxu0 %v2300
    %v4067 = vpop.f32.mrb[0].mxu0
    %v4068 = vadd.f32 %v4028, %v4067
    %v4069 = vpop.f32.mrb[0].mxu0
    %v4070 = vpop.f32.mrb[0].mxu0
    %v4071 = vpop.f32.mrb[0].mxu0
    %4072 = vdwg.mxu0
    %v4073 = vxor.u32 %v3823, 2147483648
    %v4074 = vxor.u32 %v3825, 2147483648
    %v4075 = vxor.u32 %v3905, 2147483648
    %v4076 = vxor.u32 %v3907, 2147483648
    %v4077 = vxor.u32 %v3987, 2147483648
    %v4078 = vxor.u32 %v3989, 2147483648
    %v4079 = vxor.u32 %v4068, 2147483648
    %v4080 = vmul.f32 %v4073, 1.442695
    %v4081 = vpow.pop %v4080
    %v4082 = vmul.f32 %v4074, 1.442695
    %v4083 = vpow.pop %v4082
    %v4084 = vmul.f32 %v4075, 1.442695
    %v4085 = vpow.pop %v4084
    %v4086 = vmul.f32 %v4076, 1.442695
    %v4087 = vpow.pop %v4086
    %v4088 = vmul.f32 %v4077, 1.442695
    %v4089 = vpow.pop %v4088
    %v4090 = vmul.f32 %v4078, 1.442695
    %v4091 = vpow.pop %v4090
    %v4092 = vmul.f32 %v4079, 1.442695
    %v4093 = vpow.pop %v4092
    %v4094 = vadd.f32 %v4081, 1.0
    %v4095 = vadd.f32 %v4083, 1.0
    %v4096 = vadd.f32 %v4085, 1.0
    %v4097 = vadd.f32 %v4087, 1.0
    %v4098 = vadd.f32 %v4089, 1.0
    %v4099 = vadd.f32 %v4091, 1.0
    %v4100 = vadd.f32 %v4093, 1.0
    %v4101 = vrcp.pop %v4094
    %v4102 = vmul.f32 1.0, %v4101
    %v4103 = vrcp.pop %v4095
    %v4104 = vmul.f32 1.0, %v4103
    %v4105 = vrcp.pop %v4096
    %v4106 = vmul.f32 1.0, %v4105
    %v4107 = vrcp.pop %v4097
    %v4108 = vmul.f32 1.0, %v4107
    %v4109 = vrcp.pop %v4098
    %v4110 = vmul.f32 1.0, %v4109
    %v4111 = vrcp.pop %v4099
    %v4112 = vmul.f32 1.0, %v4111
    %v4113 = vrcp.pop %v4100
    %v4114 = vmul.f32 1.0, %v4113
    %4115 = vst [vmem:[#allocation7] sm:$0xff] %v4102
    %4116 = vst [vmem:[#allocation7 + $0x8] sm:$0xff] %v4104
    %4117 = vst [vmem:[#allocation7 + $0x10] sm:$0xff] %v4106
    %4118 = vst [vmem:[#allocation7 + $0x18] sm:$0xff] %v4108
    %4119 = vst [vmem:[#allocation7 + $0x20] sm:$0xff] %v4110
    %4120 = vst [vmem:[#allocation7 + $0x28] sm:$0xff] %v4112
    %4121 = vst [vmem:[#allocation7 + $0x30] sm:$0xff] %v4114
    // Predicated region
    $region50: #{vanila_vae_forward.1} parent=1 // pred_check
      _
    $region51: #{vanila_vae_forward.1} parent=1 // pred_check_branch
      %4123 = sbr.rel (0) target = $region53
    $region52: #{vanila_vae_forward.1} parent=1 // pred_region
      %s4125 = ssub.s32 896, 896
      %4126 = vsyncadd [#allocation4], %s4125
      %s4128 = sshll.u32 [#allocation7], 4
      %s4129 = int_to_ptr.vmem [resolvable:$true] %s4128
      %4131 = dma.vmem_to_hbm [thread:$0]  %s4129, 896, %s10, [#allocation4]
    $region53: #{vanila_vae_forward.1} parent=1 // pred_fallthru
      _
    // Predicated region
    $region54: #{vanila_vae_forward.1} parent=1 // pred_check
      _
    $region55: #{vanila_vae_forward.1} parent=1 // pred_check_branch
      %4133 = sbr.rel (0) target = $region57
    $region56: #{vanila_vae_forward.1} parent=1 // pred_region
      _
    $region57: #{vanila_vae_forward.1} parent=1 // pred_fallthru
      _
    // Predicated region
    $region58: #{vanila_vae_forward.1} parent=1 // pred_check
      _
    $region59: #{vanila_vae_forward.1} parent=1 // pred_check_branch
      %4135 = sbr.rel (0) target = $region61
    $region60: #{vanila_vae_forward.1} parent=1 // pred_region
      %4136 = dma.done [#allocation4], 896
    $region61: #{vanila_vae_forward.1} parent=1 // pred_fallthru
      _
    // Predicated region
    $region62: #{vanila_vae_forward.1} parent=1 // pred_check
      _
    $region63: #{vanila_vae_forward.1} parent=1 // pred_check_branch
      %4138 = sbr.rel (0) target = $region65
    $region64: #{vanila_vae_forward.1} parent=1 // pred_region
      _
    $region65: #{vanila_vae_forward.1} parent=1 // pred_fallthru
      _
    %4139 = vsyncpa [#allocation3], 1
    %4140 = vsyncpa [#allocation6], 1
    %4141 = vsyncpa [#allocation4], 1

</llo_original>
